<compile_context>
chip_gen: v6e
topology: v6e:2x2x1
jax: 0.10.0
libtpu: 0.0.40
codegen_flags: <defaults>
</compile_context>

<pallas_src>
import jax
import jax.numpy as jnp
from jax.experimental import pallas as pl
from jax.experimental.pallas import tpu as pltpu

D_MODEL = 32
N_HEADS = 4
D_HEAD = D_MODEL // N_HEADS
D_FF = 64
EPS = 1e-5  # BatchNorm1d default eps


# ----------------------------------------------------------------------------
# Kernel: one grid step == TB fused (batch * n_vars) sequences.
# ----------------------------------------------------------------------------
def decoder_layer_kernel(x_ref, cross_ref,
                         wqkv_ref, bqkv_ref, wo_ref, bo_ref,
                         nrm_ref, w1_ref, b1_ref, w2_ref, b2_ref,
                         out_ref):
    TB, L, D = x_ref.shape
    Lc = cross_ref.shape[1]
    f32 = jnp.float32
    bf16 = jnp.bfloat16
    scale = D_HEAD ** -0.5
    TBL = TB * L

    # Flatten to (rows, D) slabs (leading-dim-only reshapes -> layout no-ops).
    x2 = x_ref[...].reshape(TBL, D)               # f32 (residual source)
    cr2b = cross_ref[...].reshape(TB * Lc, D)     # already bf16 (K/V source)

    # ---- fused Q|K|V projection: one MXU call (perf #2) ---------------------
    # rows = [x ; cross], cols = [Wq | Wk | Wv]; the q-of-cross and kv-of-x
    # quadrants are discarded (free: the matmul is MXU-padding dominated).
    xc = jnp.concatenate([x2.astype(bf16), cr2b], axis=0)        # (TBL+TB*Lc, D)
    qkv = jnp.dot(xc, wqkv_ref[...],
                  preferred_element_type=f32) + bqkv_ref[...]    # (rows, 3D)

    # ---- cross attention, heads batched over all TB sequences ---------------
    # Heads remain static 8-lane slices (head-major 4-D transpose is not a
    # reliably supported Mosaic relayout); scores/outputs per head use 3-D
    # batched einsums.  Head outputs are lane-concatenated once and fed to a
    # single Wo matmul (perf #3).
    head_outs = []
    for h in range(N_HEADS):
        qh = qkv[:TBL, h * D_HEAD:(h + 1) * D_HEAD]
        qh = qh.reshape(TB, L, D_HEAD).astype(bf16)
        kh = qkv[TBL:, D + h * D_HEAD:D + (h + 1) * D_HEAD]
        kh = kh.reshape(TB, Lc, D_HEAD).astype(bf16)
        vh = qkv[TBL:, 2 * D + h * D_HEAD:2 * D + (h + 1) * D_HEAD]
        vh = vh.reshape(TB, Lc, D_HEAD).astype(bf16)

        s = jnp.einsum('bqd,bkd->bqk', qh, kh,
                       preferred_element_type=f32) * scale       # (TB, L, Lc)
        s = s - jnp.max(s, axis=-1, keepdims=True)
        p = jnp.exp(s)
        # approx reciprocal runs on the EUP slot; p * inv stays f32.
        p = p * pl.reciprocal(jnp.sum(p, axis=-1, keepdims=True), approx=True)
        oh = jnp.einsum('bqk,bkd->bqd', p.astype(bf16), vh,
                        preferred_element_type=f32)              # (TB, L, Dh)
        head_outs.append(oh.reshape(TBL, D_HEAD))

    o_cat = jnp.concatenate(head_outs, axis=-1)                  # (TBL, D)
    attn = jnp.dot(o_cat.astype(bf16), wo_ref[...],
                   preferred_element_type=f32) + bo_ref[...]

    # ---- norm1 (BatchNorm eval folded to scale/shift) + residual ------------
    nrm = nrm_ref[...]                                           # (4, D) f32
    x_cross = attn * nrm[0:1, :] + nrm[1:2, :] + x2

    # NOTE: causal self-attention / norm2 / dropout branch of the reference
    # forward is dead code w.r.t. the returned value and is omitted.

    # ---- MLP -> norm3 + residual ---------------------------------------------
    h1 = jnp.dot(x_cross.astype(bf16), w1_ref[...],
                 preferred_element_type=f32) + b1_ref[...]
    h1 = jnp.maximum(h1, 0.0)
    ff = jnp.dot(h1.astype(bf16), w2_ref[...],
                 preferred_element_type=f32) + b2_ref[...]
    ff = ff * nrm[2:3, :] + nrm[3:4, :] + x_cross                # (TBL, D) f32

    # ---- lane-dense store (perf #1) ------------------------------------------
    # out block is (TB, L*D): one in-kernel relayout so the stores (and the
    # write-back DMA rows) are full-lane instead of 32/128 masked accesses.
    ff3 = ff.reshape(TB, L, D)
    dense = jnp.concatenate([ff3[:, l, :] for l in range(L)], axis=-1)
    out_ref[...] = dense.astype(out_ref.dtype)


# ----------------------------------------------------------------------------
# One-time parameter prep (perf #9: hoisted out of the per-call path)
# ----------------------------------------------------------------------------
def prepare_decoder_params(params):
    bf16 = jnp.bfloat16
    f32 = jnp.float32
    ca_w, ca_b = params["ca_w"], params["ca_b"]
    wqkv = jnp.concatenate([ca_w[0], ca_w[1], ca_w[2]], axis=1).astype(bf16)  # (D, 3D)
    bqkv = jnp.concatenate([ca_b[0], ca_b[1], ca_b[2]],
                           axis=0).reshape(1, 3 * D_MODEL).astype(f32)
    wo = ca_w[3].astype(bf16)                                                  # (D, D)
    bo = ca_b[3].reshape(1, D_MODEL).astype(f32)

    # Fold BatchNorm1d (eval) running stats into scale/shift (norm1 & norm3).
    g1, be1, m1, v1 = params["norm"][0]
    g3, be3, m3, v3 = params["norm"][2]
    s1 = g1 * jax.lax.rsqrt(v1 + EPS)
    s3 = g3 * jax.lax.rsqrt(v3 + EPS)
    nrm = jnp.stack([s1, be1 - m1 * s1, s3, be3 - m3 * s3], axis=0).astype(f32)

    return dict(
        wqkv=wqkv, bqkv=bqkv, wo=wo, bo=bo, nrm=nrm,
        w1=params["mlp_w1"].astype(bf16),
        b1=params["mlp_b1"].reshape(1, D_FF).astype(f32),
        w2=params["mlp_w2"].astype(bf16),
        b2=params["mlp_b2"].reshape(1, D_MODEL).astype(f32),
    )


# ----------------------------------------------------------------------------
# Wrapper
# ----------------------------------------------------------------------------
def decoder_layer_pallas(x, cross, prep, output_num_patch, *,
                         num_blocks=1, vmem_limit_bytes=32 * 1024 * 1024):
    # num_blocks sizing (perf review):
    #   v5e/v6e small problems: 1 fat block; at scale keep ~512-2048 rows/block
    #   and >=4 grid steps so DMA overlaps compute.
    #   v7x: >=2 blocks (2 TensorCores) and ~2x more blocks than v6e for the
    #   same problem (64 MiB VMEM/TC); keep the per-block resident set < ~24MiB.
    # TODO(synk): on v7x verify via xprof that grid=(num_blocks,) with
    # "parallel" lands one block per TensorCore; if not, switch to
    # pltpu.CORE_PARALLEL or pl.core_map over a tensorcore mesh.
    del output_num_patch  # only feeds the dead self-attention branch
    batch, n_vars, num_patch, d_model = x.shape
    bn = batch * n_vars
    assert bn % num_blocks == 0, "num_blocks must divide batch*n_vars"
    TB = bn // num_blocks

    x2 = x.reshape(bn, num_patch, d_model)                        # f32 (residual)
    cr2 = cross.reshape(bn, -1, d_model).astype(jnp.bfloat16)     # perf #8: K/V-only
    lc = cr2.shape[1]

    def full2(a):  # small 2-D parameter arrays: one full-extent block
        return pl.BlockSpec(a.shape, lambda b: (0, 0))

    in_specs = [
        pl.BlockSpec((TB, num_patch, d_model), lambda b: (b, 0, 0)),   # x
        pl.BlockSpec((TB, lc, d_model), lambda b: (b, 0, 0)),          # cross
        full2(prep["wqkv"]), full2(prep["bqkv"]),
        full2(prep["wo"]), full2(prep["bo"]),
        full2(prep["nrm"]),
        full2(prep["w1"]), full2(prep["b1"]),
        full2(prep["w2"]), full2(prep["b2"]),
    ]
    # Lane-dense output: (bn, num_patch*d_model) so the minor dim is 256.
    out_spec = pl.BlockSpec((TB, num_patch * d_model), lambda b: (b, 0))

    out = pl.pallas_call(
        decoder_layer_kernel,
        out_shape=jax.ShapeDtypeStruct((bn, num_patch * d_model), x.dtype),
        grid_spec=pltpu.PrefetchScalarGridSpec(
            num_scalar_prefetch=0,
            grid=(num_blocks,),
            in_specs=in_specs,
            out_specs=out_spec,
        ),
        compiler_params=pltpu.CompilerParams(
            dimension_semantics=("parallel",),
            vmem_limit_bytes=vmem_limit_bytes,
        ),
    )(x2, cr2, prep["wqkv"], prep["bqkv"], prep["wo"], prep["bo"],
      prep["nrm"], prep["w1"], prep["b1"], prep["w2"], prep["b2"])
    return out.reshape(batch, n_vars, num_patch, d_model)


# ----------------------------------------------------------------------------
# Pure-JAX f32 reference (same math as the PyTorch module's returned value)
# ----------------------------------------------------------------------------
def decoder_layer_ref(x, cross, params, output_num_patch):
    del output_num_patch
    batch, n_vars, num_patch, d_model = x.shape
    bn = batch * n_vars
    xx = x.reshape(bn, num_patch, d_model)
    cc = cross.reshape(bn, -1, d_model)
    scale = D_HEAD ** -0.5

    def mha(q_in, kv_in, w, b):
        Q = jnp.einsum("bld,de->ble", q_in, w[0]) + b[0]
        K = jnp.einsum("bld,de->ble", kv_in, w[1]) + b[1]
        V = jnp.einsum("bld,de->ble", kv_in, w[2]) + b[2]

        def split(t):
            B, L, _ = t.shape
            return t.reshape(B, L, N_HEADS, D_HEAD).transpose(0, 2, 1, 3)

        q, k, v = split(Q), split(K), split(V)
        s = jnp.einsum("bhqd,bhkd->bhqk", q, k) * scale
        p = jax.nn.softmax(s, axis=-1)
        o = jnp.einsum("bhqk,bhkd->bhqd", p, v)
        o = o.transpose(0, 2, 1, 3).reshape(q_in.shape[0], -1, d_model)
        return jnp.einsum("bld,de->ble", o, w[3]) + b[3]

    def bn_eval(v, idx):
        g, be, m, var = params["norm"][idx]
        return (v - m) * jax.lax.rsqrt(var + EPS) * g + be

    x_cross = bn_eval(mha(xx, cc, params["ca_w"], params["ca_b"]), 0) + xx
    # (self-attention / norm2 branch omitted: dead w.r.t. the returned value)
    h = jax.nn.relu(jnp.einsum("bld,df->blf", x_cross, params["mlp_w1"])
                    + params["mlp_b1"][0])
    x_ff = jnp.einsum("blf,fd->bld", h, params["mlp_w2"]) + params["mlp_b2"][0]
    x_ff = bn_eval(x_ff, 2) + x_cross
    return x_ff.reshape(batch, n_vars, num_patch, d_model)


if __name__ == "__main__":
    batch, n_vars, num_patch, cross_patch = 2, 3, 8, 8
    d_model, d_ff = D_MODEL, D_FF

    key = jax.random.PRNGKey(0)
    keys = jax.random.split(key, 16)

    x = jax.random.normal(keys[0], (batch, n_vars, num_patch, d_model), jnp.float32)
    cross = jax.random.normal(keys[1], (batch, n_vars, cross_patch, d_model), jnp.float32)

    def lin(k, shape, scale=0.1):
        return scale * jax.random.normal(k, shape, jnp.float32)

    params = {
        "ca_w": lin(keys[2], (4, d_model, d_model)),
        "ca_b": lin(keys[3], (4, d_model)),
        # self-attention params exist in the module but are dead for the output
        "sa_w": lin(keys[4], (4, d_model, d_model)),
        "sa_b": lin(keys[5], (4, d_model)),
        "mlp_w1": lin(keys[6], (d_model, d_ff)),
        "mlp_b1": lin(keys[7], (1, d_ff)),
        "mlp_w2": lin(keys[8], (d_ff, d_model)),
        "mlp_b2": lin(keys[9], (1, d_model)),
    }
    gamma = 1.0 + 0.1 * jax.random.normal(keys[10], (3, d_model), jnp.float32)
    beta = 0.1 * jax.random.normal(keys[11], (3, d_model), jnp.float32)
    rmean = 0.1 * jax.random.normal(keys[12], (3, d_model), jnp.float32)
    rvar = 1.0 + 0.1 * jax.random.uniform(keys[13], (3, d_model), jnp.float32)
    params["norm"] = jnp.stack([gamma, beta, rmean, rvar], axis=1)  # (3, 4, D)

    # Parameter prep runs ONCE per layer (perf #9), outside the per-call path.
    prep = prepare_decoder_params(params)

    # Keep the (tiny) wrapper-side reshape/cast under the same jit as the
    # pallas_call so it does not launch separate small XLA ops per forward.
    @jax.jit
    def fwd(x_, cross_):
        # num_blocks=1: single fat block (v5e/v6e, small problem).
        # On v7x use num_blocks=2; at large bn*num_patch use >=4 blocks.
        return decoder_layer_pallas(x_, cross_, prep, num_patch, num_blocks=1)

    out = fwd(x, cross)
    jax.block_until_ready(out)

    ref = decoder_layer_ref(x, cross, params, num_patch)
    assert out.shape == (batch, n_vars, num_patch, d_model)
    err = float(jnp.max(jnp.abs(out - ref)))
    # bf16 MXU operands + approx reciprocal vs f32 reference: error ~1e-2.
    assert jnp.allclose(out, ref, atol=5e-2, rtol=5e-2), f"max abs err {err}"

    print("KERNEL_OK")
</pallas_src>

<mosaic_0001>
module attributes {stable_mosaic.version = 11 : i64} {
  func.func @decoder_layer_kernel(%arg0: i32, %arg1: memref<6x8x32xf32, #tpu.memory_space<vmem>>, %arg2: memref<6x8x32xbf16, #tpu.memory_space<vmem>>, %arg3: memref<32x96xbf16, #tpu.memory_space<vmem>>, %arg4: memref<1x96xf32, #tpu.memory_space<vmem>>, %arg5: memref<32x32xbf16, #tpu.memory_space<vmem>>, %arg6: memref<1x32xf32, #tpu.memory_space<vmem>>, %arg7: memref<4x32xf32, #tpu.memory_space<vmem>>, %arg8: memref<32x64xbf16, #tpu.memory_space<vmem>>, %arg9: memref<1x64xf32, #tpu.memory_space<vmem>>, %arg10: memref<64x32xbf16, #tpu.memory_space<vmem>>, %arg11: memref<1x32xf32, #tpu.memory_space<vmem>>, %arg12: memref<6x256xf32, #tpu.memory_space<vmem>>) attributes {dimension_semantics = [#tpu.dimension_semantics<parallel>], iteration_bounds = array<i64: 1>, scalar_prefetch = 0 : i64, scratch_operands = 0 : i64, tpu.core_type = #tpu.core_type<tc>, window_params = [{transform_indices = @transform_0, window_bounds = array<i64: 6, 8, 32>}, {transform_indices = @transform_1, window_bounds = array<i64: 6, 8, 32>}, {pipeline_mode = #tpu.pipeline_mode<synchronous>, transform_indices = @transform_2, window_bounds = array<i64: 32, 96>}, {pipeline_mode = #tpu.pipeline_mode<synchronous>, transform_indices = @transform_3, window_bounds = array<i64: 1, 96>}, {pipeline_mode = #tpu.pipeline_mode<synchronous>, transform_indices = @transform_4, window_bounds = array<i64: 32, 32>}, {pipeline_mode = #tpu.pipeline_mode<synchronous>, transform_indices = @transform_5, window_bounds = array<i64: 1, 32>}, {pipeline_mode = #tpu.pipeline_mode<synchronous>, transform_indices = @transform_6, window_bounds = array<i64: 4, 32>}, {pipeline_mode = #tpu.pipeline_mode<synchronous>, transform_indices = @transform_7, window_bounds = array<i64: 32, 64>}, {pipeline_mode = #tpu.pipeline_mode<synchronous>, transform_indices = @transform_8, window_bounds = array<i64: 1, 64>}, {pipeline_mode = #tpu.pipeline_mode<synchronous>, transform_indices = @transform_9, window_bounds = array<i64: 64, 32>}, {pipeline_mode = #tpu.pipeline_mode<synchronous>, transform_indices = @transform_10, window_bounds = array<i64: 1, 32>}, {transform_indices = @transform_11, window_bounds = array<i64: 6, 256>}]} {
    %c0 = arith.constant 0 : index
    %c0_0 = arith.constant 0 : index
    %c0_1 = arith.constant 0 : index
    %0 = vector.load %arg1[%c0, %c0_0, %c0_1] : memref<6x8x32xf32, #tpu.memory_space<vmem>>, vector<6x8x32xf32>
    %1 = vector.shape_cast %0 : vector<6x8x32xf32> to vector<48x32xf32>
    %c0_2 = arith.constant 0 : index
    %c0_3 = arith.constant 0 : index
    %c0_4 = arith.constant 0 : index
    %2 = vector.load %arg2[%c0_2, %c0_3, %c0_4] : memref<6x8x32xbf16, #tpu.memory_space<vmem>>, vector<6x8x32xbf16>
    %3 = vector.shape_cast %2 : vector<6x8x32xbf16> to vector<48x32xbf16>
    %4 = arith.truncf %1 : vector<48x32xf32> to vector<48x32xbf16>
    %5 = tpu.concatenate %4, %3 in 0 : vector<48x32xbf16>, vector<48x32xbf16> -> vector<96x32xbf16>
    %c0_5 = arith.constant 0 : index
    %c0_6 = arith.constant 0 : index
    %6 = vector.load %arg3[%c0_5, %c0_6] : memref<32x96xbf16, #tpu.memory_space<vmem>>, vector<32x96xbf16>
    %cst = arith.constant dense<0.000000e+00> : vector<96x96xf32>
    %7 = tpu.matmul %5, %6, %cst {dimension_numbers = #tpu.dot_dimension_numbers<[1], [0], [0], [1], [0, 0, 1, 1], [], []>} : vector<96x32xbf16>, vector<32x96xbf16>, vector<96x96xf32> -> vector<96x96xf32>
    %c0_7 = arith.constant 0 : index
    %c0_8 = arith.constant 0 : index
    %8 = vector.load %arg4[%c0_7, %c0_8] : memref<1x96xf32, #tpu.memory_space<vmem>>, vector<1x96xf32>
    %9 = vector.broadcast %8 : vector<1x96xf32> to vector<96x96xf32>
    %10 = arith.addf %7, %9 : vector<96x96xf32>
    %11 = vector.extract_strided_slice %10 {offsets = [0, 0], sizes = [48, 8], strides = [1, 1]} : vector<96x96xf32> to vector<48x8xf32>
    %12 = vector.shape_cast %11 : vector<48x8xf32> to vector<6x8x8xf32>
    %13 = arith.truncf %12 : vector<6x8x8xf32> to vector<6x8x8xbf16>
    %14 = vector.extract_strided_slice %10 {offsets = [48, 32], sizes = [48, 8], strides = [1, 1]} : vector<96x96xf32> to vector<48x8xf32>
    %15 = vector.shape_cast %14 : vector<48x8xf32> to vector<6x8x8xf32>
    %16 = arith.truncf %15 : vector<6x8x8xf32> to vector<6x8x8xbf16>
    %17 = vector.extract_strided_slice %10 {offsets = [48, 64], sizes = [48, 8], strides = [1, 1]} : vector<96x96xf32> to vector<48x8xf32>
    %18 = vector.shape_cast %17 : vector<48x8xf32> to vector<6x8x8xf32>
    %19 = arith.truncf %18 : vector<6x8x8xf32> to vector<6x8x8xbf16>
    "tpu.trace_start"() <{level = 10 : i32, message = "bqd,bkd->bqk"}> : () -> ()
    %cst_9 = arith.constant dense<0.000000e+00> : vector<6x8x8xf32>
    %20 = tpu.matmul %13, %16, %cst_9 {dimension_numbers = #tpu.dot_dimension_numbers<[2], [2], [1], [1], [0, 0, 0, 1, 1, 1], [0], [0]>} : vector<6x8x8xbf16>, vector<6x8x8xbf16>, vector<6x8x8xf32> -> vector<6x8x8xf32>
    "tpu.trace_stop"() : () -> ()
    %cst_10 = arith.constant 0.353553385 : f32
    %21 = vector.broadcast %cst_10 : f32 to vector<6x8x8xf32>
    %22 = arith.mulf %20, %21 : vector<6x8x8xf32>
    %cst_11 = arith.constant dense<0xFF800000> : vector<6x8xf32>
    %23 = vector.multi_reduction <maximumf>, %22, %cst_11 [2] : vector<6x8x8xf32> to vector<6x8xf32>
    %24 = vector.shape_cast %23 : vector<6x8xf32> to vector<6x8x1xf32>
    %25 = vector.broadcast %24 : vector<6x8x1xf32> to vector<6x8x8xf32>
    %26 = arith.subf %22, %25 : vector<6x8x8xf32>
    %27 = math.exp %26 : vector<6x8x8xf32>
    %cst_12 = arith.constant dense<0.000000e+00> : vector<6x8xf32>
    %28 = vector.multi_reduction <add>, %27, %cst_12 [2] : vector<6x8x8xf32> to vector<6x8xf32>
    %29 = vector.shape_cast %28 : vector<6x8xf32> to vector<6x8x1xf32>
    %30 = tpu.reciprocal %29 {approx = true} : vector<6x8x1xf32> -> vector<6x8x1xf32>
    %31 = vector.broadcast %30 : vector<6x8x1xf32> to vector<6x8x8xf32>
    %32 = arith.mulf %27, %31 : vector<6x8x8xf32>
    %33 = arith.truncf %32 : vector<6x8x8xf32> to vector<6x8x8xbf16>
    "tpu.trace_start"() <{level = 10 : i32, message = "bqk,bkd->bqd"}> : () -> ()
    %cst_13 = arith.constant dense<0.000000e+00> : vector<6x8x8xf32>
    %34 = tpu.matmul %33, %19, %cst_13 {dimension_numbers = #tpu.dot_dimension_numbers<[2], [1], [1], [2], [0, 0, 0, 1, 1, 2], [0], [0]>} : vector<6x8x8xbf16>, vector<6x8x8xbf16>, vector<6x8x8xf32> -> vector<6x8x8xf32>
    "tpu.trace_stop"() : () -> ()
    %35 = vector.shape_cast %34 : vector<6x8x8xf32> to vector<48x8xf32>
    %36 = vector.extract_strided_slice %10 {offsets = [0, 8], sizes = [48, 8], strides = [1, 1]} : vector<96x96xf32> to vector<48x8xf32>
    %37 = vector.shape_cast %36 : vector<48x8xf32> to vector<6x8x8xf32>
    %38 = arith.truncf %37 : vector<6x8x8xf32> to vector<6x8x8xbf16>
    %39 = vector.extract_strided_slice %10 {offsets = [48, 40], sizes = [48, 8], strides = [1, 1]} : vector<96x96xf32> to vector<48x8xf32>
    %40 = vector.shape_cast %39 : vector<48x8xf32> to vector<6x8x8xf32>
    %41 = arith.truncf %40 : vector<6x8x8xf32> to vector<6x8x8xbf16>
    %42 = vector.extract_strided_slice %10 {offsets = [48, 72], sizes = [48, 8], strides = [1, 1]} : vector<96x96xf32> to vector<48x8xf32>
    %43 = vector.shape_cast %42 : vector<48x8xf32> to vector<6x8x8xf32>
    %44 = arith.truncf %43 : vector<6x8x8xf32> to vector<6x8x8xbf16>
    "tpu.trace_start"() <{level = 10 : i32, message = "bqd,bkd->bqk"}> : () -> ()
    %cst_14 = arith.constant dense<0.000000e+00> : vector<6x8x8xf32>
    %45 = tpu.matmul %38, %41, %cst_14 {dimension_numbers = #tpu.dot_dimension_numbers<[2], [2], [1], [1], [0, 0, 0, 1, 1, 1], [0], [0]>} : vector<6x8x8xbf16>, vector<6x8x8xbf16>, vector<6x8x8xf32> -> vector<6x8x8xf32>
    "tpu.trace_stop"() : () -> ()
    %cst_15 = arith.constant 0.353553385 : f32
    %46 = vector.broadcast %cst_15 : f32 to vector<6x8x8xf32>
    %47 = arith.mulf %45, %46 : vector<6x8x8xf32>
    %cst_16 = arith.constant dense<0xFF800000> : vector<6x8xf32>
    %48 = vector.multi_reduction <maximumf>, %47, %cst_16 [2] : vector<6x8x8xf32> to vector<6x8xf32>
    %49 = vector.shape_cast %48 : vector<6x8xf32> to vector<6x8x1xf32>
    %50 = vector.broadcast %49 : vector<6x8x1xf32> to vector<6x8x8xf32>
    %51 = arith.subf %47, %50 : vector<6x8x8xf32>
    %52 = math.exp %51 : vector<6x8x8xf32>
    %cst_17 = arith.constant dense<0.000000e+00> : vector<6x8xf32>
    %53 = vector.multi_reduction <add>, %52, %cst_17 [2] : vector<6x8x8xf32> to vector<6x8xf32>
    %54 = vector.shape_cast %53 : vector<6x8xf32> to vector<6x8x1xf32>
    %55 = tpu.reciprocal %54 {approx = true} : vector<6x8x1xf32> -> vector<6x8x1xf32>
    %56 = vector.broadcast %55 : vector<6x8x1xf32> to vector<6x8x8xf32>
    %57 = arith.mulf %52, %56 : vector<6x8x8xf32>
    %58 = arith.truncf %57 : vector<6x8x8xf32> to vector<6x8x8xbf16>
    "tpu.trace_start"() <{level = 10 : i32, message = "bqk,bkd->bqd"}> : () -> ()
    %cst_18 = arith.constant dense<0.000000e+00> : vector<6x8x8xf32>
    %59 = tpu.matmul %58, %44, %cst_18 {dimension_numbers = #tpu.dot_dimension_numbers<[2], [1], [1], [2], [0, 0, 0, 1, 1, 2], [0], [0]>} : vector<6x8x8xbf16>, vector<6x8x8xbf16>, vector<6x8x8xf32> -> vector<6x8x8xf32>
    "tpu.trace_stop"() : () -> ()
    %60 = vector.shape_cast %59 : vector<6x8x8xf32> to vector<48x8xf32>
    %61 = vector.extract_strided_slice %10 {offsets = [0, 16], sizes = [48, 8], strides = [1, 1]} : vector<96x96xf32> to vector<48x8xf32>
    %62 = vector.shape_cast %61 : vector<48x8xf32> to vector<6x8x8xf32>
    %63 = arith.truncf %62 : vector<6x8x8xf32> to vector<6x8x8xbf16>
    %64 = vector.extract_strided_slice %10 {offsets = [48, 48], sizes = [48, 8], strides = [1, 1]} : vector<96x96xf32> to vector<48x8xf32>
    %65 = vector.shape_cast %64 : vector<48x8xf32> to vector<6x8x8xf32>
    %66 = arith.truncf %65 : vector<6x8x8xf32> to vector<6x8x8xbf16>
    %67 = vector.extract_strided_slice %10 {offsets = [48, 80], sizes = [48, 8], strides = [1, 1]} : vector<96x96xf32> to vector<48x8xf32>
    %68 = vector.shape_cast %67 : vector<48x8xf32> to vector<6x8x8xf32>
    %69 = arith.truncf %68 : vector<6x8x8xf32> to vector<6x8x8xbf16>
    "tpu.trace_start"() <{level = 10 : i32, message = "bqd,bkd->bqk"}> : () -> ()
    %cst_19 = arith.constant dense<0.000000e+00> : vector<6x8x8xf32>
    %70 = tpu.matmul %63, %66, %cst_19 {dimension_numbers = #tpu.dot_dimension_numbers<[2], [2], [1], [1], [0, 0, 0, 1, 1, 1], [0], [0]>} : vector<6x8x8xbf16>, vector<6x8x8xbf16>, vector<6x8x8xf32> -> vector<6x8x8xf32>
    "tpu.trace_stop"() : () -> ()
    %cst_20 = arith.constant 0.353553385 : f32
    %71 = vector.broadcast %cst_20 : f32 to vector<6x8x8xf32>
    %72 = arith.mulf %70, %71 : vector<6x8x8xf32>
    %cst_21 = arith.constant dense<0xFF800000> : vector<6x8xf32>
    %73 = vector.multi_reduction <maximumf>, %72, %cst_21 [2] : vector<6x8x8xf32> to vector<6x8xf32>
    %74 = vector.shape_cast %73 : vector<6x8xf32> to vector<6x8x1xf32>
    %75 = vector.broadcast %74 : vector<6x8x1xf32> to vector<6x8x8xf32>
    %76 = arith.subf %72, %75 : vector<6x8x8xf32>
    %77 = math.exp %76 : vector<6x8x8xf32>
    %cst_22 = arith.constant dense<0.000000e+00> : vector<6x8xf32>
    %78 = vector.multi_reduction <add>, %77, %cst_22 [2] : vector<6x8x8xf32> to vector<6x8xf32>
    %79 = vector.shape_cast %78 : vector<6x8xf32> to vector<6x8x1xf32>
    %80 = tpu.reciprocal %79 {approx = true} : vector<6x8x1xf32> -> vector<6x8x1xf32>
    %81 = vector.broadcast %80 : vector<6x8x1xf32> to vector<6x8x8xf32>
    %82 = arith.mulf %77, %81 : vector<6x8x8xf32>
    %83 = arith.truncf %82 : vector<6x8x8xf32> to vector<6x8x8xbf16>
    "tpu.trace_start"() <{level = 10 : i32, message = "bqk,bkd->bqd"}> : () -> ()
    %cst_23 = arith.constant dense<0.000000e+00> : vector<6x8x8xf32>
    %84 = tpu.matmul %83, %69, %cst_23 {dimension_numbers = #tpu.dot_dimension_numbers<[2], [1], [1], [2], [0, 0, 0, 1, 1, 2], [0], [0]>} : vector<6x8x8xbf16>, vector<6x8x8xbf16>, vector<6x8x8xf32> -> vector<6x8x8xf32>
    "tpu.trace_stop"() : () -> ()
    %85 = vector.shape_cast %84 : vector<6x8x8xf32> to vector<48x8xf32>
    %86 = vector.extract_strided_slice %10 {offsets = [0, 24], sizes = [48, 8], strides = [1, 1]} : vector<96x96xf32> to vector<48x8xf32>
    %87 = vector.shape_cast %86 : vector<48x8xf32> to vector<6x8x8xf32>
    %88 = arith.truncf %87 : vector<6x8x8xf32> to vector<6x8x8xbf16>
    %89 = vector.extract_strided_slice %10 {offsets = [48, 56], sizes = [48, 8], strides = [1, 1]} : vector<96x96xf32> to vector<48x8xf32>
    %90 = vector.shape_cast %89 : vector<48x8xf32> to vector<6x8x8xf32>
    %91 = arith.truncf %90 : vector<6x8x8xf32> to vector<6x8x8xbf16>
    %92 = vector.extract_strided_slice %10 {offsets = [48, 88], sizes = [48, 8], strides = [1, 1]} : vector<96x96xf32> to vector<48x8xf32>
    %93 = vector.shape_cast %92 : vector<48x8xf32> to vector<6x8x8xf32>
    %94 = arith.truncf %93 : vector<6x8x8xf32> to vector<6x8x8xbf16>
    "tpu.trace_start"() <{level = 10 : i32, message = "bqd,bkd->bqk"}> : () -> ()
    %cst_24 = arith.constant dense<0.000000e+00> : vector<6x8x8xf32>
    %95 = tpu.matmul %88, %91, %cst_24 {dimension_numbers = #tpu.dot_dimension_numbers<[2], [2], [1], [1], [0, 0, 0, 1, 1, 1], [0], [0]>} : vector<6x8x8xbf16>, vector<6x8x8xbf16>, vector<6x8x8xf32> -> vector<6x8x8xf32>
    "tpu.trace_stop"() : () -> ()
    %cst_25 = arith.constant 0.353553385 : f32
    %96 = vector.broadcast %cst_25 : f32 to vector<6x8x8xf32>
    %97 = arith.mulf %95, %96 : vector<6x8x8xf32>
    %cst_26 = arith.constant dense<0xFF800000> : vector<6x8xf32>
    %98 = vector.multi_reduction <maximumf>, %97, %cst_26 [2] : vector<6x8x8xf32> to vector<6x8xf32>
    %99 = vector.shape_cast %98 : vector<6x8xf32> to vector<6x8x1xf32>
    %100 = vector.broadcast %99 : vector<6x8x1xf32> to vector<6x8x8xf32>
    %101 = arith.subf %97, %100 : vector<6x8x8xf32>
    %102 = math.exp %101 : vector<6x8x8xf32>
    %cst_27 = arith.constant dense<0.000000e+00> : vector<6x8xf32>
    %103 = vector.multi_reduction <add>, %102, %cst_27 [2] : vector<6x8x8xf32> to vector<6x8xf32>
    %104 = vector.shape_cast %103 : vector<6x8xf32> to vector<6x8x1xf32>
    %105 = tpu.reciprocal %104 {approx = true} : vector<6x8x1xf32> -> vector<6x8x1xf32>
    %106 = vector.broadcast %105 : vector<6x8x1xf32> to vector<6x8x8xf32>
    %107 = arith.mulf %102, %106 : vector<6x8x8xf32>
    %108 = arith.truncf %107 : vector<6x8x8xf32> to vector<6x8x8xbf16>
    "tpu.trace_start"() <{level = 10 : i32, message = "bqk,bkd->bqd"}> : () -> ()
    %cst_28 = arith.constant dense<0.000000e+00> : vector<6x8x8xf32>
    %109 = tpu.matmul %108, %94, %cst_28 {dimension_numbers = #tpu.dot_dimension_numbers<[2], [1], [1], [2], [0, 0, 0, 1, 1, 2], [0], [0]>} : vector<6x8x8xbf16>, vector<6x8x8xbf16>, vector<6x8x8xf32> -> vector<6x8x8xf32>
    "tpu.trace_stop"() : () -> ()
    %110 = vector.shape_cast %109 : vector<6x8x8xf32> to vector<48x8xf32>
    %111 = tpu.concatenate %35, %60, %85, %110 in 1 : vector<48x8xf32>, vector<48x8xf32>, vector<48x8xf32>, vector<48x8xf32> -> vector<48x32xf32>
    %112 = arith.truncf %111 : vector<48x32xf32> to vector<48x32xbf16>
    %c0_29 = arith.constant 0 : index
    %c0_30 = arith.constant 0 : index
    %113 = vector.load %arg5[%c0_29, %c0_30] : memref<32x32xbf16, #tpu.memory_space<vmem>>, vector<32x32xbf16>
    %cst_31 = arith.constant dense<0.000000e+00> : vector<48x32xf32>
    %114 = tpu.matmul %112, %113, %cst_31 {dimension_numbers = #tpu.dot_dimension_numbers<[1], [0], [0], [1], [0, 0, 1, 1], [], []>} : vector<48x32xbf16>, vector<32x32xbf16>, vector<48x32xf32> -> vector<48x32xf32>
    %c0_32 = arith.constant 0 : index
    %c0_33 = arith.constant 0 : index
    %115 = vector.load %arg6[%c0_32, %c0_33] : memref<1x32xf32, #tpu.memory_space<vmem>>, vector<1x32xf32>
    %116 = vector.broadcast %115 : vector<1x32xf32> to vector<48x32xf32>
    %117 = arith.addf %114, %116 : vector<48x32xf32>
    %c0_34 = arith.constant 0 : index
    %c0_35 = arith.constant 0 : index
    %118 = vector.load %arg7[%c0_34, %c0_35] : memref<4x32xf32, #tpu.memory_space<vmem>>, vector<4x32xf32>
    %119 = vector.extract_strided_slice %118 {offsets = [0, 0], sizes = [1, 32], strides = [1, 1]} : vector<4x32xf32> to vector<1x32xf32>
    %120 = vector.broadcast %119 : vector<1x32xf32> to vector<48x32xf32>
    %121 = arith.mulf %117, %120 : vector<48x32xf32>
    %122 = vector.extract_strided_slice %118 {offsets = [1, 0], sizes = [1, 32], strides = [1, 1]} : vector<4x32xf32> to vector<1x32xf32>
    %123 = vector.broadcast %122 : vector<1x32xf32> to vector<48x32xf32>
    %124 = arith.addf %121, %123 : vector<48x32xf32>
    %125 = arith.addf %124, %1 : vector<48x32xf32>
    %126 = arith.truncf %125 : vector<48x32xf32> to vector<48x32xbf16>
    %c0_36 = arith.constant 0 : index
    %c0_37 = arith.constant 0 : index
    %127 = vector.load %arg8[%c0_36, %c0_37] : memref<32x64xbf16, #tpu.memory_space<vmem>>, vector<32x64xbf16>
    %cst_38 = arith.constant dense<0.000000e+00> : vector<48x64xf32>
    %128 = tpu.matmul %126, %127, %cst_38 {dimension_numbers = #tpu.dot_dimension_numbers<[1], [0], [0], [1], [0, 0, 1, 1], [], []>} : vector<48x32xbf16>, vector<32x64xbf16>, vector<48x64xf32> -> vector<48x64xf32>
    %c0_39 = arith.constant 0 : index
    %c0_40 = arith.constant 0 : index
    %129 = vector.load %arg9[%c0_39, %c0_40] : memref<1x64xf32, #tpu.memory_space<vmem>>, vector<1x64xf32>
    %130 = vector.broadcast %129 : vector<1x64xf32> to vector<48x64xf32>
    %131 = arith.addf %128, %130 : vector<48x64xf32>
    %cst_41 = arith.constant 0.000000e+00 : f32
    %132 = vector.broadcast %cst_41 : f32 to vector<48x64xf32>
    %133 = arith.maximumf %131, %132 : vector<48x64xf32>
    %134 = arith.truncf %133 : vector<48x64xf32> to vector<48x64xbf16>
    %c0_42 = arith.constant 0 : index
    %c0_43 = arith.constant 0 : index
    %135 = vector.load %arg10[%c0_42, %c0_43] : memref<64x32xbf16, #tpu.memory_space<vmem>>, vector<64x32xbf16>
    %cst_44 = arith.constant dense<0.000000e+00> : vector<48x32xf32>
    %136 = tpu.matmul %134, %135, %cst_44 {dimension_numbers = #tpu.dot_dimension_numbers<[1], [0], [0], [1], [0, 0, 1, 1], [], []>} : vector<48x64xbf16>, vector<64x32xbf16>, vector<48x32xf32> -> vector<48x32xf32>
    %c0_45 = arith.constant 0 : index
    %c0_46 = arith.constant 0 : index
    %137 = vector.load %arg11[%c0_45, %c0_46] : memref<1x32xf32, #tpu.memory_space<vmem>>, vector<1x32xf32>
    %138 = vector.broadcast %137 : vector<1x32xf32> to vector<48x32xf32>
    %139 = arith.addf %136, %138 : vector<48x32xf32>
    %140 = vector.extract_strided_slice %118 {offsets = [2, 0], sizes = [1, 32], strides = [1, 1]} : vector<4x32xf32> to vector<1x32xf32>
    %141 = vector.broadcast %140 : vector<1x32xf32> to vector<48x32xf32>
    %142 = arith.mulf %139, %141 : vector<48x32xf32>
    %143 = vector.extract_strided_slice %118 {offsets = [3, 0], sizes = [1, 32], strides = [1, 1]} : vector<4x32xf32> to vector<1x32xf32>
    %144 = vector.broadcast %143 : vector<1x32xf32> to vector<48x32xf32>
    %145 = arith.addf %142, %144 : vector<48x32xf32>
    %146 = arith.addf %145, %125 : vector<48x32xf32>
    %147 = vector.shape_cast %146 : vector<48x32xf32> to vector<6x8x32xf32>
    %148 = vector.extract_strided_slice %147 {offsets = [0, 0, 0], sizes = [6, 1, 32], strides = [1, 1, 1]} : vector<6x8x32xf32> to vector<6x1x32xf32>
    %149 = vector.shape_cast %148 : vector<6x1x32xf32> to vector<6x32xf32>
    %150 = vector.extract_strided_slice %147 {offsets = [0, 1, 0], sizes = [6, 1, 32], strides = [1, 1, 1]} : vector<6x8x32xf32> to vector<6x1x32xf32>
    %151 = vector.shape_cast %150 : vector<6x1x32xf32> to vector<6x32xf32>
    %152 = vector.extract_strided_slice %147 {offsets = [0, 2, 0], sizes = [6, 1, 32], strides = [1, 1, 1]} : vector<6x8x32xf32> to vector<6x1x32xf32>
    %153 = vector.shape_cast %152 : vector<6x1x32xf32> to vector<6x32xf32>
    %154 = vector.extract_strided_slice %147 {offsets = [0, 3, 0], sizes = [6, 1, 32], strides = [1, 1, 1]} : vector<6x8x32xf32> to vector<6x1x32xf32>
    %155 = vector.shape_cast %154 : vector<6x1x32xf32> to vector<6x32xf32>
    %156 = vector.extract_strided_slice %147 {offsets = [0, 4, 0], sizes = [6, 1, 32], strides = [1, 1, 1]} : vector<6x8x32xf32> to vector<6x1x32xf32>
    %157 = vector.shape_cast %156 : vector<6x1x32xf32> to vector<6x32xf32>
    %158 = vector.extract_strided_slice %147 {offsets = [0, 5, 0], sizes = [6, 1, 32], strides = [1, 1, 1]} : vector<6x8x32xf32> to vector<6x1x32xf32>
    %159 = vector.shape_cast %158 : vector<6x1x32xf32> to vector<6x32xf32>
    %160 = vector.extract_strided_slice %147 {offsets = [0, 6, 0], sizes = [6, 1, 32], strides = [1, 1, 1]} : vector<6x8x32xf32> to vector<6x1x32xf32>
    %161 = vector.shape_cast %160 : vector<6x1x32xf32> to vector<6x32xf32>
    %162 = vector.extract_strided_slice %147 {offsets = [0, 7, 0], sizes = [6, 1, 32], strides = [1, 1, 1]} : vector<6x8x32xf32> to vector<6x1x32xf32>
    %163 = vector.shape_cast %162 : vector<6x1x32xf32> to vector<6x32xf32>
    %164 = tpu.concatenate %149, %151, %153, %155, %157, %159, %161, %163 in 1 : vector<6x32xf32>, vector<6x32xf32>, vector<6x32xf32>, vector<6x32xf32>, vector<6x32xf32>, vector<6x32xf32>, vector<6x32xf32>, vector<6x32xf32> -> vector<6x256xf32>
    %c0_47 = arith.constant 0 : index
    %c0_48 = arith.constant 0 : index
    %165 = vector.load %arg12[%c0_47, %c0_48] : memref<6x256xf32, #tpu.memory_space<vmem>>, vector<6x256xf32>
    tpu.vector_store %arg12[%c0_47, %c0_48], %164 {strides = array<i32>} : memref<6x256xf32, #tpu.memory_space<vmem>>, vector<6x256xf32>,
    return
  }
  func.func @transform_0(%arg0: i32) -> (i32, i32, i32) {
    %c0_i32 = arith.constant 0 : i32
    %c0_i32_0 = arith.constant 0 : i32
    %c0_i32_1 = arith.constant 0 : i32
    return %arg0, %c0_i32, %c0_i32_0 : i32, i32, i32
  }
  func.func @transform_1(%arg0: i32) -> (i32, i32, i32) {
    %c0_i32 = arith.constant 0 : i32
    %c0_i32_0 = arith.constant 0 : i32
    %c0_i32_1 = arith.constant 0 : i32
    return %arg0, %c0_i32, %c0_i32_0 : i32, i32, i32
  }
  func.func @transform_2(%arg0: i32) -> (i32, i32) {
    %c0_i32 = arith.constant 0 : i32
    %c0_i32_0 = arith.constant 0 : i32
    %c0_i32_1 = arith.constant 0 : i32
    return %c0_i32, %c0_i32_0 : i32, i32
  }
  func.func @transform_3(%arg0: i32) -> (i32, i32) {
    %c0_i32 = arith.constant 0 : i32
    %c0_i32_0 = arith.constant 0 : i32
    %c0_i32_1 = arith.constant 0 : i32
    return %c0_i32, %c0_i32_0 : i32, i32
  }
  func.func @transform_4(%arg0: i32) -> (i32, i32) {
    %c0_i32 = arith.constant 0 : i32
    %c0_i32_0 = arith.constant 0 : i32
    %c0_i32_1 = arith.constant 0 : i32
    return %c0_i32, %c0_i32_0 : i32, i32
  }
  func.func @transform_5(%arg0: i32) -> (i32, i32) {
    %c0_i32 = arith.constant 0 : i32
    %c0_i32_0 = arith.constant 0 : i32
    %c0_i32_1 = arith.constant 0 : i32
    return %c0_i32, %c0_i32_0 : i32, i32
  }
  func.func @transform_6(%arg0: i32) -> (i32, i32) {
    %c0_i32 = arith.constant 0 : i32
    %c0_i32_0 = arith.constant 0 : i32
    %c0_i32_1 = arith.constant 0 : i32
    return %c0_i32, %c0_i32_0 : i32, i32
  }
  func.func @transform_7(%arg0: i32) -> (i32, i32) {
    %c0_i32 = arith.constant 0 : i32
    %c0_i32_0 = arith.constant 0 : i32
    %c0_i32_1 = arith.constant 0 : i32
    return %c0_i32, %c0_i32_0 : i32, i32
  }
  func.func @transform_8(%arg0: i32) -> (i32, i32) {
    %c0_i32 = arith.constant 0 : i32
    %c0_i32_0 = arith.constant 0 : i32
    %c0_i32_1 = arith.constant 0 : i32
    return %c0_i32, %c0_i32_0 : i32, i32
  }
  func.func @transform_9(%arg0: i32) -> (i32, i32) {
    %c0_i32 = arith.constant 0 : i32
    %c0_i32_0 = arith.constant 0 : i32
    %c0_i32_1 = arith.constant 0 : i32
    return %c0_i32, %c0_i32_0 : i32, i32
  }
  func.func @transform_10(%arg0: i32) -> (i32, i32) {
    %c0_i32 = arith.constant 0 : i32
    %c0_i32_0 = arith.constant 0 : i32
    %c0_i32_1 = arith.constant 0 : i32
    return %c0_i32, %c0_i32_0 : i32, i32
  }
  func.func @transform_11(%arg0: i32) -> (i32, i32) {
    %c0_i32 = arith.constant 0 : i32
    %c0_i32_0 = arith.constant 0 : i32
    return %arg0, %c0_i32 : i32, i32
  }
}

</mosaic_0001>

<llo_original>
// kernel: fwd.1
$region0: #{fwd.1}
  #allocation0 [shape = 'u32[]', space=smem, size = 0x4, offset = 0x4, fixed_abs, tag = 'smem constant byte address 0x4 - core index']
  #allocation1 [shape = 'u32[144,128]{1,0:T(1,128)}', space=vmem, size = 0x12000, scoped, tag = 'internal scratch']
  %s0 = inlined_call_operand.vmem [shape: f32[6,8,32], index: 0, kind: input, shape index: {}]
  %s1 = inlined_call_operand.vmem [shape: bf16[6,8,32], index: 1, kind: input, shape index: {}]
  %s2 = inlined_call_operand.hbm [shape: bf16[32,96], index: 2, kind: input, shape index: {}]
  %s3 = inlined_call_operand.hbm [shape: f32[1,96], index: 3, kind: input, shape index: {}]
  %s4 = inlined_call_operand.hbm [shape: bf16[32,32], index: 4, kind: input, shape index: {}]
  %s5 = inlined_call_operand.hbm [shape: f32[1,32], index: 5, kind: input, shape index: {}]
  %s6 = inlined_call_operand.vmem [shape: f32[4,32], index: 6, kind: input, shape index: {}]
  %s7 = inlined_call_operand.hbm [shape: bf16[32,64], index: 7, kind: input, shape index: {}]
  %s8 = inlined_call_operand.vmem [shape: f32[1,64], index: 8, kind: input, shape index: {}]
  %s9 = inlined_call_operand.vmem [shape: bf16[64,32], index: 9, kind: input, shape index: {}]
  %s10 = inlined_call_operand.vmem [shape: f32[1,32], index: 10, kind: input, shape index: {}]
  %s11 = inlined_call_operand.vmem [shape: f32[6,256], index: 11, kind: output, shape index: {}]
  %s12 = sld [smem:[#allocation0]]
  $region74: #{fwd.1} parent=0
    _
  %s14 = ssub.s32 1, %s12
  %s15 = scalar_select 0, %s14, %s12
  $region1: #{fwd.1} parent=0
    #allocation2 [shape = 'u8[8192]{0}', space=vmem, size = 0x2000, scoped, tag = 'input window, operand 2, single buffered']
    #allocation3 [shape = 's32[1]{0}', space=sflag, size = 0x4, scoped, tag = 'scoped memory for fwd.1']
    #allocation4 [shape = 'u8[512]{0}', space=vmem, size = 0x400, scoped, tag = 'input window, operand 3, single buffered']
    #allocation5 [shape = 's32[1]{0}', space=sflag, size = 0x4, scoped, tag = 'scoped memory for fwd.1']
    #allocation6 [shape = 'u8[8192]{0}', space=vmem, size = 0x2000, scoped, tag = 'input window, operand 4, single buffered']
    #allocation7 [shape = 'u8[512]{0}', space=vmem, size = 0x400, scoped, tag = 'input window, operand 5, single buffered']
    #allocation8 [shape = 's32[1]{0}', space=sflag, size = 0x4, scoped, tag = 'scoped memory for fwd.1']
    #allocation9 [shape = 'u8[8192]{0}', space=vmem, size = 0x2000, scoped, tag = 'input window, operand 7, single buffered']
    %16 = vsyncpa [#allocation3], 0
    %17 = vsyncpa [#allocation5], 0
    %18 = vsyncpa [#allocation8], 0
    // Predicated region
    $region2: #{fwd.1} parent=1 // pred_check
      _
    $region3: #{fwd.1} parent=1 // pred_check_branch
      %20 = sbr.rel (0) target = $region5
    $region4: #{fwd.1} parent=1 // pred_region
      _
    $region5: #{fwd.1} parent=1 // pred_fallthru
      _
    // Predicated region
    $region6: #{fwd.1} parent=1 // pred_check
      _
    $region7: #{fwd.1} parent=1 // pred_check_branch
      %22 = sbr.rel (0) target = $region9
    $region8: #{fwd.1} parent=1 // pred_region
      _
    $region9: #{fwd.1} parent=1 // pred_fallthru
      _
    // Predicated region
    $region10: #{fwd.1} parent=1 // pred_check
      _
    $region11: #{fwd.1} parent=1 // pred_check_branch
      %24 = sbr.rel (0) target = $region13
    $region12: #{fwd.1} parent=1 // pred_region
      %s26 = ssub.s32 256, 256
      %27 = vsyncadd [#allocation3], %s26
      %s28 = sshll.u32 [#allocation2], 4
      %s29 = int_to_ptr.vmem [resolvable:$true] %s28
      %34 = dma.hbm_to_vmem [thread:$0]  %s2, 256, %s29, [#allocation3], 64, 64, 4
    $region13: #{fwd.1} parent=1 // pred_fallthru
      _
    // Predicated region
    $region14: #{fwd.1} parent=1 // pred_check
      _
    $region15: #{fwd.1} parent=1 // pred_check_branch
      %36 = sbr.rel (0) target = $region17
    $region16: #{fwd.1} parent=1 // pred_region
      %s38 = ssub.s32 16, 16
      %39 = vsyncadd [#allocation5], %s38
      %s41 = sshll.u32 [#allocation4], 4
      %s42 = int_to_ptr.vmem [resolvable:$true] %s41
      %44 = dma.hbm_to_vmem [thread:$0]  %s3, 16, %s42, [#allocation5]
    $region17: #{fwd.1} parent=1 // pred_fallthru
      _
    // Predicated region
    $region18: #{fwd.1} parent=1 // pred_check
      _
    $region19: #{fwd.1} parent=1 // pred_check_branch
      %46 = sbr.rel (0) target = $region21
    $region20: #{fwd.1} parent=1 // pred_region
      %s48 = ssub.s32 256, 256
      %49 = vsyncadd [#allocation5], %s48
      %s50 = sshll.u32 [#allocation6], 4
      %s51 = int_to_ptr.vmem [resolvable:$true] %s50
      %56 = dma.hbm_to_vmem [thread:$0]  %s4, 256, %s51, [#allocation5], 64, 64, 4
    $region21: #{fwd.1} parent=1 // pred_fallthru
      _
    // Predicated region
    $region22: #{fwd.1} parent=1 // pred_check
      _
    $region23: #{fwd.1} parent=1 // pred_check_branch
      %58 = sbr.rel (0) target = $region25
    $region24: #{fwd.1} parent=1 // pred_region
      %s60 = ssub.s32 16, 16
      %61 = vsyncadd [#allocation8], %s60
      %s63 = sshll.u32 [#allocation7], 4
      %s64 = int_to_ptr.vmem [resolvable:$true] %s63
      %66 = dma.hbm_to_vmem [thread:$0]  %s5, 16, %s64, [#allocation8]
    $region25: #{fwd.1} parent=1 // pred_fallthru
      _
    // Predicated region
    $region26: #{fwd.1} parent=1 // pred_check
      _
    $region27: #{fwd.1} parent=1 // pred_check_branch
      %68 = sbr.rel (0) target = $region29
    $region28: #{fwd.1} parent=1 // pred_region
      _
    $region29: #{fwd.1} parent=1 // pred_fallthru
      _
    // Predicated region
    $region30: #{fwd.1} parent=1 // pred_check
      _
    $region31: #{fwd.1} parent=1 // pred_check_branch
      %70 = sbr.rel (0) target = $region33
    $region32: #{fwd.1} parent=1 // pred_region
      %s72 = ssub.s32 256, 256
      %73 = vsyncadd [#allocation8], %s72
      %s74 = sshll.u32 [#allocation9], 4
      %s75 = int_to_ptr.vmem [resolvable:$true] %s74
      %80 = dma.hbm_to_vmem [thread:$0]  %s7, 256, %s75, [#allocation8], 64, 64, 4
    $region33: #{fwd.1} parent=1 // pred_fallthru
      _
    // Predicated region
    $region34: #{fwd.1} parent=1 // pred_check
      _
    $region35: #{fwd.1} parent=1 // pred_check_branch
      %82 = sbr.rel (0) target = $region37
    $region36: #{fwd.1} parent=1 // pred_region
      _
    $region37: #{fwd.1} parent=1 // pred_fallthru
      _
    // Predicated region
    $region38: #{fwd.1} parent=1 // pred_check
      _
    $region39: #{fwd.1} parent=1 // pred_check_branch
      %84 = sbr.rel (0) target = $region41
    $region40: #{fwd.1} parent=1 // pred_region
      _
    $region41: #{fwd.1} parent=1 // pred_fallthru
      _
    // Predicated region
    $region42: #{fwd.1} parent=1 // pred_check
      _
    $region43: #{fwd.1} parent=1 // pred_check_branch
      %86 = sbr.rel (0) target = $region45
    $region44: #{fwd.1} parent=1 // pred_region
      _
    $region45: #{fwd.1} parent=1 // pred_fallthru
      _
    // Predicated region
    $region46: #{fwd.1} parent=1 // pred_check
      _
    $region47: #{fwd.1} parent=1 // pred_check_branch
      %88 = sbr.rel (0) target = $region49
    $region48: #{fwd.1} parent=1 // pred_region
      %89 = dma.done [#allocation3], 256
    $region49: #{fwd.1} parent=1 // pred_fallthru
      _
    // Predicated region
    $region50: #{fwd.1} parent=1 // pred_check
      _
    $region51: #{fwd.1} parent=1 // pred_check_branch
      %91 = sbr.rel (0) target = $region53
    $region52: #{fwd.1} parent=1 // pred_region
      %92 = dma.done [#allocation5], 16
    $region53: #{fwd.1} parent=1 // pred_fallthru
      _
    // Predicated region
    $region54: #{fwd.1} parent=1 // pred_check
      _
    $region55: #{fwd.1} parent=1 // pred_check_branch
      %94 = sbr.rel (0) target = $region57
    $region56: #{fwd.1} parent=1 // pred_region
      %95 = dma.done [#allocation5], 256
    $region57: #{fwd.1} parent=1 // pred_fallthru
      _
    // Predicated region
    $region58: #{fwd.1} parent=1 // pred_check
      _
    $region59: #{fwd.1} parent=1 // pred_check_branch
      %97 = sbr.rel (0) target = $region61
    $region60: #{fwd.1} parent=1 // pred_region
      %98 = dma.done [#allocation8], 16
    $region61: #{fwd.1} parent=1 // pred_fallthru
      _
    // Predicated region
    $region62: #{fwd.1} parent=1 // pred_check
      _
    $region63: #{fwd.1} parent=1 // pred_check_branch
      %100 = sbr.rel (0) target = $region65
    $region64: #{fwd.1} parent=1 // pred_region
      %101 = dma.done [#allocation8], 256
    $region65: #{fwd.1} parent=1 // pred_fallthru
      _
    %v103 = vld [vmem:[%s0] sm:$0xff]
    %v104 = vld [vmem:[%s0 + $0x8] sm:$0xff]
    %v105 = vld [vmem:[%s0 + $0x10] sm:$0xff]
    %v106 = vld [vmem:[%s0 + $0x18] sm:$0xff]
    %v107 = vld [vmem:[%s0 + $0x20] sm:$0xff]
    %v108 = vld [vmem:[%s0 + $0x28] sm:$0xff]
    %v109 = vld [vmem:[%s1] sm:$0xf]
    %v110 = vld [vmem:[%s1 + $0x4] sm:$0xf]
    %v111 = vld [vmem:[%s1 + $0x8] sm:$0xf]
    %v112 = vld [vmem:[%s1 + $0xc] sm:$0xf]
    %v113 = vld [vmem:[%s1 + $0x10] sm:$0xf]
    %v114 = vld [vmem:[%s1 + $0x14] sm:$0xf]
    %v115 = vpack.c.bf16 %v104, %v103
    %v116 = vpack.c.bf16 %v106, %v105
    %v117 = vpack.c.bf16 %v108, %v107
    %v124 = vunpack.c.l.b16 %v109
    %v125 = vunpack.c.l.b16 %v110
    %v126 = vunpack.c.l.b16 %v111
    %v127 = vunpack.c.l.b16 %v112
    %v128 = vunpack.c.l.b16 %v113
    %v129 = vunpack.c.l.b16 %v114
    %v130 = vpack.c.b16 %v125, %v124
    %v131 = vpack.c.b16 %v127, %v126
    %v132 = vpack.c.b16 %v129, %v128
    %v133 = vld [vmem:[#allocation2] sm:$0xf]
    %v134 = vld [vmem:[#allocation2 + $0x4] sm:$0xf]
    %v135 = vld [vmem:[#allocation2 + $0x8] sm:$0xf]
    %v136 = vld [vmem:[#allocation2 + $0xc] sm:$0xf]
    %v137 = vld [vmem:[#allocation4] sm:$0x1]
    %v139 = vlaneseq
    %v140 = vshrl.u32 %v139, 7
    %v141 = vsub.s32 0, %v140
    %v142 = vrot.slane %v137, %v141
    %v148 = vunpack.c.l.b16 %v133
    %v149 = vunpack.c.l.b16 %v134
    %v150 = vunpack.c.l.b16 %v135
    %v151 = vunpack.c.l.b16 %v136
    %v152 = vpack.c.b16 %v149, %v148
    %v153 = vpack.c.b16 %v151, %v150
    %vm156 = vcmask 261120
    %v158 = vsel %vm156, %v115, 0
    %v161 = vsel %vm156, %v116, 0
    %v164 = vsel %vm156, %v117, 0
    %v167 = vsel %vm156, %v130, 0
    %v170 = vsel %vm156, %v131, 0
    %v173 = vsel %vm156, %v132, 0
    %175 = vmatprep.subr.bf16.mxu0 0
    %176 = vmatpush1.bf16.msra.mxu0 0
    %177 = vmatprep.subr.bf16.mxu0 0
    %178 = vmatpush1.bf16.msra.mxu0 0
    %179 = vmatprep.subr.bf16.mxu0 0
    %180 = vmatpush1.bf16.msra.mxu0 0
    %181 = vmatprep.subr.bf16.mxu0 0
    %182 = vmatpush1.bf16.msra.mxu0 0
    %183 = vmatprep.subr.bf16.mxu0 0
    %184 = vmatpush1.bf16.msra.mxu0 0
    %185 = vmatprep.subr.bf16.mxu0 0
    %186 = vmatpush1.bf16.msra.mxu0 0
    %187 = vmatprep.subr.bf16.mxu0 0
    %188 = vmatpush1.bf16.msra.mxu0 %v153
    %189 = vmatprep.subr.bf16.mxu0 0
    %190 = vmatpush1.bf16.msra.mxu0 %v152
    %191 = vmatprep.subr.bf16.mxu0 0
    %192 = vmatpush2.bf16.msra.mxu0 0
    %193 = vmatprep.subr.bf16.mxu0 0
    %194 = vmatpush2.bf16.msra.mxu0 0
    %195 = vmatprep.subr.bf16.mxu0 0
    %196 = vmatpush2.bf16.msra.mxu0 0
    %197 = vmatprep.subr.bf16.mxu0 0
    %198 = vmatpush2.bf16.msra.mxu0 0
    %199 = vmatprep.subr.bf16.mxu0 0
    %200 = vmatpush2.bf16.msra.mxu0 0
    %201 = vmatprep.subr.bf16.mxu0 0
    %202 = vmatpush2.bf16.msra.mxu0 0
    %203 = vmatprep.subr.bf16.mxu0 0
    %204 = vmatpush2.bf16.msra.mxu0 0
    %205 = vmatprep.subr.bf16.mxu0 0
    %206 = vmatpush2.bf16.msra.mxu0 0
    %207 = vmatprep.mubr.bf16.mxu0 0
    %208 = vmatmul.mubr.bf16.gmra.mxu0 %v158
    %v209 = vpop.f32.mrf.mxu0
    %v210 = vadd.f32 %v142, %v209
    %v211 = vpop.f32.mrf.mxu0
    %v212 = vpop.f32.mrf.mxu0
    %v213 = vadd.f32 %v142, %v212
    %v214 = vpop.f32.mrf.mxu0
    %215 = vmatprep.mubr.bf16.mxu0 0
    %216 = vmatmul.mubr.bf16.gmra.mxu0 %v161
    %v217 = vpop.f32.mrf.mxu0
    %v218 = vadd.f32 %v142, %v217
    %v219 = vpop.f32.mrf.mxu0
    %v220 = vpop.f32.mrf.mxu0
    %v221 = vadd.f32 %v142, %v220
    %v222 = vpop.f32.mrf.mxu0
    %223 = vmatprep.mubr.bf16.mxu0 0
    %224 = vmatmul.mubr.bf16.gmra.mxu0 %v164
    %v225 = vpop.f32.mrf.mxu0
    %v226 = vadd.f32 %v142, %v225
    %v227 = vpop.f32.mrf.mxu0
    %v228 = vpop.f32.mrf.mxu0
    %v229 = vadd.f32 %v142, %v228
    %v230 = vpop.f32.mrf.mxu0
    %231 = vmatprep.mubr.bf16.mxu0 0
    %232 = vmatmul.mubr.bf16.gmra.mxu0 %v167
    %v233 = vpop.f32.mrf.mxu0
    %v234 = vadd.f32 %v142, %v233
    %v235 = vpop.f32.mrf.mxu0
    %v236 = vpop.f32.mrf.mxu0
    %v237 = vadd.f32 %v142, %v236
    %v238 = vpop.f32.mrf.mxu0
    %239 = vmatprep.mubr.bf16.mxu0 0
    %240 = vmatmul.mubr.bf16.gmra.mxu0 %v170
    %v241 = vpop.f32.mrf.mxu0
    %v242 = vadd.f32 %v142, %v241
    %v243 = vpop.f32.mrf.mxu0
    %v244 = vpop.f32.mrf.mxu0
    %v245 = vadd.f32 %v142, %v244
    %v246 = vpop.f32.mrf.mxu0
    %247 = vmatprep.mubr.bf16.mxu0 0
    %248 = vmatmul.mubr.bf16.gmra.mxu0 %v173
    %v249 = vpop.f32.mrf.mxu0
    %v250 = vadd.f32 %v142, %v249
    %v251 = vpop.f32.mrf.mxu0
    %v252 = vpop.f32.mrf.mxu0
    %v253 = vadd.f32 %v142, %v252
    %v254 = vpop.f32.mrf.mxu0
    %255 = vdwg.mxu0
    %v256 = vpack.c.bf16 %v210, %v210
    %v257 = vpack.c.bf16 %v213, %v213
    %v258 = vpack.c.bf16 %v218, %v218
    %v259 = vpack.c.bf16 %v221, %v221
    %v260 = vpack.c.bf16 %v226, %v226
    %v261 = vpack.c.bf16 %v229, %v229
    %v262 = vpack.c.bf16 %v234, %v234
    %v263 = vpack.c.bf16 %v237, %v237
    %v264 = vpack.c.bf16 %v242, %v242
    %v265 = vpack.c.bf16 %v245, %v245
    %v266 = vpack.c.bf16 %v250, %v250
    %v267 = vpack.c.bf16 %v253, %v253
    %269 = vrot.lane.b32.xlu0 %v262, 96
    %v270 = vpop.permute.xlu0 %269
    %vm271 = vcmask 64512
    %v273 = vsel %vm271, %v256, 0
    %v276 = vsel %vm271, %v270, 0
    %278 = vmatprep.subr.bf16.mxu0 0
    %279 = vmatpush1.bf16.xpose.msra.mxu0 0
    %280 = vmatprep.subr.bf16.mxu0 0
    %281 = vmatpush1.bf16.xpose.msra.mxu0 0
    %282 = vmatprep.subr.bf16.mxu0 0
    %283 = vmatpush1.bf16.xpose.msra.mxu0 0
    %284 = vmatprep.subr.bf16.mxu0 0
    %285 = vmatpush1.bf16.xpose.msra.mxu0 0
    %286 = vmatprep.subr.bf16.mxu0 0
    %287 = vmatpush1.bf16.xpose.msra.mxu0 0
    %288 = vmatprep.subr.bf16.mxu0 0
    %289 = vmatpush1.bf16.xpose.msra.mxu0 0
    %290 = vmatprep.subr.bf16.mxu0 0
    %291 = vmatpush1.bf16.xpose.msra.mxu0 0
    %292 = vmatprep.subr.bf16.mxu0 0
    %293 = vmatpush1.bf16.xpose.msra.mxu0 %v276
    %294 = vmatprep.subr.bf16.mxu0 0
    %295 = vmatpush2.bf16.xpose.msra.mxu0 0
    %296 = vmatprep.subr.bf16.mxu0 0
    %297 = vmatpush2.bf16.xpose.msra.mxu0 0
    %298 = vmatprep.subr.bf16.mxu0 0
    %299 = vmatpush2.bf16.xpose.msra.mxu0 0
    %300 = vmatprep.subr.bf16.mxu0 0
    %301 = vmatpush2.bf16.xpose.msra.mxu0 0
    %302 = vmatprep.subr.bf16.mxu0 0
    %303 = vmatpush2.bf16.xpose.msra.mxu0 0
    %304 = vmatprep.subr.bf16.mxu0 0
    %305 = vmatpush2.bf16.xpose.msra.mxu0 0
    %306 = vmatprep.subr.bf16.mxu0 0
    %307 = vmatpush2.bf16.xpose.msra.mxu0 0
    %308 = vmatprep.subr.bf16.mxu0 0
    %309 = vmatpush2.bf16.xpose.msra.mxu0 0
    %310 = vmatprep.mubr.bf16.mxu0 0
    %311 = vmatmul.mubr.bf16.gmra.mxu0 %v273
    %v312 = vpop.f32.mrf.mxu0
    %v313 = vadd.f32 0.0, %v312
    %v314 = vpop.f32.mrf.mxu0
    %v315 = vpop.f32.mrf.mxu0
    %v316 = vpop.f32.mrf.mxu0
    %317 = vdwg.mxu0
    %319 = vrot.lane.b32.xlu0 %v263, 96
    %v320 = vpop.permute.xlu0 %319
    %v322 = vsel %vm271, %v257, 0
    %v325 = vsel %vm271, %v320, 0
    %327 = vmatprep.subr.bf16.mxu0 0
    %328 = vmatpush1.bf16.xpose.msra.mxu0 0
    %329 = vmatprep.subr.bf16.mxu0 0
    %330 = vmatpush1.bf16.xpose.msra.mxu0 0
    %331 = vmatprep.subr.bf16.mxu0 0
    %332 = vmatpush1.bf16.xpose.msra.mxu0 0
    %333 = vmatprep.subr.bf16.mxu0 0
    %334 = vmatpush1.bf16.xpose.msra.mxu0 0
    %335 = vmatprep.subr.bf16.mxu0 0
    %336 = vmatpush1.bf16.xpose.msra.mxu0 0
    %337 = vmatprep.subr.bf16.mxu0 0
    %338 = vmatpush1.bf16.xpose.msra.mxu0 0
    %339 = vmatprep.subr.bf16.mxu0 0
    %340 = vmatpush1.bf16.xpose.msra.mxu0 0
    %341 = vmatprep.subr.bf16.mxu0 0
    %342 = vmatpush1.bf16.xpose.msra.mxu0 %v325
    %343 = vmatprep.subr.bf16.mxu0 0
    %344 = vmatpush2.bf16.xpose.msra.mxu0 0
    %345 = vmatprep.subr.bf16.mxu0 0
    %346 = vmatpush2.bf16.xpose.msra.mxu0 0
    %347 = vmatprep.subr.bf16.mxu0 0
    %348 = vmatpush2.bf16.xpose.msra.mxu0 0
    %349 = vmatprep.subr.bf16.mxu0 0
    %350 = vmatpush2.bf16.xpose.msra.mxu0 0
    %351 = vmatprep.subr.bf16.mxu0 0
    %352 = vmatpush2.bf16.xpose.msra.mxu0 0
    %353 = vmatprep.subr.bf16.mxu0 0
    %354 = vmatpush2.bf16.xpose.msra.mxu0 0
    %355 = vmatprep.subr.bf16.mxu0 0
    %356 = vmatpush2.bf16.xpose.msra.mxu0 0
    %357 = vmatprep.subr.bf16.mxu0 0
    %358 = vmatpush2.bf16.xpose.msra.mxu0 0
    %359 = vmatprep.mubr.bf16.mxu0 0
    %360 = vmatmul.mubr.bf16.gmra.mxu0 %v322
    %v361 = vpop.f32.mrf.mxu0
    %v362 = vadd.f32 0.0, %v361
    %v363 = vpop.f32.mrf.mxu0
    %v364 = vpop.f32.mrf.mxu0
    %v365 = vpop.f32.mrf.mxu0
    %366 = vdwg.mxu0
    %368 = vrot.lane.b32.xlu0 %v264, 96
    %v369 = vpop.permute.xlu0 %368
    %v371 = vsel %vm271, %v258, 0
    %v374 = vsel %vm271, %v369, 0
    %376 = vmatprep.subr.bf16.mxu0 0
    %377 = vmatpush1.bf16.xpose.msra.mxu0 0
    %378 = vmatprep.subr.bf16.mxu0 0
    %379 = vmatpush1.bf16.xpose.msra.mxu0 0
    %380 = vmatprep.subr.bf16.mxu0 0
    %381 = vmatpush1.bf16.xpose.msra.mxu0 0
    %382 = vmatprep.subr.bf16.mxu0 0
    %383 = vmatpush1.bf16.xpose.msra.mxu0 0
    %384 = vmatprep.subr.bf16.mxu0 0
    %385 = vmatpush1.bf16.xpose.msra.mxu0 0
    %386 = vmatprep.subr.bf16.mxu0 0
    %387 = vmatpush1.bf16.xpose.msra.mxu0 0
    %388 = vmatprep.subr.bf16.mxu0 0
    %389 = vmatpush1.bf16.xpose.msra.mxu0 0
    %390 = vmatprep.subr.bf16.mxu0 0
    %391 = vmatpush1.bf16.xpose.msra.mxu0 %v374
    %392 = vmatprep.subr.bf16.mxu0 0
    %393 = vmatpush2.bf16.xpose.msra.mxu0 0
    %394 = vmatprep.subr.bf16.mxu0 0
    %395 = vmatpush2.bf16.xpose.msra.mxu0 0
    %396 = vmatprep.subr.bf16.mxu0 0
    %397 = vmatpush2.bf16.xpose.msra.mxu0 0
    %398 = vmatprep.subr.bf16.mxu0 0
    %399 = vmatpush2.bf16.xpose.msra.mxu0 0
    %400 = vmatprep.subr.bf16.mxu0 0
    %401 = vmatpush2.bf16.xpose.msra.mxu0 0
    %402 = vmatprep.subr.bf16.mxu0 0
    %403 = vmatpush2.bf16.xpose.msra.mxu0 0
    %404 = vmatprep.subr.bf16.mxu0 0
    %405 = vmatpush2.bf16.xpose.msra.mxu0 0
    %406 = vmatprep.subr.bf16.mxu0 0
    %407 = vmatpush2.bf16.xpose.msra.mxu0 0
    %408 = vmatprep.mubr.bf16.mxu0 0
    %409 = vmatmul.mubr.bf16.gmra.mxu0 %v371
    %v410 = vpop.f32.mrf.mxu0
    %v411 = vadd.f32 0.0, %v410
    %v412 = vpop.f32.mrf.mxu0
    %v413 = vpop.f32.mrf.mxu0
    %v414 = vpop.f32.mrf.mxu0
    %415 = vdwg.mxu0
    %417 = vrot.lane.b32.xlu0 %v265, 96
    %v418 = vpop.permute.xlu0 %417
    %v420 = vsel %vm271, %v259, 0
    %v423 = vsel %vm271, %v418, 0
    %425 = vmatprep.subr.bf16.mxu0 0
    %426 = vmatpush1.bf16.xpose.msra.mxu0 0
    %427 = vmatprep.subr.bf16.mxu0 0
    %428 = vmatpush1.bf16.xpose.msra.mxu0 0
    %429 = vmatprep.subr.bf16.mxu0 0
    %430 = vmatpush1.bf16.xpose.msra.mxu0 0
    %431 = vmatprep.subr.bf16.mxu0 0
    %432 = vmatpush1.bf16.xpose.msra.mxu0 0
    %433 = vmatprep.subr.bf16.mxu0 0
    %434 = vmatpush1.bf16.xpose.msra.mxu0 0
    %435 = vmatprep.subr.bf16.mxu0 0
    %436 = vmatpush1.bf16.xpose.msra.mxu0 0
    %437 = vmatprep.subr.bf16.mxu0 0
    %438 = vmatpush1.bf16.xpose.msra.mxu0 0
    %439 = vmatprep.subr.bf16.mxu0 0
    %440 = vmatpush1.bf16.xpose.msra.mxu0 %v423
    %441 = vmatprep.subr.bf16.mxu0 0
    %442 = vmatpush2.bf16.xpose.msra.mxu0 0
    %443 = vmatprep.subr.bf16.mxu0 0
    %444 = vmatpush2.bf16.xpose.msra.mxu0 0
    %445 = vmatprep.subr.bf16.mxu0 0
    %446 = vmatpush2.bf16.xpose.msra.mxu0 0
    %447 = vmatprep.subr.bf16.mxu0 0
    %448 = vmatpush2.bf16.xpose.msra.mxu0 0
    %449 = vmatprep.subr.bf16.mxu0 0
    %450 = vmatpush2.bf16.xpose.msra.mxu0 0
    %451 = vmatprep.subr.bf16.mxu0 0
    %452 = vmatpush2.bf16.xpose.msra.mxu0 0
    %453 = vmatprep.subr.bf16.mxu0 0
    %454 = vmatpush2.bf16.xpose.msra.mxu0 0
    %455 = vmatprep.subr.bf16.mxu0 0
    %456 = vmatpush2.bf16.xpose.msra.mxu0 0
    %457 = vmatprep.mubr.bf16.mxu0 0
    %458 = vmatmul.mubr.bf16.gmra.mxu0 %v420
    %v459 = vpop.f32.mrf.mxu0
    %v460 = vadd.f32 0.0, %v459
    %v461 = vpop.f32.mrf.mxu0
    %v462 = vpop.f32.mrf.mxu0
    %v463 = vpop.f32.mrf.mxu0
    %464 = vdwg.mxu0
    %466 = vrot.lane.b32.xlu0 %v266, 96
    %v467 = vpop.permute.xlu0 %466
    %v469 = vsel %vm271, %v260, 0
    %v472 = vsel %vm271, %v467, 0
    %474 = vmatprep.subr.bf16.mxu0 0
    %475 = vmatpush1.bf16.xpose.msra.mxu0 0
    %476 = vmatprep.subr.bf16.mxu0 0
    %477 = vmatpush1.bf16.xpose.msra.mxu0 0
    %478 = vmatprep.subr.bf16.mxu0 0
    %479 = vmatpush1.bf16.xpose.msra.mxu0 0
    %480 = vmatprep.subr.bf16.mxu0 0
    %481 = vmatpush1.bf16.xpose.msra.mxu0 0
    %482 = vmatprep.subr.bf16.mxu0 0
    %483 = vmatpush1.bf16.xpose.msra.mxu0 0
    %484 = vmatprep.subr.bf16.mxu0 0
    %485 = vmatpush1.bf16.xpose.msra.mxu0 0
    %486 = vmatprep.subr.bf16.mxu0 0
    %487 = vmatpush1.bf16.xpose.msra.mxu0 0
    %488 = vmatprep.subr.bf16.mxu0 0
    %489 = vmatpush1.bf16.xpose.msra.mxu0 %v472
    %490 = vmatprep.subr.bf16.mxu0 0
    %491 = vmatpush2.bf16.xpose.msra.mxu0 0
    %492 = vmatprep.subr.bf16.mxu0 0
    %493 = vmatpush2.bf16.xpose.msra.mxu0 0
    %494 = vmatprep.subr.bf16.mxu0 0
    %495 = vmatpush2.bf16.xpose.msra.mxu0 0
    %496 = vmatprep.subr.bf16.mxu0 0
    %497 = vmatpush2.bf16.xpose.msra.mxu0 0
    %498 = vmatprep.subr.bf16.mxu0 0
    %499 = vmatpush2.bf16.xpose.msra.mxu0 0
    %500 = vmatprep.subr.bf16.mxu0 0
    %501 = vmatpush2.bf16.xpose.msra.mxu0 0
    %502 = vmatprep.subr.bf16.mxu0 0
    %503 = vmatpush2.bf16.xpose.msra.mxu0 0
    %504 = vmatprep.subr.bf16.mxu0 0
    %505 = vmatpush2.bf16.xpose.msra.mxu0 0
    %506 = vmatprep.mubr.bf16.mxu0 0
    %507 = vmatmul.mubr.bf16.gmra.mxu0 %v469
    %v508 = vpop.f32.mrf.mxu0
    %v509 = vadd.f32 0.0, %v508
    %v510 = vpop.f32.mrf.mxu0
    %v511 = vpop.f32.mrf.mxu0
    %v512 = vpop.f32.mrf.mxu0
    %513 = vdwg.mxu0
    %515 = vrot.lane.b32.xlu0 %v267, 96
    %v516 = vpop.permute.xlu0 %515
    %v518 = vsel %vm271, %v261, 0
    %v521 = vsel %vm271, %v516, 0
    %523 = vmatprep.subr.bf16.mxu0 0
    %524 = vmatpush1.bf16.xpose.msra.mxu0 0
    %525 = vmatprep.subr.bf16.mxu0 0
    %526 = vmatpush1.bf16.xpose.msra.mxu0 0
    %527 = vmatprep.subr.bf16.mxu0 0
    %528 = vmatpush1.bf16.xpose.msra.mxu0 0
    %529 = vmatprep.subr.bf16.mxu0 0
    %530 = vmatpush1.bf16.xpose.msra.mxu0 0
    %531 = vmatprep.subr.bf16.mxu0 0
    %532 = vmatpush1.bf16.xpose.msra.mxu0 0
    %533 = vmatprep.subr.bf16.mxu0 0
    %534 = vmatpush1.bf16.xpose.msra.mxu0 0
    %535 = vmatprep.subr.bf16.mxu0 0
    %536 = vmatpush1.bf16.xpose.msra.mxu0 0
    %537 = vmatprep.subr.bf16.mxu0 0
    %538 = vmatpush1.bf16.xpose.msra.mxu0 %v521
    %539 = vmatprep.subr.bf16.mxu0 0
    %540 = vmatpush2.bf16.xpose.msra.mxu0 0
    %541 = vmatprep.subr.bf16.mxu0 0
    %542 = vmatpush2.bf16.xpose.msra.mxu0 0
    %543 = vmatprep.subr.bf16.mxu0 0
    %544 = vmatpush2.bf16.xpose.msra.mxu0 0
    %545 = vmatprep.subr.bf16.mxu0 0
    %546 = vmatpush2.bf16.xpose.msra.mxu0 0
    %547 = vmatprep.subr.bf16.mxu0 0
    %548 = vmatpush2.bf16.xpose.msra.mxu0 0
    %549 = vmatprep.subr.bf16.mxu0 0
    %550 = vmatpush2.bf16.xpose.msra.mxu0 0
    %551 = vmatprep.subr.bf16.mxu0 0
    %552 = vmatpush2.bf16.xpose.msra.mxu0 0
    %553 = vmatprep.subr.bf16.mxu0 0
    %554 = vmatpush2.bf16.xpose.msra.mxu0 0
    %555 = vmatprep.mubr.bf16.mxu0 0
    %556 = vmatmul.mubr.bf16.gmra.mxu0 %v518
    %v557 = vpop.f32.mrf.mxu0
    %v558 = vadd.f32 0.0, %v557
    %v559 = vpop.f32.mrf.mxu0
    %v560 = vpop.f32.mrf.mxu0
    %v561 = vpop.f32.mrf.mxu0
    %562 = vdwg.mxu0
    %v563 = vmul.f32 %v313, 0.35355338
    %v564 = vmul.f32 %v362, 0.35355338
    %v565 = vmul.f32 %v411, 0.35355338
    %v566 = vmul.f32 %v460, 0.35355338
    %v567 = vmul.f32 %v509, 0.35355338
    %v568 = vmul.f32 %v558, 0.35355338
    %v569 = vsel %vm271, %v563, -inf
    %570 = vmax.xlane.f32.xlu0 %v569
    %v571 = vpop.xlane.xlu0 %570
    %v572 = vsel %vm271, %v564, -inf
    %573 = vmax.xlane.f32.xlu0 %v572
    %v574 = vpop.xlane.xlu0 %573
    %v575 = vsel %vm271, %v565, -inf
    %576 = vmax.xlane.f32.xlu0 %v575
    %v577 = vpop.xlane.xlu0 %576
    %v578 = vsel %vm271, %v566, -inf
    %579 = vmax.xlane.f32.xlu0 %v578
    %v580 = vpop.xlane.xlu0 %579
    %v581 = vsel %vm271, %v567, -inf
    %582 = vmax.xlane.f32.xlu0 %v581
    %v583 = vpop.xlane.xlu0 %582
    %v584 = vsel %vm271, %v568, -inf
    %585 = vmax.xlane.f32.xlu0 %v584
    %v586 = vpop.xlane.xlu0 %585
    %v587 = vsub.f32 %v563, %v571
    %v588 = vsub.f32 %v564, %v574
    %v589 = vsub.f32 %v565, %v577
    %v590 = vsub.f32 %v566, %v580
    %v591 = vsub.f32 %v567, %v583
    %v592 = vsub.f32 %v568, %v586
    %v593 = vmul.f32 %v587, 1.442695
    %v594 = vpow.pop %v593
    %v595 = vmul.f32 %v588, 1.442695
    %v596 = vpow.pop %v595
    %v597 = vmul.f32 %v589, 1.442695
    %v598 = vpow.pop %v597
    %v599 = vmul.f32 %v590, 1.442695
    %v600 = vpow.pop %v599
    %v601 = vmul.f32 %v591, 1.442695
    %v602 = vpow.pop %v601
    %v603 = vmul.f32 %v592, 1.442695
    %v604 = vpow.pop %v603
    %v605 = vsel %vm271, %v594, 0.0
    %606 = vadd.xlane.f32.xlu0 %v605
    %v607 = vpop.xlane.xlu0 %606
    %v608 = vsel %vm271, %v596, 0.0
    %609 = vadd.xlane.f32.xlu0 %v608
    %v610 = vpop.xlane.xlu0 %609
    %v611 = vsel %vm271, %v598, 0.0
    %612 = vadd.xlane.f32.xlu0 %v611
    %v613 = vpop.xlane.xlu0 %612
    %v614 = vsel %vm271, %v600, 0.0
    %615 = vadd.xlane.f32.xlu0 %v614
    %v616 = vpop.xlane.xlu0 %615
    %v617 = vsel %vm271, %v602, 0.0
    %618 = vadd.xlane.f32.xlu0 %v617
    %v619 = vpop.xlane.xlu0 %618
    %v620 = vsel %vm271, %v604, 0.0
    %621 = vadd.xlane.f32.xlu0 %v620
    %v622 = vpop.xlane.xlu0 %621
    %v623 = vrcp.pop %v607
    %v624 = vrcp.pop %v610
    %v625 = vrcp.pop %v613
    %v626 = vrcp.pop %v616
    %v627 = vrcp.pop %v619
    %v628 = vrcp.pop %v622
    %v629 = vmul.f32 %v594, %v623
    %v630 = vmul.f32 %v596, %v624
    %v631 = vmul.f32 %v598, %v625
    %v632 = vmul.f32 %v600, %v626
    %v633 = vmul.f32 %v602, %v627
    %v634 = vmul.f32 %v604, %v628
    %v635 = vpack.c.bf16 %v629, %v629
    %v636 = vpack.c.bf16 %v630, %v630
    %v637 = vpack.c.bf16 %v631, %v631
    %v638 = vpack.c.bf16 %v632, %v632
    %v639 = vpack.c.bf16 %v633, %v633
    %v640 = vpack.c.bf16 %v634, %v634
    %641 = vrot.lane.b32.xlu0 %v262, 64
    %v642 = vpop.permute.xlu0 %641
    %v644 = vsel %vm271, %v635, 0
    %vm646 = vcmask 1043456
    %v648 = vsel %vm646, %v642, 0
    %650 = vmatprep.subr.bf16.mxu0 0
    %651 = vmatpush1.bf16.msra.mxu0 0
    %652 = vmatprep.subr.bf16.mxu0 0
    %653 = vmatpush1.bf16.msra.mxu0 0
    %654 = vmatprep.subr.bf16.mxu0 0
    %655 = vmatpush1.bf16.msra.mxu0 0
    %656 = vmatprep.subr.bf16.mxu0 0
    %657 = vmatpush1.bf16.msra.mxu0 0
    %658 = vmatprep.subr.bf16.mxu0 0
    %659 = vmatpush1.bf16.msra.mxu0 0
    %660 = vmatprep.subr.bf16.mxu0 0
    %661 = vmatpush1.bf16.msra.mxu0 0
    %662 = vmatprep.subr.bf16.mxu0 0
    %663 = vmatpush1.bf16.msra.mxu0 0
    %664 = vmatprep.subr.bf16.mxu0 0
    %665 = vmatpush1.bf16.msra.mxu0 %v648
    %666 = vmatprep.subr.bf16.mxu0 0
    %667 = vmatpush2.bf16.msra.mxu0 0
    %668 = vmatprep.subr.bf16.mxu0 0
    %669 = vmatpush2.bf16.msra.mxu0 0
    %670 = vmatprep.subr.bf16.mxu0 0
    %671 = vmatpush2.bf16.msra.mxu0 0
    %672 = vmatprep.subr.bf16.mxu0 0
    %673 = vmatpush2.bf16.msra.mxu0 0
    %674 = vmatprep.subr.bf16.mxu0 0
    %675 = vmatpush2.bf16.msra.mxu0 0
    %676 = vmatprep.subr.bf16.mxu0 0
    %677 = vmatpush2.bf16.msra.mxu0 0
    %678 = vmatprep.subr.bf16.mxu0 0
    %679 = vmatpush2.bf16.msra.mxu0 0
    %680 = vmatprep.subr.bf16.mxu0 0
    %681 = vmatpush2.bf16.msra.mxu0 0
    %682 = vmatprep.mubr.bf16.mxu0 0
    %683 = vmatmul.mubr.bf16.gmra.mxu0 %v644
    %v684 = vpop.f32.mrf.mxu0
    %v685 = vadd.f32 0.0, %v684
    %v686 = vpop.f32.mrf.mxu0
    %v687 = vpop.f32.mrf.mxu0
    %v688 = vpop.f32.mrf.mxu0
    %689 = vdwg.mxu0
    %690 = vrot.lane.b32.xlu0 %v263, 64
    %v691 = vpop.permute.xlu0 %690
    %v693 = vsel %vm271, %v636, 0
    %v696 = vsel %vm646, %v691, 0
    %698 = vmatprep.subr.bf16.mxu0 0
    %699 = vmatpush1.bf16.msra.mxu0 0
    %700 = vmatprep.subr.bf16.mxu0 0
    %701 = vmatpush1.bf16.msra.mxu0 0
    %702 = vmatprep.subr.bf16.mxu0 0
    %703 = vmatpush1.bf16.msra.mxu0 0
    %704 = vmatprep.subr.bf16.mxu0 0
    %705 = vmatpush1.bf16.msra.mxu0 0
    %706 = vmatprep.subr.bf16.mxu0 0
    %707 = vmatpush1.bf16.msra.mxu0 0
    %708 = vmatprep.subr.bf16.mxu0 0
    %709 = vmatpush1.bf16.msra.mxu0 0
    %710 = vmatprep.subr.bf16.mxu0 0
    %711 = vmatpush1.bf16.msra.mxu0 0
    %712 = vmatprep.subr.bf16.mxu0 0
    %713 = vmatpush1.bf16.msra.mxu0 %v696
    %714 = vmatprep.subr.bf16.mxu0 0
    %715 = vmatpush2.bf16.msra.mxu0 0
    %716 = vmatprep.subr.bf16.mxu0 0
    %717 = vmatpush2.bf16.msra.mxu0 0
    %718 = vmatprep.subr.bf16.mxu0 0
    %719 = vmatpush2.bf16.msra.mxu0 0
    %720 = vmatprep.subr.bf16.mxu0 0
    %721 = vmatpush2.bf16.msra.mxu0 0
    %722 = vmatprep.subr.bf16.mxu0 0
    %723 = vmatpush2.bf16.msra.mxu0 0
    %724 = vmatprep.subr.bf16.mxu0 0
    %725 = vmatpush2.bf16.msra.mxu0 0
    %726 = vmatprep.subr.bf16.mxu0 0
    %727 = vmatpush2.bf16.msra.mxu0 0
    %728 = vmatprep.subr.bf16.mxu0 0
    %729 = vmatpush2.bf16.msra.mxu0 0
    %730 = vmatprep.mubr.bf16.mxu0 0
    %731 = vmatmul.mubr.bf16.gmra.mxu0 %v693
    %v732 = vpop.f32.mrf.mxu0
    %v733 = vadd.f32 0.0, %v732
    %v734 = vpop.f32.mrf.mxu0
    %v735 = vpop.f32.mrf.mxu0
    %v736 = vpop.f32.mrf.mxu0
    %737 = vdwg.mxu0
    %738 = vrot.lane.b32.xlu0 %v264, 64
    %v739 = vpop.permute.xlu0 %738
    %v741 = vsel %vm271, %v637, 0
    %v744 = vsel %vm646, %v739, 0
    %746 = vmatprep.subr.bf16.mxu0 0
    %747 = vmatpush1.bf16.msra.mxu0 0
    %748 = vmatprep.subr.bf16.mxu0 0
    %749 = vmatpush1.bf16.msra.mxu0 0
    %750 = vmatprep.subr.bf16.mxu0 0
    %751 = vmatpush1.bf16.msra.mxu0 0
    %752 = vmatprep.subr.bf16.mxu0 0
    %753 = vmatpush1.bf16.msra.mxu0 0
    %754 = vmatprep.subr.bf16.mxu0 0
    %755 = vmatpush1.bf16.msra.mxu0 0
    %756 = vmatprep.subr.bf16.mxu0 0
    %757 = vmatpush1.bf16.msra.mxu0 0
    %758 = vmatprep.subr.bf16.mxu0 0
    %759 = vmatpush1.bf16.msra.mxu0 0
    %760 = vmatprep.subr.bf16.mxu0 0
    %761 = vmatpush1.bf16.msra.mxu0 %v744
    %762 = vmatprep.subr.bf16.mxu0 0
    %763 = vmatpush2.bf16.msra.mxu0 0
    %764 = vmatprep.subr.bf16.mxu0 0
    %765 = vmatpush2.bf16.msra.mxu0 0
    %766 = vmatprep.subr.bf16.mxu0 0
    %767 = vmatpush2.bf16.msra.mxu0 0
    %768 = vmatprep.subr.bf16.mxu0 0
    %769 = vmatpush2.bf16.msra.mxu0 0
    %770 = vmatprep.subr.bf16.mxu0 0
    %771 = vmatpush2.bf16.msra.mxu0 0
    %772 = vmatprep.subr.bf16.mxu0 0
    %773 = vmatpush2.bf16.msra.mxu0 0
    %774 = vmatprep.subr.bf16.mxu0 0
    %775 = vmatpush2.bf16.msra.mxu0 0
    %776 = vmatprep.subr.bf16.mxu0 0
    %777 = vmatpush2.bf16.msra.mxu0 0
    %778 = vmatprep.mubr.bf16.mxu0 0
    %779 = vmatmul.mubr.bf16.gmra.mxu0 %v741
    %v780 = vpop.f32.mrf.mxu0
    %v781 = vadd.f32 0.0, %v780
    %v782 = vpop.f32.mrf.mxu0
    %v783 = vpop.f32.mrf.mxu0
    %v784 = vpop.f32.mrf.mxu0
    %785 = vdwg.mxu0
    %786 = vrot.lane.b32.xlu0 %v265, 64
    %v787 = vpop.permute.xlu0 %786
    %v789 = vsel %vm271, %v638, 0
    %v792 = vsel %vm646, %v787, 0
    %794 = vmatprep.subr.bf16.mxu0 0
    %795 = vmatpush1.bf16.msra.mxu0 0
    %796 = vmatprep.subr.bf16.mxu0 0
    %797 = vmatpush1.bf16.msra.mxu0 0
    %798 = vmatprep.subr.bf16.mxu0 0
    %799 = vmatpush1.bf16.msra.mxu0 0
    %800 = vmatprep.subr.bf16.mxu0 0
    %801 = vmatpush1.bf16.msra.mxu0 0
    %802 = vmatprep.subr.bf16.mxu0 0
    %803 = vmatpush1.bf16.msra.mxu0 0
    %804 = vmatprep.subr.bf16.mxu0 0
    %805 = vmatpush1.bf16.msra.mxu0 0
    %806 = vmatprep.subr.bf16.mxu0 0
    %807 = vmatpush1.bf16.msra.mxu0 0
    %808 = vmatprep.subr.bf16.mxu0 0
    %809 = vmatpush1.bf16.msra.mxu0 %v792
    %810 = vmatprep.subr.bf16.mxu0 0
    %811 = vmatpush2.bf16.msra.mxu0 0
    %812 = vmatprep.subr.bf16.mxu0 0
    %813 = vmatpush2.bf16.msra.mxu0 0
    %814 = vmatprep.subr.bf16.mxu0 0
    %815 = vmatpush2.bf16.msra.mxu0 0
    %816 = vmatprep.subr.bf16.mxu0 0
    %817 = vmatpush2.bf16.msra.mxu0 0
    %818 = vmatprep.subr.bf16.mxu0 0
    %819 = vmatpush2.bf16.msra.mxu0 0
    %820 = vmatprep.subr.bf16.mxu0 0
    %821 = vmatpush2.bf16.msra.mxu0 0
    %822 = vmatprep.subr.bf16.mxu0 0
    %823 = vmatpush2.bf16.msra.mxu0 0
    %824 = vmatprep.subr.bf16.mxu0 0
    %825 = vmatpush2.bf16.msra.mxu0 0
    %826 = vmatprep.mubr.bf16.mxu0 0
    %827 = vmatmul.mubr.bf16.gmra.mxu0 %v789
    %v828 = vpop.f32.mrf.mxu0
    %v829 = vadd.f32 0.0, %v828
    %v830 = vpop.f32.mrf.mxu0
    %v831 = vpop.f32.mrf.mxu0
    %v832 = vpop.f32.mrf.mxu0
    %833 = vdwg.mxu0
    %834 = vrot.lane.b32.xlu0 %v266, 64
    %v835 = vpop.permute.xlu0 %834
    %v837 = vsel %vm271, %v639, 0
    %v840 = vsel %vm646, %v835, 0
    %842 = vmatprep.subr.bf16.mxu0 0
    %843 = vmatpush1.bf16.msra.mxu0 0
    %844 = vmatprep.subr.bf16.mxu0 0
    %845 = vmatpush1.bf16.msra.mxu0 0
    %846 = vmatprep.subr.bf16.mxu0 0
    %847 = vmatpush1.bf16.msra.mxu0 0
    %848 = vmatprep.subr.bf16.mxu0 0
    %849 = vmatpush1.bf16.msra.mxu0 0
    %850 = vmatprep.subr.bf16.mxu0 0
    %851 = vmatpush1.bf16.msra.mxu0 0
    %852 = vmatprep.subr.bf16.mxu0 0
    %853 = vmatpush1.bf16.msra.mxu0 0
    %854 = vmatprep.subr.bf16.mxu0 0
    %855 = vmatpush1.bf16.msra.mxu0 0
    %856 = vmatprep.subr.bf16.mxu0 0
    %857 = vmatpush1.bf16.msra.mxu0 %v840
    %858 = vmatprep.subr.bf16.mxu0 0
    %859 = vmatpush2.bf16.msra.mxu0 0
    %860 = vmatprep.subr.bf16.mxu0 0
    %861 = vmatpush2.bf16.msra.mxu0 0
    %862 = vmatprep.subr.bf16.mxu0 0
    %863 = vmatpush2.bf16.msra.mxu0 0
    %864 = vmatprep.subr.bf16.mxu0 0
    %865 = vmatpush2.bf16.msra.mxu0 0
    %866 = vmatprep.subr.bf16.mxu0 0
    %867 = vmatpush2.bf16.msra.mxu0 0
    %868 = vmatprep.subr.bf16.mxu0 0
    %869 = vmatpush2.bf16.msra.mxu0 0
    %870 = vmatprep.subr.bf16.mxu0 0
    %871 = vmatpush2.bf16.msra.mxu0 0
    %872 = vmatprep.subr.bf16.mxu0 0
    %873 = vmatpush2.bf16.msra.mxu0 0
    %874 = vmatprep.mubr.bf16.mxu0 0
    %875 = vmatmul.mubr.bf16.gmra.mxu0 %v837
    %v876 = vpop.f32.mrf.mxu0
    %v877 = vadd.f32 0.0, %v876
    %v878 = vpop.f32.mrf.mxu0
    %v879 = vpop.f32.mrf.mxu0
    %v880 = vpop.f32.mrf.mxu0
    %881 = vdwg.mxu0
    %882 = vrot.lane.b32.xlu0 %v267, 64
    %v883 = vpop.permute.xlu0 %882
    %v885 = vsel %vm271, %v640, 0
    %v888 = vsel %vm646, %v883, 0
    %890 = vmatprep.subr.bf16.mxu0 0
    %891 = vmatpush1.bf16.msra.mxu0 0
    %892 = vmatprep.subr.bf16.mxu0 0
    %893 = vmatpush1.bf16.msra.mxu0 0
    %894 = vmatprep.subr.bf16.mxu0 0
    %895 = vmatpush1.bf16.msra.mxu0 0
    %896 = vmatprep.subr.bf16.mxu0 0
    %897 = vmatpush1.bf16.msra.mxu0 0
    %898 = vmatprep.subr.bf16.mxu0 0
    %899 = vmatpush1.bf16.msra.mxu0 0
    %900 = vmatprep.subr.bf16.mxu0 0
    %901 = vmatpush1.bf16.msra.mxu0 0
    %902 = vmatprep.subr.bf16.mxu0 0
    %903 = vmatpush1.bf16.msra.mxu0 0
    %904 = vmatprep.subr.bf16.mxu0 0
    %905 = vmatpush1.bf16.msra.mxu0 %v888
    %906 = vmatprep.subr.bf16.mxu0 0
    %907 = vmatpush2.bf16.msra.mxu0 0
    %908 = vmatprep.subr.bf16.mxu0 0
    %909 = vmatpush2.bf16.msra.mxu0 0
    %910 = vmatprep.subr.bf16.mxu0 0
    %911 = vmatpush2.bf16.msra.mxu0 0
    %912 = vmatprep.subr.bf16.mxu0 0
    %913 = vmatpush2.bf16.msra.mxu0 0
    %914 = vmatprep.subr.bf16.mxu0 0
    %915 = vmatpush2.bf16.msra.mxu0 0
    %916 = vmatprep.subr.bf16.mxu0 0
    %917 = vmatpush2.bf16.msra.mxu0 0
    %918 = vmatprep.subr.bf16.mxu0 0
    %919 = vmatpush2.bf16.msra.mxu0 0
    %920 = vmatprep.subr.bf16.mxu0 0
    %921 = vmatpush2.bf16.msra.mxu0 0
    %922 = vmatprep.mubr.bf16.mxu0 0
    %923 = vmatmul.mubr.bf16.gmra.mxu0 %v885
    %v924 = vpop.f32.mrf.mxu0
    %v925 = vadd.f32 0.0, %v924
    %v926 = vpop.f32.mrf.mxu0
    %v927 = vpop.f32.mrf.mxu0
    %v928 = vpop.f32.mrf.mxu0
    %929 = vdwg.mxu0
    %931 = vrot.lane.b32.xlu0 %v256, 120
    %v932 = vpop.permute.xlu0 %931
    %933 = vrot.lane.b32.xlu0 %v262, 88
    %v934 = vpop.permute.xlu0 %933
    %v936 = vsel %vm271, %v932, 0
    %v939 = vsel %vm271, %v934, 0
    %941 = vmatprep.subr.bf16.mxu0 0
    %942 = vmatpush1.bf16.xpose.msra.mxu0 0
    %943 = vmatprep.subr.bf16.mxu0 0
    %944 = vmatpush1.bf16.xpose.msra.mxu0 0
    %945 = vmatprep.subr.bf16.mxu0 0
    %946 = vmatpush1.bf16.xpose.msra.mxu0 0
    %947 = vmatprep.subr.bf16.mxu0 0
    %948 = vmatpush1.bf16.xpose.msra.mxu0 0
    %949 = vmatprep.subr.bf16.mxu0 0
    %950 = vmatpush1.bf16.xpose.msra.mxu0 0
    %951 = vmatprep.subr.bf16.mxu0 0
    %952 = vmatpush1.bf16.xpose.msra.mxu0 0
    %953 = vmatprep.subr.bf16.mxu0 0
    %954 = vmatpush1.bf16.xpose.msra.mxu0 0
    %955 = vmatprep.subr.bf16.mxu0 0
    %956 = vmatpush1.bf16.xpose.msra.mxu0 %v939
    %957 = vmatprep.subr.bf16.mxu0 0
    %958 = vmatpush2.bf16.xpose.msra.mxu0 0
    %959 = vmatprep.subr.bf16.mxu0 0
    %960 = vmatpush2.bf16.xpose.msra.mxu0 0
    %961 = vmatprep.subr.bf16.mxu0 0
    %962 = vmatpush2.bf16.xpose.msra.mxu0 0
    %963 = vmatprep.subr.bf16.mxu0 0
    %964 = vmatpush2.bf16.xpose.msra.mxu0 0
    %965 = vmatprep.subr.bf16.mxu0 0
    %966 = vmatpush2.bf16.xpose.msra.mxu0 0
    %967 = vmatprep.subr.bf16.mxu0 0
    %968 = vmatpush2.bf16.xpose.msra.mxu0 0
    %969 = vmatprep.subr.bf16.mxu0 0
    %970 = vmatpush2.bf16.xpose.msra.mxu0 0
    %971 = vmatprep.subr.bf16.mxu0 0
    %972 = vmatpush2.bf16.xpose.msra.mxu0 0
    %973 = vmatprep.mubr.bf16.mxu0 0
    %974 = vmatmul.mubr.bf16.gmra.mxu0 %v936
    %v975 = vpop.f32.mrf.mxu0
    %v976 = vadd.f32 0.0, %v975
    %v977 = vpop.f32.mrf.mxu0
    %v978 = vpop.f32.mrf.mxu0
    %v979 = vpop.f32.mrf.mxu0
    %980 = vdwg.mxu0
    %982 = vrot.lane.b32.xlu0 %v257, 120
    %v983 = vpop.permute.xlu0 %982
    %984 = vrot.lane.b32.xlu0 %v263, 88
    %v985 = vpop.permute.xlu0 %984
    %v987 = vsel %vm271, %v983, 0
    %v990 = vsel %vm271, %v985, 0
    %992 = vmatprep.subr.bf16.mxu0 0
    %993 = vmatpush1.bf16.xpose.msra.mxu0 0
    %994 = vmatprep.subr.bf16.mxu0 0
    %995 = vmatpush1.bf16.xpose.msra.mxu0 0
    %996 = vmatprep.subr.bf16.mxu0 0
    %997 = vmatpush1.bf16.xpose.msra.mxu0 0
    %998 = vmatprep.subr.bf16.mxu0 0
    %999 = vmatpush1.bf16.xpose.msra.mxu0 0
    %1000 = vmatprep.subr.bf16.mxu0 0
    %1001 = vmatpush1.bf16.xpose.msra.mxu0 0
    %1002 = vmatprep.subr.bf16.mxu0 0
    %1003 = vmatpush1.bf16.xpose.msra.mxu0 0
    %1004 = vmatprep.subr.bf16.mxu0 0
    %1005 = vmatpush1.bf16.xpose.msra.mxu0 0
    %1006 = vmatprep.subr.bf16.mxu0 0
    %1007 = vmatpush1.bf16.xpose.msra.mxu0 %v990
    %1008 = vmatprep.subr.bf16.mxu0 0
    %1009 = vmatpush2.bf16.xpose.msra.mxu0 0
    %1010 = vmatprep.subr.bf16.mxu0 0
    %1011 = vmatpush2.bf16.xpose.msra.mxu0 0
    %1012 = vmatprep.subr.bf16.mxu0 0
    %1013 = vmatpush2.bf16.xpose.msra.mxu0 0
    %1014 = vmatprep.subr.bf16.mxu0 0
    %1015 = vmatpush2.bf16.xpose.msra.mxu0 0
    %1016 = vmatprep.subr.bf16.mxu0 0
    %1017 = vmatpush2.bf16.xpose.msra.mxu0 0
    %1018 = vmatprep.subr.bf16.mxu0 0
    %1019 = vmatpush2.bf16.xpose.msra.mxu0 0
    %1020 = vmatprep.subr.bf16.mxu0 0
    %1021 = vmatpush2.bf16.xpose.msra.mxu0 0
    %1022 = vmatprep.subr.bf16.mxu0 0
    %1023 = vmatpush2.bf16.xpose.msra.mxu0 0
    %1024 = vmatprep.mubr.bf16.mxu0 0
    %1025 = vmatmul.mubr.bf16.gmra.mxu0 %v987
    %v1026 = vpop.f32.mrf.mxu0
    %v1027 = vadd.f32 0.0, %v1026
    %v1028 = vpop.f32.mrf.mxu0
    %v1029 = vpop.f32.mrf.mxu0
    %v1030 = vpop.f32.mrf.mxu0
    %1031 = vdwg.mxu0
    %1033 = vrot.lane.b32.xlu0 %v258, 120
    %v1034 = vpop.permute.xlu0 %1033
    %1035 = vrot.lane.b32.xlu0 %v264, 88
    %v1036 = vpop.permute.xlu0 %1035
    %v1038 = vsel %vm271, %v1034, 0
    %v1041 = vsel %vm271, %v1036, 0
    %1043 = vmatprep.subr.bf16.mxu0 0
    %1044 = vmatpush1.bf16.xpose.msra.mxu0 0
    %1045 = vmatprep.subr.bf16.mxu0 0
    %1046 = vmatpush1.bf16.xpose.msra.mxu0 0
    %1047 = vmatprep.subr.bf16.mxu0 0
    %1048 = vmatpush1.bf16.xpose.msra.mxu0 0
    %1049 = vmatprep.subr.bf16.mxu0 0
    %1050 = vmatpush1.bf16.xpose.msra.mxu0 0
    %1051 = vmatprep.subr.bf16.mxu0 0
    %1052 = vmatpush1.bf16.xpose.msra.mxu0 0
    %1053 = vmatprep.subr.bf16.mxu0 0
    %1054 = vmatpush1.bf16.xpose.msra.mxu0 0
    %1055 = vmatprep.subr.bf16.mxu0 0
    %1056 = vmatpush1.bf16.xpose.msra.mxu0 0
    %1057 = vmatprep.subr.bf16.mxu0 0
    %1058 = vmatpush1.bf16.xpose.msra.mxu0 %v1041
    %1059 = vmatprep.subr.bf16.mxu0 0
    %1060 = vmatpush2.bf16.xpose.msra.mxu0 0
    %1061 = vmatprep.subr.bf16.mxu0 0
    %1062 = vmatpush2.bf16.xpose.msra.mxu0 0
    %1063 = vmatprep.subr.bf16.mxu0 0
    %1064 = vmatpush2.bf16.xpose.msra.mxu0 0
    %1065 = vmatprep.subr.bf16.mxu0 0
    %1066 = vmatpush2.bf16.xpose.msra.mxu0 0
    %1067 = vmatprep.subr.bf16.mxu0 0
    %1068 = vmatpush2.bf16.xpose.msra.mxu0 0
    %1069 = vmatprep.subr.bf16.mxu0 0
    %1070 = vmatpush2.bf16.xpose.msra.mxu0 0
    %1071 = vmatprep.subr.bf16.mxu0 0
    %1072 = vmatpush2.bf16.xpose.msra.mxu0 0
    %1073 = vmatprep.subr.bf16.mxu0 0
    %1074 = vmatpush2.bf16.xpose.msra.mxu0 0
    %1075 = vmatprep.mubr.bf16.mxu0 0
    %1076 = vmatmul.mubr.bf16.gmra.mxu0 %v1038
    %v1077 = vpop.f32.mrf.mxu0
    %v1078 = vadd.f32 0.0, %v1077
    %v1079 = vpop.f32.mrf.mxu0
    %v1080 = vpop.f32.mrf.mxu0
    %v1081 = vpop.f32.mrf.mxu0
    %1082 = vdwg.mxu0
    %1084 = vrot.lane.b32.xlu0 %v259, 120
    %v1085 = vpop.permute.xlu0 %1084
    %1086 = vrot.lane.b32.xlu0 %v265, 88
    %v1087 = vpop.permute.xlu0 %1086
    %v1089 = vsel %vm271, %v1085, 0
    %v1092 = vsel %vm271, %v1087, 0
    %1094 = vmatprep.subr.bf16.mxu0 0
    %1095 = vmatpush1.bf16.xpose.msra.mxu0 0
    %1096 = vmatprep.subr.bf16.mxu0 0
    %1097 = vmatpush1.bf16.xpose.msra.mxu0 0
    %1098 = vmatprep.subr.bf16.mxu0 0
    %1099 = vmatpush1.bf16.xpose.msra.mxu0 0
    %1100 = vmatprep.subr.bf16.mxu0 0
    %1101 = vmatpush1.bf16.xpose.msra.mxu0 0
    %1102 = vmatprep.subr.bf16.mxu0 0
    %1103 = vmatpush1.bf16.xpose.msra.mxu0 0
    %1104 = vmatprep.subr.bf16.mxu0 0
    %1105 = vmatpush1.bf16.xpose.msra.mxu0 0
    %1106 = vmatprep.subr.bf16.mxu0 0
    %1107 = vmatpush1.bf16.xpose.msra.mxu0 0
    %1108 = vmatprep.subr.bf16.mxu0 0
    %1109 = vmatpush1.bf16.xpose.msra.mxu0 %v1092
    %1110 = vmatprep.subr.bf16.mxu0 0
    %1111 = vmatpush2.bf16.xpose.msra.mxu0 0
    %1112 = vmatprep.subr.bf16.mxu0 0
    %1113 = vmatpush2.bf16.xpose.msra.mxu0 0
    %1114 = vmatprep.subr.bf16.mxu0 0
    %1115 = vmatpush2.bf16.xpose.msra.mxu0 0
    %1116 = vmatprep.subr.bf16.mxu0 0
    %1117 = vmatpush2.bf16.xpose.msra.mxu0 0
    %1118 = vmatprep.subr.bf16.mxu0 0
    %1119 = vmatpush2.bf16.xpose.msra.mxu0 0
    %1120 = vmatprep.subr.bf16.mxu0 0
    %1121 = vmatpush2.bf16.xpose.msra.mxu0 0
    %1122 = vmatprep.subr.bf16.mxu0 0
    %1123 = vmatpush2.bf16.xpose.msra.mxu0 0
    %1124 = vmatprep.subr.bf16.mxu0 0
    %1125 = vmatpush2.bf16.xpose.msra.mxu0 0
    %1126 = vmatprep.mubr.bf16.mxu0 0
    %1127 = vmatmul.mubr.bf16.gmra.mxu0 %v1089
    %v1128 = vpop.f32.mrf.mxu0
    %v1129 = vadd.f32 0.0, %v1128
    %v1130 = vpop.f32.mrf.mxu0
    %v1131 = vpop.f32.mrf.mxu0
    %v1132 = vpop.f32.mrf.mxu0
    %1133 = vdwg.mxu0
    %1135 = vrot.lane.b32.xlu0 %v260, 120
    %v1136 = vpop.permute.xlu0 %1135
    %1137 = vrot.lane.b32.xlu0 %v266, 88
    %v1138 = vpop.permute.xlu0 %1137
    %v1140 = vsel %vm271, %v1136, 0
    %v1143 = vsel %vm271, %v1138, 0
    %1145 = vmatprep.subr.bf16.mxu0 0
    %1146 = vmatpush1.bf16.xpose.msra.mxu0 0
    %1147 = vmatprep.subr.bf16.mxu0 0
    %1148 = vmatpush1.bf16.xpose.msra.mxu0 0
    %1149 = vmatprep.subr.bf16.mxu0 0
    %1150 = vmatpush1.bf16.xpose.msra.mxu0 0
    %1151 = vmatprep.subr.bf16.mxu0 0
    %1152 = vmatpush1.bf16.xpose.msra.mxu0 0
    %1153 = vmatprep.subr.bf16.mxu0 0
    %1154 = vmatpush1.bf16.xpose.msra.mxu0 0
    %1155 = vmatprep.subr.bf16.mxu0 0
    %1156 = vmatpush1.bf16.xpose.msra.mxu0 0
    %1157 = vmatprep.subr.bf16.mxu0 0
    %1158 = vmatpush1.bf16.xpose.msra.mxu0 0
    %1159 = vmatprep.subr.bf16.mxu0 0
    %1160 = vmatpush1.bf16.xpose.msra.mxu0 %v1143
    %1161 = vmatprep.subr.bf16.mxu0 0
    %1162 = vmatpush2.bf16.xpose.msra.mxu0 0
    %1163 = vmatprep.subr.bf16.mxu0 0
    %1164 = vmatpush2.bf16.xpose.msra.mxu0 0
    %1165 = vmatprep.subr.bf16.mxu0 0
    %1166 = vmatpush2.bf16.xpose.msra.mxu0 0
    %1167 = vmatprep.subr.bf16.mxu0 0
    %1168 = vmatpush2.bf16.xpose.msra.mxu0 0
    %1169 = vmatprep.subr.bf16.mxu0 0
    %1170 = vmatpush2.bf16.xpose.msra.mxu0 0
    %1171 = vmatprep.subr.bf16.mxu0 0
    %1172 = vmatpush2.bf16.xpose.msra.mxu0 0
    %1173 = vmatprep.subr.bf16.mxu0 0
    %1174 = vmatpush2.bf16.xpose.msra.mxu0 0
    %1175 = vmatprep.subr.bf16.mxu0 0
    %1176 = vmatpush2.bf16.xpose.msra.mxu0 0
    %1177 = vmatprep.mubr.bf16.mxu0 0
    %1178 = vmatmul.mubr.bf16.gmra.mxu0 %v1140
    %v1179 = vpop.f32.mrf.mxu0
    %v1180 = vadd.f32 0.0, %v1179
    %v1181 = vpop.f32.mrf.mxu0
    %v1182 = vpop.f32.mrf.mxu0
    %v1183 = vpop.f32.mrf.mxu0
    %1184 = vdwg.mxu0
    %1186 = vrot.lane.b32.xlu0 %v261, 120
    %v1187 = vpop.permute.xlu0 %1186
    %1188 = vrot.lane.b32.xlu0 %v267, 88
    %v1189 = vpop.permute.xlu0 %1188
    %v1191 = vsel %vm271, %v1187, 0
    %v1194 = vsel %vm271, %v1189, 0
    %1196 = vmatprep.subr.bf16.mxu0 0
    %1197 = vmatpush1.bf16.xpose.msra.mxu0 0
    %1198 = vmatprep.subr.bf16.mxu0 0
    %1199 = vmatpush1.bf16.xpose.msra.mxu0 0
    %1200 = vmatprep.subr.bf16.mxu0 0
    %1201 = vmatpush1.bf16.xpose.msra.mxu0 0
    %1202 = vmatprep.subr.bf16.mxu0 0
    %1203 = vmatpush1.bf16.xpose.msra.mxu0 0
    %1204 = vmatprep.subr.bf16.mxu0 0
    %1205 = vmatpush1.bf16.xpose.msra.mxu0 0
    %1206 = vmatprep.subr.bf16.mxu0 0
    %1207 = vmatpush1.bf16.xpose.msra.mxu0 0
    %1208 = vmatprep.subr.bf16.mxu0 0
    %1209 = vmatpush1.bf16.xpose.msra.mxu0 0
    %1210 = vmatprep.subr.bf16.mxu0 0
    %1211 = vmatpush1.bf16.xpose.msra.mxu0 %v1194
    %1212 = vmatprep.subr.bf16.mxu0 0
    %1213 = vmatpush2.bf16.xpose.msra.mxu0 0
    %1214 = vmatprep.subr.bf16.mxu0 0
    %1215 = vmatpush2.bf16.xpose.msra.mxu0 0
    %1216 = vmatprep.subr.bf16.mxu0 0
    %1217 = vmatpush2.bf16.xpose.msra.mxu0 0
    %1218 = vmatprep.subr.bf16.mxu0 0
    %1219 = vmatpush2.bf16.xpose.msra.mxu0 0
    %1220 = vmatprep.subr.bf16.mxu0 0
    %1221 = vmatpush2.bf16.xpose.msra.mxu0 0
    %1222 = vmatprep.subr.bf16.mxu0 0
    %1223 = vmatpush2.bf16.xpose.msra.mxu0 0
    %1224 = vmatprep.subr.bf16.mxu0 0
    %1225 = vmatpush2.bf16.xpose.msra.mxu0 0
    %1226 = vmatprep.subr.bf16.mxu0 0
    %1227 = vmatpush2.bf16.xpose.msra.mxu0 0
    %1228 = vmatprep.mubr.bf16.mxu0 0
    %1229 = vmatmul.mubr.bf16.gmra.mxu0 %v1191
    %v1230 = vpop.f32.mrf.mxu0
    %v1231 = vadd.f32 0.0, %v1230
    %v1232 = vpop.f32.mrf.mxu0
    %v1233 = vpop.f32.mrf.mxu0
    %v1234 = vpop.f32.mrf.mxu0
    %1235 = vdwg.mxu0
    %v1236 = vmul.f32 %v976, 0.35355338
    %v1237 = vmul.f32 %v1027, 0.35355338
    %v1238 = vmul.f32 %v1078, 0.35355338
    %v1239 = vmul.f32 %v1129, 0.35355338
    %v1240 = vmul.f32 %v1180, 0.35355338
    %v1241 = vmul.f32 %v1231, 0.35355338
    %v1242 = vsel %vm271, %v1236, -inf
    %1243 = vmax.xlane.f32.xlu0 %v1242
    %v1244 = vpop.xlane.xlu0 %1243
    %v1245 = vsel %vm271, %v1237, -inf
    %1246 = vmax.xlane.f32.xlu0 %v1245
    %v1247 = vpop.xlane.xlu0 %1246
    %v1248 = vsel %vm271, %v1238, -inf
    %1249 = vmax.xlane.f32.xlu0 %v1248
    %v1250 = vpop.xlane.xlu0 %1249
    %v1251 = vsel %vm271, %v1239, -inf
    %1252 = vmax.xlane.f32.xlu0 %v1251
    %v1253 = vpop.xlane.xlu0 %1252
    %v1254 = vsel %vm271, %v1240, -inf
    %1255 = vmax.xlane.f32.xlu0 %v1254
    %v1256 = vpop.xlane.xlu0 %1255
    %v1257 = vsel %vm271, %v1241, -inf
    %1258 = vmax.xlane.f32.xlu0 %v1257
    %v1259 = vpop.xlane.xlu0 %1258
    %v1260 = vsub.f32 %v1236, %v1244
    %v1261 = vsub.f32 %v1237, %v1247
    %v1262 = vsub.f32 %v1238, %v1250
    %v1263 = vsub.f32 %v1239, %v1253
    %v1264 = vsub.f32 %v1240, %v1256
    %v1265 = vsub.f32 %v1241, %v1259
    %v1266 = vmul.f32 %v1260, 1.442695
    %v1267 = vpow.pop %v1266
    %v1268 = vmul.f32 %v1261, 1.442695
    %v1269 = vpow.pop %v1268
    %v1270 = vmul.f32 %v1262, 1.442695
    %v1271 = vpow.pop %v1270
    %v1272 = vmul.f32 %v1263, 1.442695
    %v1273 = vpow.pop %v1272
    %v1274 = vmul.f32 %v1264, 1.442695
    %v1275 = vpow.pop %v1274
    %v1276 = vmul.f32 %v1265, 1.442695
    %v1277 = vpow.pop %v1276
    %v1278 = vsel %vm271, %v1267, 0.0
    %1279 = vadd.xlane.f32.xlu0 %v1278
    %v1280 = vpop.xlane.xlu0 %1279
    %v1281 = vsel %vm271, %v1269, 0.0
    %1282 = vadd.xlane.f32.xlu0 %v1281
    %v1283 = vpop.xlane.xlu0 %1282
    %v1284 = vsel %vm271, %v1271, 0.0
    %1285 = vadd.xlane.f32.xlu0 %v1284
    %v1286 = vpop.xlane.xlu0 %1285
    %v1287 = vsel %vm271, %v1273, 0.0
    %1288 = vadd.xlane.f32.xlu0 %v1287
    %v1289 = vpop.xlane.xlu0 %1288
    %v1290 = vsel %vm271, %v1275, 0.0
    %1291 = vadd.xlane.f32.xlu0 %v1290
    %v1292 = vpop.xlane.xlu0 %1291
    %v1293 = vsel %vm271, %v1277, 0.0
    %1294 = vadd.xlane.f32.xlu0 %v1293
    %v1295 = vpop.xlane.xlu0 %1294
    %v1296 = vrcp.pop %v1280
    %v1297 = vrcp.pop %v1283
    %v1298 = vrcp.pop %v1286
    %v1299 = vrcp.pop %v1289
    %v1300 = vrcp.pop %v1292
    %v1301 = vrcp.pop %v1295
    %v1302 = vmul.f32 %v1267, %v1296
    %v1303 = vmul.f32 %v1269, %v1297
    %v1304 = vmul.f32 %v1271, %v1298
    %v1305 = vmul.f32 %v1273, %v1299
    %v1306 = vmul.f32 %v1275, %v1300
    %v1307 = vmul.f32 %v1277, %v1301
    %v1308 = vpack.c.bf16 %v1302, %v1302
    %v1309 = vpack.c.bf16 %v1303, %v1303
    %v1310 = vpack.c.bf16 %v1304, %v1304
    %v1311 = vpack.c.bf16 %v1305, %v1305
    %v1312 = vpack.c.bf16 %v1306, %v1306
    %v1313 = vpack.c.bf16 %v1307, %v1307
    %1314 = vrot.lane.b32.xlu0 %v262, 56
    %v1315 = vpop.permute.xlu0 %1314
    %v1317 = vsel %vm271, %v1308, 0
    %v1320 = vsel %vm646, %v1315, 0
    %1322 = vmatprep.subr.bf16.mxu0 0
    %1323 = vmatpush1.bf16.msra.mxu0 0
    %1324 = vmatprep.subr.bf16.mxu0 0
    %1325 = vmatpush1.bf16.msra.mxu0 0
    %1326 = vmatprep.subr.bf16.mxu0 0
    %1327 = vmatpush1.bf16.msra.mxu0 0
    %1328 = vmatprep.subr.bf16.mxu0 0
    %1329 = vmatpush1.bf16.msra.mxu0 0
    %1330 = vmatprep.subr.bf16.mxu0 0
    %1331 = vmatpush1.bf16.msra.mxu0 0
    %1332 = vmatprep.subr.bf16.mxu0 0
    %1333 = vmatpush1.bf16.msra.mxu0 0
    %1334 = vmatprep.subr.bf16.mxu0 0
    %1335 = vmatpush1.bf16.msra.mxu0 0
    %1336 = vmatprep.subr.bf16.mxu0 0
    %1337 = vmatpush1.bf16.msra.mxu0 %v1320
    %1338 = vmatprep.subr.bf16.mxu0 0
    %1339 = vmatpush2.bf16.msra.mxu0 0
    %1340 = vmatprep.subr.bf16.mxu0 0
    %1341 = vmatpush2.bf16.msra.mxu0 0
    %1342 = vmatprep.subr.bf16.mxu0 0
    %1343 = vmatpush2.bf16.msra.mxu0 0
    %1344 = vmatprep.subr.bf16.mxu0 0
    %1345 = vmatpush2.bf16.msra.mxu0 0
    %1346 = vmatprep.subr.bf16.mxu0 0
    %1347 = vmatpush2.bf16.msra.mxu0 0
    %1348 = vmatprep.subr.bf16.mxu0 0
    %1349 = vmatpush2.bf16.msra.mxu0 0
    %1350 = vmatprep.subr.bf16.mxu0 0
    %1351 = vmatpush2.bf16.msra.mxu0 0
    %1352 = vmatprep.subr.bf16.mxu0 0
    %1353 = vmatpush2.bf16.msra.mxu0 0
    %1354 = vmatprep.mubr.bf16.mxu0 0
    %1355 = vmatmul.mubr.bf16.gmra.mxu0 %v1317
    %v1356 = vpop.f32.mrf.mxu0
    %v1357 = vadd.f32 0.0, %v1356
    %v1358 = vpop.f32.mrf.mxu0
    %v1359 = vpop.f32.mrf.mxu0
    %v1360 = vpop.f32.mrf.mxu0
    %1361 = vdwg.mxu0
    %1362 = vrot.lane.b32.xlu0 %v263, 56
    %v1363 = vpop.permute.xlu0 %1362
    %v1365 = vsel %vm271, %v1309, 0
    %v1368 = vsel %vm646, %v1363, 0
    %1370 = vmatprep.subr.bf16.mxu0 0
    %1371 = vmatpush1.bf16.msra.mxu0 0
    %1372 = vmatprep.subr.bf16.mxu0 0
    %1373 = vmatpush1.bf16.msra.mxu0 0
    %1374 = vmatprep.subr.bf16.mxu0 0
    %1375 = vmatpush1.bf16.msra.mxu0 0
    %1376 = vmatprep.subr.bf16.mxu0 0
    %1377 = vmatpush1.bf16.msra.mxu0 0
    %1378 = vmatprep.subr.bf16.mxu0 0
    %1379 = vmatpush1.bf16.msra.mxu0 0
    %1380 = vmatprep.subr.bf16.mxu0 0
    %1381 = vmatpush1.bf16.msra.mxu0 0
    %1382 = vmatprep.subr.bf16.mxu0 0
    %1383 = vmatpush1.bf16.msra.mxu0 0
    %1384 = vmatprep.subr.bf16.mxu0 0
    %1385 = vmatpush1.bf16.msra.mxu0 %v1368
    %1386 = vmatprep.subr.bf16.mxu0 0
    %1387 = vmatpush2.bf16.msra.mxu0 0
    %1388 = vmatprep.subr.bf16.mxu0 0
    %1389 = vmatpush2.bf16.msra.mxu0 0
    %1390 = vmatprep.subr.bf16.mxu0 0
    %1391 = vmatpush2.bf16.msra.mxu0 0
    %1392 = vmatprep.subr.bf16.mxu0 0
    %1393 = vmatpush2.bf16.msra.mxu0 0
    %1394 = vmatprep.subr.bf16.mxu0 0
    %1395 = vmatpush2.bf16.msra.mxu0 0
    %1396 = vmatprep.subr.bf16.mxu0 0
    %1397 = vmatpush2.bf16.msra.mxu0 0
    %1398 = vmatprep.subr.bf16.mxu0 0
    %1399 = vmatpush2.bf16.msra.mxu0 0
    %1400 = vmatprep.subr.bf16.mxu0 0
    %1401 = vmatpush2.bf16.msra.mxu0 0
    %1402 = vmatprep.mubr.bf16.mxu0 0
    %1403 = vmatmul.mubr.bf16.gmra.mxu0 %v1365
    %v1404 = vpop.f32.mrf.mxu0
    %v1405 = vadd.f32 0.0, %v1404
    %v1406 = vpop.f32.mrf.mxu0
    %v1407 = vpop.f32.mrf.mxu0
    %v1408 = vpop.f32.mrf.mxu0
    %1409 = vdwg.mxu0
    %1410 = vrot.lane.b32.xlu0 %v264, 56
    %v1411 = vpop.permute.xlu0 %1410
    %v1413 = vsel %vm271, %v1310, 0
    %v1416 = vsel %vm646, %v1411, 0
    %1418 = vmatprep.subr.bf16.mxu0 0
    %1419 = vmatpush1.bf16.msra.mxu0 0
    %1420 = vmatprep.subr.bf16.mxu0 0
    %1421 = vmatpush1.bf16.msra.mxu0 0
    %1422 = vmatprep.subr.bf16.mxu0 0
    %1423 = vmatpush1.bf16.msra.mxu0 0
    %1424 = vmatprep.subr.bf16.mxu0 0
    %1425 = vmatpush1.bf16.msra.mxu0 0
    %1426 = vmatprep.subr.bf16.mxu0 0
    %1427 = vmatpush1.bf16.msra.mxu0 0
    %1428 = vmatprep.subr.bf16.mxu0 0
    %1429 = vmatpush1.bf16.msra.mxu0 0
    %1430 = vmatprep.subr.bf16.mxu0 0
    %1431 = vmatpush1.bf16.msra.mxu0 0
    %1432 = vmatprep.subr.bf16.mxu0 0
    %1433 = vmatpush1.bf16.msra.mxu0 %v1416
    %1434 = vmatprep.subr.bf16.mxu0 0
    %1435 = vmatpush2.bf16.msra.mxu0 0
    %1436 = vmatprep.subr.bf16.mxu0 0
    %1437 = vmatpush2.bf16.msra.mxu0 0
    %1438 = vmatprep.subr.bf16.mxu0 0
    %1439 = vmatpush2.bf16.msra.mxu0 0
    %1440 = vmatprep.subr.bf16.mxu0 0
    %1441 = vmatpush2.bf16.msra.mxu0 0
    %1442 = vmatprep.subr.bf16.mxu0 0
    %1443 = vmatpush2.bf16.msra.mxu0 0
    %1444 = vmatprep.subr.bf16.mxu0 0
    %1445 = vmatpush2.bf16.msra.mxu0 0
    %1446 = vmatprep.subr.bf16.mxu0 0
    %1447 = vmatpush2.bf16.msra.mxu0 0
    %1448 = vmatprep.subr.bf16.mxu0 0
    %1449 = vmatpush2.bf16.msra.mxu0 0
    %1450 = vmatprep.mubr.bf16.mxu0 0
    %1451 = vmatmul.mubr.bf16.gmra.mxu0 %v1413
    %v1452 = vpop.f32.mrf.mxu0
    %v1453 = vadd.f32 0.0, %v1452
    %v1454 = vpop.f32.mrf.mxu0
    %v1455 = vpop.f32.mrf.mxu0
    %v1456 = vpop.f32.mrf.mxu0
    %1457 = vdwg.mxu0
    %1458 = vrot.lane.b32.xlu0 %v265, 56
    %v1459 = vpop.permute.xlu0 %1458
    %v1461 = vsel %vm271, %v1311, 0
    %v1464 = vsel %vm646, %v1459, 0
    %1466 = vmatprep.subr.bf16.mxu0 0
    %1467 = vmatpush1.bf16.msra.mxu0 0
    %1468 = vmatprep.subr.bf16.mxu0 0
    %1469 = vmatpush1.bf16.msra.mxu0 0
    %1470 = vmatprep.subr.bf16.mxu0 0
    %1471 = vmatpush1.bf16.msra.mxu0 0
    %1472 = vmatprep.subr.bf16.mxu0 0
    %1473 = vmatpush1.bf16.msra.mxu0 0
    %1474 = vmatprep.subr.bf16.mxu0 0
    %1475 = vmatpush1.bf16.msra.mxu0 0
    %1476 = vmatprep.subr.bf16.mxu0 0
    %1477 = vmatpush1.bf16.msra.mxu0 0
    %1478 = vmatprep.subr.bf16.mxu0 0
    %1479 = vmatpush1.bf16.msra.mxu0 0
    %1480 = vmatprep.subr.bf16.mxu0 0
    %1481 = vmatpush1.bf16.msra.mxu0 %v1464
    %1482 = vmatprep.subr.bf16.mxu0 0
    %1483 = vmatpush2.bf16.msra.mxu0 0
    %1484 = vmatprep.subr.bf16.mxu0 0
    %1485 = vmatpush2.bf16.msra.mxu0 0
    %1486 = vmatprep.subr.bf16.mxu0 0
    %1487 = vmatpush2.bf16.msra.mxu0 0
    %1488 = vmatprep.subr.bf16.mxu0 0
    %1489 = vmatpush2.bf16.msra.mxu0 0
    %1490 = vmatprep.subr.bf16.mxu0 0
    %1491 = vmatpush2.bf16.msra.mxu0 0
    %1492 = vmatprep.subr.bf16.mxu0 0
    %1493 = vmatpush2.bf16.msra.mxu0 0
    %1494 = vmatprep.subr.bf16.mxu0 0
    %1495 = vmatpush2.bf16.msra.mxu0 0
    %1496 = vmatprep.subr.bf16.mxu0 0
    %1497 = vmatpush2.bf16.msra.mxu0 0
    %1498 = vmatprep.mubr.bf16.mxu0 0
    %1499 = vmatmul.mubr.bf16.gmra.mxu0 %v1461
    %v1500 = vpop.f32.mrf.mxu0
    %v1501 = vadd.f32 0.0, %v1500
    %v1502 = vpop.f32.mrf.mxu0
    %v1503 = vpop.f32.mrf.mxu0
    %v1504 = vpop.f32.mrf.mxu0
    %1505 = vdwg.mxu0
    %1506 = vrot.lane.b32.xlu0 %v266, 56
    %v1507 = vpop.permute.xlu0 %1506
    %v1509 = vsel %vm271, %v1312, 0
    %v1512 = vsel %vm646, %v1507, 0
    %1514 = vmatprep.subr.bf16.mxu0 0
    %1515 = vmatpush1.bf16.msra.mxu0 0
    %1516 = vmatprep.subr.bf16.mxu0 0
    %1517 = vmatpush1.bf16.msra.mxu0 0
    %1518 = vmatprep.subr.bf16.mxu0 0
    %1519 = vmatpush1.bf16.msra.mxu0 0
    %1520 = vmatprep.subr.bf16.mxu0 0
    %1521 = vmatpush1.bf16.msra.mxu0 0
    %1522 = vmatprep.subr.bf16.mxu0 0
    %1523 = vmatpush1.bf16.msra.mxu0 0
    %1524 = vmatprep.subr.bf16.mxu0 0
    %1525 = vmatpush1.bf16.msra.mxu0 0
    %1526 = vmatprep.subr.bf16.mxu0 0
    %1527 = vmatpush1.bf16.msra.mxu0 0
    %1528 = vmatprep.subr.bf16.mxu0 0
    %1529 = vmatpush1.bf16.msra.mxu0 %v1512
    %1530 = vmatprep.subr.bf16.mxu0 0
    %1531 = vmatpush2.bf16.msra.mxu0 0
    %1532 = vmatprep.subr.bf16.mxu0 0
    %1533 = vmatpush2.bf16.msra.mxu0 0
    %1534 = vmatprep.subr.bf16.mxu0 0
    %1535 = vmatpush2.bf16.msra.mxu0 0
    %1536 = vmatprep.subr.bf16.mxu0 0
    %1537 = vmatpush2.bf16.msra.mxu0 0
    %1538 = vmatprep.subr.bf16.mxu0 0
    %1539 = vmatpush2.bf16.msra.mxu0 0
    %1540 = vmatprep.subr.bf16.mxu0 0
    %1541 = vmatpush2.bf16.msra.mxu0 0
    %1542 = vmatprep.subr.bf16.mxu0 0
    %1543 = vmatpush2.bf16.msra.mxu0 0
    %1544 = vmatprep.subr.bf16.mxu0 0
    %1545 = vmatpush2.bf16.msra.mxu0 0
    %1546 = vmatprep.mubr.bf16.mxu0 0
    %1547 = vmatmul.mubr.bf16.gmra.mxu0 %v1509
    %v1548 = vpop.f32.mrf.mxu0
    %v1549 = vadd.f32 0.0, %v1548
    %v1550 = vpop.f32.mrf.mxu0
    %v1551 = vpop.f32.mrf.mxu0
    %v1552 = vpop.f32.mrf.mxu0
    %1553 = vdwg.mxu0
    %1554 = vrot.lane.b32.xlu0 %v267, 56
    %v1555 = vpop.permute.xlu0 %1554
    %v1557 = vsel %vm271, %v1313, 0
    %v1560 = vsel %vm646, %v1555, 0
    %1562 = vmatprep.subr.bf16.mxu0 0
    %1563 = vmatpush1.bf16.msra.mxu0 0
    %1564 = vmatprep.subr.bf16.mxu0 0
    %1565 = vmatpush1.bf16.msra.mxu0 0
    %1566 = vmatprep.subr.bf16.mxu0 0
    %1567 = vmatpush1.bf16.msra.mxu0 0
    %1568 = vmatprep.subr.bf16.mxu0 0
    %1569 = vmatpush1.bf16.msra.mxu0 0
    %1570 = vmatprep.subr.bf16.mxu0 0
    %1571 = vmatpush1.bf16.msra.mxu0 0
    %1572 = vmatprep.subr.bf16.mxu0 0
    %1573 = vmatpush1.bf16.msra.mxu0 0
    %1574 = vmatprep.subr.bf16.mxu0 0
    %1575 = vmatpush1.bf16.msra.mxu0 0
    %1576 = vmatprep.subr.bf16.mxu0 0
    %1577 = vmatpush1.bf16.msra.mxu0 %v1560
    %1578 = vmatprep.subr.bf16.mxu0 0
    %1579 = vmatpush2.bf16.msra.mxu0 0
    %1580 = vmatprep.subr.bf16.mxu0 0
    %1581 = vmatpush2.bf16.msra.mxu0 0
    %1582 = vmatprep.subr.bf16.mxu0 0
    %1583 = vmatpush2.bf16.msra.mxu0 0
    %1584 = vmatprep.subr.bf16.mxu0 0
    %1585 = vmatpush2.bf16.msra.mxu0 0
    %1586 = vmatprep.subr.bf16.mxu0 0
    %1587 = vmatpush2.bf16.msra.mxu0 0
    %1588 = vmatprep.subr.bf16.mxu0 0
    %1589 = vmatpush2.bf16.msra.mxu0 0
    %1590 = vmatprep.subr.bf16.mxu0 0
    %1591 = vmatpush2.bf16.msra.mxu0 0
    %1592 = vmatprep.subr.bf16.mxu0 0
    %1593 = vmatpush2.bf16.msra.mxu0 0
    %1594 = vmatprep.mubr.bf16.mxu0 0
    %1595 = vmatmul.mubr.bf16.gmra.mxu0 %v1557
    %v1596 = vpop.f32.mrf.mxu0
    %v1597 = vadd.f32 0.0, %v1596
    %v1598 = vpop.f32.mrf.mxu0
    %v1599 = vpop.f32.mrf.mxu0
    %v1600 = vpop.f32.mrf.mxu0
    %1601 = vdwg.mxu0
    %1602 = vrot.lane.b32.xlu0 %v256, 112
    %v1603 = vpop.permute.xlu0 %1602
    %1604 = vrot.lane.b32.xlu0 %v262, 80
    %v1605 = vpop.permute.xlu0 %1604
    %v1607 = vsel %vm271, %v1603, 0
    %v1610 = vsel %vm271, %v1605, 0
    %1612 = vmatprep.subr.bf16.mxu0 0
    %1613 = vmatpush1.bf16.xpose.msra.mxu0 0
    %1614 = vmatprep.subr.bf16.mxu0 0
    %1615 = vmatpush1.bf16.xpose.msra.mxu0 0
    %1616 = vmatprep.subr.bf16.mxu0 0
    %1617 = vmatpush1.bf16.xpose.msra.mxu0 0
    %1618 = vmatprep.subr.bf16.mxu0 0
    %1619 = vmatpush1.bf16.xpose.msra.mxu0 0
    %1620 = vmatprep.subr.bf16.mxu0 0
    %1621 = vmatpush1.bf16.xpose.msra.mxu0 0
    %1622 = vmatprep.subr.bf16.mxu0 0
    %1623 = vmatpush1.bf16.xpose.msra.mxu0 0
    %1624 = vmatprep.subr.bf16.mxu0 0
    %1625 = vmatpush1.bf16.xpose.msra.mxu0 0
    %1626 = vmatprep.subr.bf16.mxu0 0
    %1627 = vmatpush1.bf16.xpose.msra.mxu0 %v1610
    %1628 = vmatprep.subr.bf16.mxu0 0
    %1629 = vmatpush2.bf16.xpose.msra.mxu0 0
    %1630 = vmatprep.subr.bf16.mxu0 0
    %1631 = vmatpush2.bf16.xpose.msra.mxu0 0
    %1632 = vmatprep.subr.bf16.mxu0 0
    %1633 = vmatpush2.bf16.xpose.msra.mxu0 0
    %1634 = vmatprep.subr.bf16.mxu0 0
    %1635 = vmatpush2.bf16.xpose.msra.mxu0 0
    %1636 = vmatprep.subr.bf16.mxu0 0
    %1637 = vmatpush2.bf16.xpose.msra.mxu0 0
    %1638 = vmatprep.subr.bf16.mxu0 0
    %1639 = vmatpush2.bf16.xpose.msra.mxu0 0
    %1640 = vmatprep.subr.bf16.mxu0 0
    %1641 = vmatpush2.bf16.xpose.msra.mxu0 0
    %1642 = vmatprep.subr.bf16.mxu0 0
    %1643 = vmatpush2.bf16.xpose.msra.mxu0 0
    %1644 = vmatprep.mubr.bf16.mxu0 0
    %1645 = vmatmul.mubr.bf16.gmra.mxu0 %v1607
    %v1646 = vpop.f32.mrf.mxu0
    %v1647 = vadd.f32 0.0, %v1646
    %v1648 = vpop.f32.mrf.mxu0
    %v1649 = vpop.f32.mrf.mxu0
    %v1650 = vpop.f32.mrf.mxu0
    %1651 = vdwg.mxu0
    %1652 = vrot.lane.b32.xlu0 %v257, 112
    %v1653 = vpop.permute.xlu0 %1652
    %1654 = vrot.lane.b32.xlu0 %v263, 80
    %v1655 = vpop.permute.xlu0 %1654
    %v1657 = vsel %vm271, %v1653, 0
    %v1660 = vsel %vm271, %v1655, 0
    %1662 = vmatprep.subr.bf16.mxu0 0
    %1663 = vmatpush1.bf16.xpose.msra.mxu0 0
    %1664 = vmatprep.subr.bf16.mxu0 0
    %1665 = vmatpush1.bf16.xpose.msra.mxu0 0
    %1666 = vmatprep.subr.bf16.mxu0 0
    %1667 = vmatpush1.bf16.xpose.msra.mxu0 0
    %1668 = vmatprep.subr.bf16.mxu0 0
    %1669 = vmatpush1.bf16.xpose.msra.mxu0 0
    %1670 = vmatprep.subr.bf16.mxu0 0
    %1671 = vmatpush1.bf16.xpose.msra.mxu0 0
    %1672 = vmatprep.subr.bf16.mxu0 0
    %1673 = vmatpush1.bf16.xpose.msra.mxu0 0
    %1674 = vmatprep.subr.bf16.mxu0 0
    %1675 = vmatpush1.bf16.xpose.msra.mxu0 0
    %1676 = vmatprep.subr.bf16.mxu0 0
    %1677 = vmatpush1.bf16.xpose.msra.mxu0 %v1660
    %1678 = vmatprep.subr.bf16.mxu0 0
    %1679 = vmatpush2.bf16.xpose.msra.mxu0 0
    %1680 = vmatprep.subr.bf16.mxu0 0
    %1681 = vmatpush2.bf16.xpose.msra.mxu0 0
    %1682 = vmatprep.subr.bf16.mxu0 0
    %1683 = vmatpush2.bf16.xpose.msra.mxu0 0
    %1684 = vmatprep.subr.bf16.mxu0 0
    %1685 = vmatpush2.bf16.xpose.msra.mxu0 0
    %1686 = vmatprep.subr.bf16.mxu0 0
    %1687 = vmatpush2.bf16.xpose.msra.mxu0 0
    %1688 = vmatprep.subr.bf16.mxu0 0
    %1689 = vmatpush2.bf16.xpose.msra.mxu0 0
    %1690 = vmatprep.subr.bf16.mxu0 0
    %1691 = vmatpush2.bf16.xpose.msra.mxu0 0
    %1692 = vmatprep.subr.bf16.mxu0 0
    %1693 = vmatpush2.bf16.xpose.msra.mxu0 0
    %1694 = vmatprep.mubr.bf16.mxu0 0
    %1695 = vmatmul.mubr.bf16.gmra.mxu0 %v1657
    %v1696 = vpop.f32.mrf.mxu0
    %v1697 = vadd.f32 0.0, %v1696
    %v1698 = vpop.f32.mrf.mxu0
    %v1699 = vpop.f32.mrf.mxu0
    %v1700 = vpop.f32.mrf.mxu0
    %1701 = vdwg.mxu0
    %1702 = vrot.lane.b32.xlu0 %v258, 112
    %v1703 = vpop.permute.xlu0 %1702
    %1704 = vrot.lane.b32.xlu0 %v264, 80
    %v1705 = vpop.permute.xlu0 %1704
    %v1707 = vsel %vm271, %v1703, 0
    %v1710 = vsel %vm271, %v1705, 0
    %1712 = vmatprep.subr.bf16.mxu0 0
    %1713 = vmatpush1.bf16.xpose.msra.mxu0 0
    %1714 = vmatprep.subr.bf16.mxu0 0
    %1715 = vmatpush1.bf16.xpose.msra.mxu0 0
    %1716 = vmatprep.subr.bf16.mxu0 0
    %1717 = vmatpush1.bf16.xpose.msra.mxu0 0
    %1718 = vmatprep.subr.bf16.mxu0 0
    %1719 = vmatpush1.bf16.xpose.msra.mxu0 0
    %1720 = vmatprep.subr.bf16.mxu0 0
    %1721 = vmatpush1.bf16.xpose.msra.mxu0 0
    %1722 = vmatprep.subr.bf16.mxu0 0
    %1723 = vmatpush1.bf16.xpose.msra.mxu0 0
    %1724 = vmatprep.subr.bf16.mxu0 0
    %1725 = vmatpush1.bf16.xpose.msra.mxu0 0
    %1726 = vmatprep.subr.bf16.mxu0 0
    %1727 = vmatpush1.bf16.xpose.msra.mxu0 %v1710
    %1728 = vmatprep.subr.bf16.mxu0 0
    %1729 = vmatpush2.bf16.xpose.msra.mxu0 0
    %1730 = vmatprep.subr.bf16.mxu0 0
    %1731 = vmatpush2.bf16.xpose.msra.mxu0 0
    %1732 = vmatprep.subr.bf16.mxu0 0
    %1733 = vmatpush2.bf16.xpose.msra.mxu0 0
    %1734 = vmatprep.subr.bf16.mxu0 0
    %1735 = vmatpush2.bf16.xpose.msra.mxu0 0
    %1736 = vmatprep.subr.bf16.mxu0 0
    %1737 = vmatpush2.bf16.xpose.msra.mxu0 0
    %1738 = vmatprep.subr.bf16.mxu0 0
    %1739 = vmatpush2.bf16.xpose.msra.mxu0 0
    %1740 = vmatprep.subr.bf16.mxu0 0
    %1741 = vmatpush2.bf16.xpose.msra.mxu0 0
    %1742 = vmatprep.subr.bf16.mxu0 0
    %1743 = vmatpush2.bf16.xpose.msra.mxu0 0
    %1744 = vmatprep.mubr.bf16.mxu0 0
    %1745 = vmatmul.mubr.bf16.gmra.mxu0 %v1707
    %v1746 = vpop.f32.mrf.mxu0
    %v1747 = vadd.f32 0.0, %v1746
    %v1748 = vpop.f32.mrf.mxu0
    %v1749 = vpop.f32.mrf.mxu0
    %v1750 = vpop.f32.mrf.mxu0
    %1751 = vdwg.mxu0
    %1752 = vrot.lane.b32.xlu0 %v259, 112
    %v1753 = vpop.permute.xlu0 %1752
    %1754 = vrot.lane.b32.xlu0 %v265, 80
    %v1755 = vpop.permute.xlu0 %1754
    %v1757 = vsel %vm271, %v1753, 0
    %v1760 = vsel %vm271, %v1755, 0
    %1762 = vmatprep.subr.bf16.mxu0 0
    %1763 = vmatpush1.bf16.xpose.msra.mxu0 0
    %1764 = vmatprep.subr.bf16.mxu0 0
    %1765 = vmatpush1.bf16.xpose.msra.mxu0 0
    %1766 = vmatprep.subr.bf16.mxu0 0
    %1767 = vmatpush1.bf16.xpose.msra.mxu0 0
    %1768 = vmatprep.subr.bf16.mxu0 0
    %1769 = vmatpush1.bf16.xpose.msra.mxu0 0
    %1770 = vmatprep.subr.bf16.mxu0 0
    %1771 = vmatpush1.bf16.xpose.msra.mxu0 0
    %1772 = vmatprep.subr.bf16.mxu0 0
    %1773 = vmatpush1.bf16.xpose.msra.mxu0 0
    %1774 = vmatprep.subr.bf16.mxu0 0
    %1775 = vmatpush1.bf16.xpose.msra.mxu0 0
    %1776 = vmatprep.subr.bf16.mxu0 0
    %1777 = vmatpush1.bf16.xpose.msra.mxu0 %v1760
    %1778 = vmatprep.subr.bf16.mxu0 0
    %1779 = vmatpush2.bf16.xpose.msra.mxu0 0
    %1780 = vmatprep.subr.bf16.mxu0 0
    %1781 = vmatpush2.bf16.xpose.msra.mxu0 0
    %1782 = vmatprep.subr.bf16.mxu0 0
    %1783 = vmatpush2.bf16.xpose.msra.mxu0 0
    %1784 = vmatprep.subr.bf16.mxu0 0
    %1785 = vmatpush2.bf16.xpose.msra.mxu0 0
    %1786 = vmatprep.subr.bf16.mxu0 0
    %1787 = vmatpush2.bf16.xpose.msra.mxu0 0
    %1788 = vmatprep.subr.bf16.mxu0 0
    %1789 = vmatpush2.bf16.xpose.msra.mxu0 0
    %1790 = vmatprep.subr.bf16.mxu0 0
    %1791 = vmatpush2.bf16.xpose.msra.mxu0 0
    %1792 = vmatprep.subr.bf16.mxu0 0
    %1793 = vmatpush2.bf16.xpose.msra.mxu0 0
    %1794 = vmatprep.mubr.bf16.mxu0 0
    %1795 = vmatmul.mubr.bf16.gmra.mxu0 %v1757
    %v1796 = vpop.f32.mrf.mxu0
    %v1797 = vadd.f32 0.0, %v1796
    %v1798 = vpop.f32.mrf.mxu0
    %v1799 = vpop.f32.mrf.mxu0
    %v1800 = vpop.f32.mrf.mxu0
    %1801 = vdwg.mxu0
    %1802 = vrot.lane.b32.xlu0 %v260, 112
    %v1803 = vpop.permute.xlu0 %1802
    %1804 = vrot.lane.b32.xlu0 %v266, 80
    %v1805 = vpop.permute.xlu0 %1804
    %v1807 = vsel %vm271, %v1803, 0
    %v1810 = vsel %vm271, %v1805, 0
    %1812 = vmatprep.subr.bf16.mxu0 0
    %1813 = vmatpush1.bf16.xpose.msra.mxu0 0
    %1814 = vmatprep.subr.bf16.mxu0 0
    %1815 = vmatpush1.bf16.xpose.msra.mxu0 0
    %1816 = vmatprep.subr.bf16.mxu0 0
    %1817 = vmatpush1.bf16.xpose.msra.mxu0 0
    %1818 = vmatprep.subr.bf16.mxu0 0
    %1819 = vmatpush1.bf16.xpose.msra.mxu0 0
    %1820 = vmatprep.subr.bf16.mxu0 0
    %1821 = vmatpush1.bf16.xpose.msra.mxu0 0
    %1822 = vmatprep.subr.bf16.mxu0 0
    %1823 = vmatpush1.bf16.xpose.msra.mxu0 0
    %1824 = vmatprep.subr.bf16.mxu0 0
    %1825 = vmatpush1.bf16.xpose.msra.mxu0 0
    %1826 = vmatprep.subr.bf16.mxu0 0
    %1827 = vmatpush1.bf16.xpose.msra.mxu0 %v1810
    %1828 = vmatprep.subr.bf16.mxu0 0
    %1829 = vmatpush2.bf16.xpose.msra.mxu0 0
    %1830 = vmatprep.subr.bf16.mxu0 0
    %1831 = vmatpush2.bf16.xpose.msra.mxu0 0
    %1832 = vmatprep.subr.bf16.mxu0 0
    %1833 = vmatpush2.bf16.xpose.msra.mxu0 0
    %1834 = vmatprep.subr.bf16.mxu0 0
    %1835 = vmatpush2.bf16.xpose.msra.mxu0 0
    %1836 = vmatprep.subr.bf16.mxu0 0
    %1837 = vmatpush2.bf16.xpose.msra.mxu0 0
    %1838 = vmatprep.subr.bf16.mxu0 0
    %1839 = vmatpush2.bf16.xpose.msra.mxu0 0
    %1840 = vmatprep.subr.bf16.mxu0 0
    %1841 = vmatpush2.bf16.xpose.msra.mxu0 0
    %1842 = vmatprep.subr.bf16.mxu0 0
    %1843 = vmatpush2.bf16.xpose.msra.mxu0 0
    %1844 = vmatprep.mubr.bf16.mxu0 0
    %1845 = vmatmul.mubr.bf16.gmra.mxu0 %v1807
    %v1846 = vpop.f32.mrf.mxu0
    %v1847 = vadd.f32 0.0, %v1846
    %v1848 = vpop.f32.mrf.mxu0
    %v1849 = vpop.f32.mrf.mxu0
    %v1850 = vpop.f32.mrf.mxu0
    %1851 = vdwg.mxu0
    %1852 = vrot.lane.b32.xlu0 %v261, 112
    %v1853 = vpop.permute.xlu0 %1852
    %1854 = vrot.lane.b32.xlu0 %v267, 80
    %v1855 = vpop.permute.xlu0 %1854
    %v1857 = vsel %vm271, %v1853, 0
    %v1860 = vsel %vm271, %v1855, 0
    %1862 = vmatprep.subr.bf16.mxu0 0
    %1863 = vmatpush1.bf16.xpose.msra.mxu0 0
    %1864 = vmatprep.subr.bf16.mxu0 0
    %1865 = vmatpush1.bf16.xpose.msra.mxu0 0
    %1866 = vmatprep.subr.bf16.mxu0 0
    %1867 = vmatpush1.bf16.xpose.msra.mxu0 0
    %1868 = vmatprep.subr.bf16.mxu0 0
    %1869 = vmatpush1.bf16.xpose.msra.mxu0 0
    %1870 = vmatprep.subr.bf16.mxu0 0
    %1871 = vmatpush1.bf16.xpose.msra.mxu0 0
    %1872 = vmatprep.subr.bf16.mxu0 0
    %1873 = vmatpush1.bf16.xpose.msra.mxu0 0
    %1874 = vmatprep.subr.bf16.mxu0 0
    %1875 = vmatpush1.bf16.xpose.msra.mxu0 0
    %1876 = vmatprep.subr.bf16.mxu0 0
    %1877 = vmatpush1.bf16.xpose.msra.mxu0 %v1860
    %1878 = vmatprep.subr.bf16.mxu0 0
    %1879 = vmatpush2.bf16.xpose.msra.mxu0 0
    %1880 = vmatprep.subr.bf16.mxu0 0
    %1881 = vmatpush2.bf16.xpose.msra.mxu0 0
    %1882 = vmatprep.subr.bf16.mxu0 0
    %1883 = vmatpush2.bf16.xpose.msra.mxu0 0
    %1884 = vmatprep.subr.bf16.mxu0 0
    %1885 = vmatpush2.bf16.xpose.msra.mxu0 0
    %1886 = vmatprep.subr.bf16.mxu0 0
    %1887 = vmatpush2.bf16.xpose.msra.mxu0 0
    %1888 = vmatprep.subr.bf16.mxu0 0
    %1889 = vmatpush2.bf16.xpose.msra.mxu0 0
    %1890 = vmatprep.subr.bf16.mxu0 0
    %1891 = vmatpush2.bf16.xpose.msra.mxu0 0
    %1892 = vmatprep.subr.bf16.mxu0 0
    %1893 = vmatpush2.bf16.xpose.msra.mxu0 0
    %1894 = vmatprep.mubr.bf16.mxu0 0
    %1895 = vmatmul.mubr.bf16.gmra.mxu0 %v1857
    %v1896 = vpop.f32.mrf.mxu0
    %v1897 = vadd.f32 0.0, %v1896
    %v1898 = vpop.f32.mrf.mxu0
    %v1899 = vpop.f32.mrf.mxu0
    %v1900 = vpop.f32.mrf.mxu0
    %1901 = vdwg.mxu0
    %v1902 = vmul.f32 %v1647, 0.35355338
    %v1903 = vmul.f32 %v1697, 0.35355338
    %v1904 = vmul.f32 %v1747, 0.35355338
    %v1905 = vmul.f32 %v1797, 0.35355338
    %v1906 = vmul.f32 %v1847, 0.35355338
    %v1907 = vmul.f32 %v1897, 0.35355338
    %v1908 = vsel %vm271, %v1902, -inf
    %1909 = vmax.xlane.f32.xlu0 %v1908
    %v1910 = vpop.xlane.xlu0 %1909
    %v1911 = vsel %vm271, %v1903, -inf
    %1912 = vmax.xlane.f32.xlu0 %v1911
    %v1913 = vpop.xlane.xlu0 %1912
    %v1914 = vsel %vm271, %v1904, -inf
    %1915 = vmax.xlane.f32.xlu0 %v1914
    %v1916 = vpop.xlane.xlu0 %1915
    %v1917 = vsel %vm271, %v1905, -inf
    %1918 = vmax.xlane.f32.xlu0 %v1917
    %v1919 = vpop.xlane.xlu0 %1918
    %v1920 = vsel %vm271, %v1906, -inf
    %1921 = vmax.xlane.f32.xlu0 %v1920
    %v1922 = vpop.xlane.xlu0 %1921
    %v1923 = vsel %vm271, %v1907, -inf
    %1924 = vmax.xlane.f32.xlu0 %v1923
    %v1925 = vpop.xlane.xlu0 %1924
    %v1926 = vsub.f32 %v1902, %v1910
    %v1927 = vsub.f32 %v1903, %v1913
    %v1928 = vsub.f32 %v1904, %v1916
    %v1929 = vsub.f32 %v1905, %v1919
    %v1930 = vsub.f32 %v1906, %v1922
    %v1931 = vsub.f32 %v1907, %v1925
    %v1932 = vmul.f32 %v1926, 1.442695
    %v1933 = vpow.pop %v1932
    %v1934 = vmul.f32 %v1927, 1.442695
    %v1935 = vpow.pop %v1934
    %v1936 = vmul.f32 %v1928, 1.442695
    %v1937 = vpow.pop %v1936
    %v1938 = vmul.f32 %v1929, 1.442695
    %v1939 = vpow.pop %v1938
    %v1940 = vmul.f32 %v1930, 1.442695
    %v1941 = vpow.pop %v1940
    %v1942 = vmul.f32 %v1931, 1.442695
    %v1943 = vpow.pop %v1942
    %v1944 = vsel %vm271, %v1933, 0.0
    %1945 = vadd.xlane.f32.xlu0 %v1944
    %v1946 = vpop.xlane.xlu0 %1945
    %v1947 = vsel %vm271, %v1935, 0.0
    %1948 = vadd.xlane.f32.xlu0 %v1947
    %v1949 = vpop.xlane.xlu0 %1948
    %v1950 = vsel %vm271, %v1937, 0.0
    %1951 = vadd.xlane.f32.xlu0 %v1950
    %v1952 = vpop.xlane.xlu0 %1951
    %v1953 = vsel %vm271, %v1939, 0.0
    %1954 = vadd.xlane.f32.xlu0 %v1953
    %v1955 = vpop.xlane.xlu0 %1954
    %v1956 = vsel %vm271, %v1941, 0.0
    %1957 = vadd.xlane.f32.xlu0 %v1956
    %v1958 = vpop.xlane.xlu0 %1957
    %v1959 = vsel %vm271, %v1943, 0.0
    %1960 = vadd.xlane.f32.xlu0 %v1959
    %v1961 = vpop.xlane.xlu0 %1960
    %v1962 = vrcp.pop %v1946
    %v1963 = vrcp.pop %v1949
    %v1964 = vrcp.pop %v1952
    %v1965 = vrcp.pop %v1955
    %v1966 = vrcp.pop %v1958
    %v1967 = vrcp.pop %v1961
    %v1968 = vmul.f32 %v1933, %v1962
    %v1969 = vmul.f32 %v1935, %v1963
    %v1970 = vmul.f32 %v1937, %v1964
    %v1971 = vmul.f32 %v1939, %v1965
    %v1972 = vmul.f32 %v1941, %v1966
    %v1973 = vmul.f32 %v1943, %v1967
    %v1974 = vpack.c.bf16 %v1968, %v1968
    %v1975 = vpack.c.bf16 %v1969, %v1969
    %v1976 = vpack.c.bf16 %v1970, %v1970
    %v1977 = vpack.c.bf16 %v1971, %v1971
    %v1978 = vpack.c.bf16 %v1972, %v1972
    %v1979 = vpack.c.bf16 %v1973, %v1973
    %1980 = vrot.lane.b32.xlu0 %v262, 48
    %v1981 = vpop.permute.xlu0 %1980
    %v1983 = vsel %vm271, %v1974, 0
    %v1986 = vsel %vm646, %v1981, 0
    %1988 = vmatprep.subr.bf16.mxu0 0
    %1989 = vmatpush1.bf16.msra.mxu0 0
    %1990 = vmatprep.subr.bf16.mxu0 0
    %1991 = vmatpush1.bf16.msra.mxu0 0
    %1992 = vmatprep.subr.bf16.mxu0 0
    %1993 = vmatpush1.bf16.msra.mxu0 0
    %1994 = vmatprep.subr.bf16.mxu0 0
    %1995 = vmatpush1.bf16.msra.mxu0 0
    %1996 = vmatprep.subr.bf16.mxu0 0
    %1997 = vmatpush1.bf16.msra.mxu0 0
    %1998 = vmatprep.subr.bf16.mxu0 0
    %1999 = vmatpush1.bf16.msra.mxu0 0
    %2000 = vmatprep.subr.bf16.mxu0 0
    %2001 = vmatpush1.bf16.msra.mxu0 0
    %2002 = vmatprep.subr.bf16.mxu0 0
    %2003 = vmatpush1.bf16.msra.mxu0 %v1986
    %2004 = vmatprep.subr.bf16.mxu0 0
    %2005 = vmatpush2.bf16.msra.mxu0 0
    %2006 = vmatprep.subr.bf16.mxu0 0
    %2007 = vmatpush2.bf16.msra.mxu0 0
    %2008 = vmatprep.subr.bf16.mxu0 0
    %2009 = vmatpush2.bf16.msra.mxu0 0
    %2010 = vmatprep.subr.bf16.mxu0 0
    %2011 = vmatpush2.bf16.msra.mxu0 0
    %2012 = vmatprep.subr.bf16.mxu0 0
    %2013 = vmatpush2.bf16.msra.mxu0 0
    %2014 = vmatprep.subr.bf16.mxu0 0
    %2015 = vmatpush2.bf16.msra.mxu0 0
    %2016 = vmatprep.subr.bf16.mxu0 0
    %2017 = vmatpush2.bf16.msra.mxu0 0
    %2018 = vmatprep.subr.bf16.mxu0 0
    %2019 = vmatpush2.bf16.msra.mxu0 0
    %2020 = vmatprep.mubr.bf16.mxu0 0
    %2021 = vmatmul.mubr.bf16.gmra.mxu0 %v1983
    %v2022 = vpop.f32.mrf.mxu0
    %v2023 = vadd.f32 0.0, %v2022
    %v2024 = vpop.f32.mrf.mxu0
    %v2025 = vpop.f32.mrf.mxu0
    %v2026 = vpop.f32.mrf.mxu0
    %2027 = vdwg.mxu0
    %2028 = vrot.lane.b32.xlu0 %v263, 48
    %v2029 = vpop.permute.xlu0 %2028
    %v2031 = vsel %vm271, %v1975, 0
    %v2034 = vsel %vm646, %v2029, 0
    %2036 = vmatprep.subr.bf16.mxu0 0
    %2037 = vmatpush1.bf16.msra.mxu0 0
    %2038 = vmatprep.subr.bf16.mxu0 0
    %2039 = vmatpush1.bf16.msra.mxu0 0
    %2040 = vmatprep.subr.bf16.mxu0 0
    %2041 = vmatpush1.bf16.msra.mxu0 0
    %2042 = vmatprep.subr.bf16.mxu0 0
    %2043 = vmatpush1.bf16.msra.mxu0 0
    %2044 = vmatprep.subr.bf16.mxu0 0
    %2045 = vmatpush1.bf16.msra.mxu0 0
    %2046 = vmatprep.subr.bf16.mxu0 0
    %2047 = vmatpush1.bf16.msra.mxu0 0
    %2048 = vmatprep.subr.bf16.mxu0 0
    %2049 = vmatpush1.bf16.msra.mxu0 0
    %2050 = vmatprep.subr.bf16.mxu0 0
    %2051 = vmatpush1.bf16.msra.mxu0 %v2034
    %2052 = vmatprep.subr.bf16.mxu0 0
    %2053 = vmatpush2.bf16.msra.mxu0 0
    %2054 = vmatprep.subr.bf16.mxu0 0
    %2055 = vmatpush2.bf16.msra.mxu0 0
    %2056 = vmatprep.subr.bf16.mxu0 0
    %2057 = vmatpush2.bf16.msra.mxu0 0
    %2058 = vmatprep.subr.bf16.mxu0 0
    %2059 = vmatpush2.bf16.msra.mxu0 0
    %2060 = vmatprep.subr.bf16.mxu0 0
    %2061 = vmatpush2.bf16.msra.mxu0 0
    %2062 = vmatprep.subr.bf16.mxu0 0
    %2063 = vmatpush2.bf16.msra.mxu0 0
    %2064 = vmatprep.subr.bf16.mxu0 0
    %2065 = vmatpush2.bf16.msra.mxu0 0
    %2066 = vmatprep.subr.bf16.mxu0 0
    %2067 = vmatpush2.bf16.msra.mxu0 0
    %2068 = vmatprep.mubr.bf16.mxu0 0
    %2069 = vmatmul.mubr.bf16.gmra.mxu0 %v2031
    %v2070 = vpop.f32.mrf.mxu0
    %v2071 = vadd.f32 0.0, %v2070
    %v2072 = vpop.f32.mrf.mxu0
    %v2073 = vpop.f32.mrf.mxu0
    %v2074 = vpop.f32.mrf.mxu0
    %2075 = vdwg.mxu0
    %2076 = vrot.lane.b32.xlu0 %v264, 48
    %v2077 = vpop.permute.xlu0 %2076
    %v2079 = vsel %vm271, %v1976, 0
    %v2082 = vsel %vm646, %v2077, 0
    %2084 = vmatprep.subr.bf16.mxu0 0
    %2085 = vmatpush1.bf16.msra.mxu0 0
    %2086 = vmatprep.subr.bf16.mxu0 0
    %2087 = vmatpush1.bf16.msra.mxu0 0
    %2088 = vmatprep.subr.bf16.mxu0 0
    %2089 = vmatpush1.bf16.msra.mxu0 0
    %2090 = vmatprep.subr.bf16.mxu0 0
    %2091 = vmatpush1.bf16.msra.mxu0 0
    %2092 = vmatprep.subr.bf16.mxu0 0
    %2093 = vmatpush1.bf16.msra.mxu0 0
    %2094 = vmatprep.subr.bf16.mxu0 0
    %2095 = vmatpush1.bf16.msra.mxu0 0
    %2096 = vmatprep.subr.bf16.mxu0 0
    %2097 = vmatpush1.bf16.msra.mxu0 0
    %2098 = vmatprep.subr.bf16.mxu0 0
    %2099 = vmatpush1.bf16.msra.mxu0 %v2082
    %2100 = vmatprep.subr.bf16.mxu0 0
    %2101 = vmatpush2.bf16.msra.mxu0 0
    %2102 = vmatprep.subr.bf16.mxu0 0
    %2103 = vmatpush2.bf16.msra.mxu0 0
    %2104 = vmatprep.subr.bf16.mxu0 0
    %2105 = vmatpush2.bf16.msra.mxu0 0
    %2106 = vmatprep.subr.bf16.mxu0 0
    %2107 = vmatpush2.bf16.msra.mxu0 0
    %2108 = vmatprep.subr.bf16.mxu0 0
    %2109 = vmatpush2.bf16.msra.mxu0 0
    %2110 = vmatprep.subr.bf16.mxu0 0
    %2111 = vmatpush2.bf16.msra.mxu0 0
    %2112 = vmatprep.subr.bf16.mxu0 0
    %2113 = vmatpush2.bf16.msra.mxu0 0
    %2114 = vmatprep.subr.bf16.mxu0 0
    %2115 = vmatpush2.bf16.msra.mxu0 0
    %2116 = vmatprep.mubr.bf16.mxu0 0
    %2117 = vmatmul.mubr.bf16.gmra.mxu0 %v2079
    %v2118 = vpop.f32.mrf.mxu0
    %v2119 = vadd.f32 0.0, %v2118
    %v2120 = vpop.f32.mrf.mxu0
    %v2121 = vpop.f32.mrf.mxu0
    %v2122 = vpop.f32.mrf.mxu0
    %2123 = vdwg.mxu0
    %2124 = vrot.lane.b32.xlu0 %v265, 48
    %v2125 = vpop.permute.xlu0 %2124
    %v2127 = vsel %vm271, %v1977, 0
    %v2130 = vsel %vm646, %v2125, 0
    %2132 = vmatprep.subr.bf16.mxu0 0
    %2133 = vmatpush1.bf16.msra.mxu0 0
    %2134 = vmatprep.subr.bf16.mxu0 0
    %2135 = vmatpush1.bf16.msra.mxu0 0
    %2136 = vmatprep.subr.bf16.mxu0 0
    %2137 = vmatpush1.bf16.msra.mxu0 0
    %2138 = vmatprep.subr.bf16.mxu0 0
    %2139 = vmatpush1.bf16.msra.mxu0 0
    %2140 = vmatprep.subr.bf16.mxu0 0
    %2141 = vmatpush1.bf16.msra.mxu0 0
    %2142 = vmatprep.subr.bf16.mxu0 0
    %2143 = vmatpush1.bf16.msra.mxu0 0
    %2144 = vmatprep.subr.bf16.mxu0 0
    %2145 = vmatpush1.bf16.msra.mxu0 0
    %2146 = vmatprep.subr.bf16.mxu0 0
    %2147 = vmatpush1.bf16.msra.mxu0 %v2130
    %2148 = vmatprep.subr.bf16.mxu0 0
    %2149 = vmatpush2.bf16.msra.mxu0 0
    %2150 = vmatprep.subr.bf16.mxu0 0
    %2151 = vmatpush2.bf16.msra.mxu0 0
    %2152 = vmatprep.subr.bf16.mxu0 0
    %2153 = vmatpush2.bf16.msra.mxu0 0
    %2154 = vmatprep.subr.bf16.mxu0 0
    %2155 = vmatpush2.bf16.msra.mxu0 0
    %2156 = vmatprep.subr.bf16.mxu0 0
    %2157 = vmatpush2.bf16.msra.mxu0 0
    %2158 = vmatprep.subr.bf16.mxu0 0
    %2159 = vmatpush2.bf16.msra.mxu0 0
    %2160 = vmatprep.subr.bf16.mxu0 0
    %2161 = vmatpush2.bf16.msra.mxu0 0
    %2162 = vmatprep.subr.bf16.mxu0 0
    %2163 = vmatpush2.bf16.msra.mxu0 0
    %2164 = vmatprep.mubr.bf16.mxu0 0
    %2165 = vmatmul.mubr.bf16.gmra.mxu0 %v2127
    %v2166 = vpop.f32.mrf.mxu0
    %v2167 = vadd.f32 0.0, %v2166
    %v2168 = vpop.f32.mrf.mxu0
    %v2169 = vpop.f32.mrf.mxu0
    %v2170 = vpop.f32.mrf.mxu0
    %2171 = vdwg.mxu0
    %2172 = vrot.lane.b32.xlu0 %v266, 48
    %v2173 = vpop.permute.xlu0 %2172
    %v2175 = vsel %vm271, %v1978, 0
    %v2178 = vsel %vm646, %v2173, 0
    %2180 = vmatprep.subr.bf16.mxu0 0
    %2181 = vmatpush1.bf16.msra.mxu0 0
    %2182 = vmatprep.subr.bf16.mxu0 0
    %2183 = vmatpush1.bf16.msra.mxu0 0
    %2184 = vmatprep.subr.bf16.mxu0 0
    %2185 = vmatpush1.bf16.msra.mxu0 0
    %2186 = vmatprep.subr.bf16.mxu0 0
    %2187 = vmatpush1.bf16.msra.mxu0 0
    %2188 = vmatprep.subr.bf16.mxu0 0
    %2189 = vmatpush1.bf16.msra.mxu0 0
    %2190 = vmatprep.subr.bf16.mxu0 0
    %2191 = vmatpush1.bf16.msra.mxu0 0
    %2192 = vmatprep.subr.bf16.mxu0 0
    %2193 = vmatpush1.bf16.msra.mxu0 0
    %2194 = vmatprep.subr.bf16.mxu0 0
    %2195 = vmatpush1.bf16.msra.mxu0 %v2178
    %2196 = vmatprep.subr.bf16.mxu0 0
    %2197 = vmatpush2.bf16.msra.mxu0 0
    %2198 = vmatprep.subr.bf16.mxu0 0
    %2199 = vmatpush2.bf16.msra.mxu0 0
    %2200 = vmatprep.subr.bf16.mxu0 0
    %2201 = vmatpush2.bf16.msra.mxu0 0
    %2202 = vmatprep.subr.bf16.mxu0 0
    %2203 = vmatpush2.bf16.msra.mxu0 0
    %2204 = vmatprep.subr.bf16.mxu0 0
    %2205 = vmatpush2.bf16.msra.mxu0 0
    %2206 = vmatprep.subr.bf16.mxu0 0
    %2207 = vmatpush2.bf16.msra.mxu0 0
    %2208 = vmatprep.subr.bf16.mxu0 0
    %2209 = vmatpush2.bf16.msra.mxu0 0
    %2210 = vmatprep.subr.bf16.mxu0 0
    %2211 = vmatpush2.bf16.msra.mxu0 0
    %2212 = vmatprep.mubr.bf16.mxu0 0
    %2213 = vmatmul.mubr.bf16.gmra.mxu0 %v2175
    %v2214 = vpop.f32.mrf.mxu0
    %v2215 = vadd.f32 0.0, %v2214
    %v2216 = vpop.f32.mrf.mxu0
    %v2217 = vpop.f32.mrf.mxu0
    %v2218 = vpop.f32.mrf.mxu0
    %2219 = vdwg.mxu0
    %2220 = vrot.lane.b32.xlu0 %v267, 48
    %v2221 = vpop.permute.xlu0 %2220
    %v2223 = vsel %vm271, %v1979, 0
    %v2226 = vsel %vm646, %v2221, 0
    %2228 = vmatprep.subr.bf16.mxu0 0
    %2229 = vmatpush1.bf16.msra.mxu0 0
    %2230 = vmatprep.subr.bf16.mxu0 0
    %2231 = vmatpush1.bf16.msra.mxu0 0
    %2232 = vmatprep.subr.bf16.mxu0 0
    %2233 = vmatpush1.bf16.msra.mxu0 0
    %2234 = vmatprep.subr.bf16.mxu0 0
    %2235 = vmatpush1.bf16.msra.mxu0 0
    %2236 = vmatprep.subr.bf16.mxu0 0
    %2237 = vmatpush1.bf16.msra.mxu0 0
    %2238 = vmatprep.subr.bf16.mxu0 0
    %2239 = vmatpush1.bf16.msra.mxu0 0
    %2240 = vmatprep.subr.bf16.mxu0 0
    %2241 = vmatpush1.bf16.msra.mxu0 0
    %2242 = vmatprep.subr.bf16.mxu0 0
    %2243 = vmatpush1.bf16.msra.mxu0 %v2226
    %2244 = vmatprep.subr.bf16.mxu0 0
    %2245 = vmatpush2.bf16.msra.mxu0 0
    %2246 = vmatprep.subr.bf16.mxu0 0
    %2247 = vmatpush2.bf16.msra.mxu0 0
    %2248 = vmatprep.subr.bf16.mxu0 0
    %2249 = vmatpush2.bf16.msra.mxu0 0
    %2250 = vmatprep.subr.bf16.mxu0 0
    %2251 = vmatpush2.bf16.msra.mxu0 0
    %2252 = vmatprep.subr.bf16.mxu0 0
    %2253 = vmatpush2.bf16.msra.mxu0 0
    %2254 = vmatprep.subr.bf16.mxu0 0
    %2255 = vmatpush2.bf16.msra.mxu0 0
    %2256 = vmatprep.subr.bf16.mxu0 0
    %2257 = vmatpush2.bf16.msra.mxu0 0
    %2258 = vmatprep.subr.bf16.mxu0 0
    %2259 = vmatpush2.bf16.msra.mxu0 0
    %2260 = vmatprep.mubr.bf16.mxu0 0
    %2261 = vmatmul.mubr.bf16.gmra.mxu0 %v2223
    %v2262 = vpop.f32.mrf.mxu0
    %v2263 = vadd.f32 0.0, %v2262
    %v2264 = vpop.f32.mrf.mxu0
    %v2265 = vpop.f32.mrf.mxu0
    %v2266 = vpop.f32.mrf.mxu0
    %2267 = vdwg.mxu0
    %2268 = vrot.lane.b32.xlu0 %v256, 104
    %v2269 = vpop.permute.xlu0 %2268
    %2270 = vrot.lane.b32.xlu0 %v262, 72
    %v2271 = vpop.permute.xlu0 %2270
    %v2273 = vsel %vm271, %v2269, 0
    %v2276 = vsel %vm271, %v2271, 0
    %2278 = vmatprep.subr.bf16.mxu0 0
    %2279 = vmatpush1.bf16.xpose.msra.mxu0 0
    %2280 = vmatprep.subr.bf16.mxu0 0
    %2281 = vmatpush1.bf16.xpose.msra.mxu0 0
    %2282 = vmatprep.subr.bf16.mxu0 0
    %2283 = vmatpush1.bf16.xpose.msra.mxu0 0
    %2284 = vmatprep.subr.bf16.mxu0 0
    %2285 = vmatpush1.bf16.xpose.msra.mxu0 0
    %2286 = vmatprep.subr.bf16.mxu0 0
    %2287 = vmatpush1.bf16.xpose.msra.mxu0 0
    %2288 = vmatprep.subr.bf16.mxu0 0
    %2289 = vmatpush1.bf16.xpose.msra.mxu0 0
    %2290 = vmatprep.subr.bf16.mxu0 0
    %2291 = vmatpush1.bf16.xpose.msra.mxu0 0
    %2292 = vmatprep.subr.bf16.mxu0 0
    %2293 = vmatpush1.bf16.xpose.msra.mxu0 %v2276
    %2294 = vmatprep.subr.bf16.mxu0 0
    %2295 = vmatpush2.bf16.xpose.msra.mxu0 0
    %2296 = vmatprep.subr.bf16.mxu0 0
    %2297 = vmatpush2.bf16.xpose.msra.mxu0 0
    %2298 = vmatprep.subr.bf16.mxu0 0
    %2299 = vmatpush2.bf16.xpose.msra.mxu0 0
    %2300 = vmatprep.subr.bf16.mxu0 0
    %2301 = vmatpush2.bf16.xpose.msra.mxu0 0
    %2302 = vmatprep.subr.bf16.mxu0 0
    %2303 = vmatpush2.bf16.xpose.msra.mxu0 0
    %2304 = vmatprep.subr.bf16.mxu0 0
    %2305 = vmatpush2.bf16.xpose.msra.mxu0 0
    %2306 = vmatprep.subr.bf16.mxu0 0
    %2307 = vmatpush2.bf16.xpose.msra.mxu0 0
    %2308 = vmatprep.subr.bf16.mxu0 0
    %2309 = vmatpush2.bf16.xpose.msra.mxu0 0
    %2310 = vmatprep.mubr.bf16.mxu0 0
    %2311 = vmatmul.mubr.bf16.gmra.mxu0 %v2273
    %v2312 = vpop.f32.mrf.mxu0
    %v2313 = vadd.f32 0.0, %v2312
    %v2314 = vpop.f32.mrf.mxu0
    %v2315 = vpop.f32.mrf.mxu0
    %v2316 = vpop.f32.mrf.mxu0
    %2317 = vdwg.mxu0
    %2318 = vrot.lane.b32.xlu0 %v257, 104
    %v2319 = vpop.permute.xlu0 %2318
    %2320 = vrot.lane.b32.xlu0 %v263, 72
    %v2321 = vpop.permute.xlu0 %2320
    %v2323 = vsel %vm271, %v2319, 0
    %v2326 = vsel %vm271, %v2321, 0
    %2328 = vmatprep.subr.bf16.mxu0 0
    %2329 = vmatpush1.bf16.xpose.msra.mxu0 0
    %2330 = vmatprep.subr.bf16.mxu0 0
    %2331 = vmatpush1.bf16.xpose.msra.mxu0 0
    %2332 = vmatprep.subr.bf16.mxu0 0
    %2333 = vmatpush1.bf16.xpose.msra.mxu0 0
    %2334 = vmatprep.subr.bf16.mxu0 0
    %2335 = vmatpush1.bf16.xpose.msra.mxu0 0
    %2336 = vmatprep.subr.bf16.mxu0 0
    %2337 = vmatpush1.bf16.xpose.msra.mxu0 0
    %2338 = vmatprep.subr.bf16.mxu0 0
    %2339 = vmatpush1.bf16.xpose.msra.mxu0 0
    %2340 = vmatprep.subr.bf16.mxu0 0
    %2341 = vmatpush1.bf16.xpose.msra.mxu0 0
    %2342 = vmatprep.subr.bf16.mxu0 0
    %2343 = vmatpush1.bf16.xpose.msra.mxu0 %v2326
    %2344 = vmatprep.subr.bf16.mxu0 0
    %2345 = vmatpush2.bf16.xpose.msra.mxu0 0
    %2346 = vmatprep.subr.bf16.mxu0 0
    %2347 = vmatpush2.bf16.xpose.msra.mxu0 0
    %2348 = vmatprep.subr.bf16.mxu0 0
    %2349 = vmatpush2.bf16.xpose.msra.mxu0 0
    %2350 = vmatprep.subr.bf16.mxu0 0
    %2351 = vmatpush2.bf16.xpose.msra.mxu0 0
    %2352 = vmatprep.subr.bf16.mxu0 0
    %2353 = vmatpush2.bf16.xpose.msra.mxu0 0
    %2354 = vmatprep.subr.bf16.mxu0 0
    %2355 = vmatpush2.bf16.xpose.msra.mxu0 0
    %2356 = vmatprep.subr.bf16.mxu0 0
    %2357 = vmatpush2.bf16.xpose.msra.mxu0 0
    %2358 = vmatprep.subr.bf16.mxu0 0
    %2359 = vmatpush2.bf16.xpose.msra.mxu0 0
    %2360 = vmatprep.mubr.bf16.mxu0 0
    %2361 = vmatmul.mubr.bf16.gmra.mxu0 %v2323
    %v2362 = vpop.f32.mrf.mxu0
    %v2363 = vadd.f32 0.0, %v2362
    %v2364 = vpop.f32.mrf.mxu0
    %v2365 = vpop.f32.mrf.mxu0
    %v2366 = vpop.f32.mrf.mxu0
    %2367 = vdwg.mxu0
    %2368 = vrot.lane.b32.xlu0 %v258, 104
    %v2369 = vpop.permute.xlu0 %2368
    %2370 = vrot.lane.b32.xlu0 %v264, 72
    %v2371 = vpop.permute.xlu0 %2370
    %v2373 = vsel %vm271, %v2369, 0
    %v2376 = vsel %vm271, %v2371, 0
    %2378 = vmatprep.subr.bf16.mxu0 0
    %2379 = vmatpush1.bf16.xpose.msra.mxu0 0
    %2380 = vmatprep.subr.bf16.mxu0 0
    %2381 = vmatpush1.bf16.xpose.msra.mxu0 0
    %2382 = vmatprep.subr.bf16.mxu0 0
    %2383 = vmatpush1.bf16.xpose.msra.mxu0 0
    %2384 = vmatprep.subr.bf16.mxu0 0
    %2385 = vmatpush1.bf16.xpose.msra.mxu0 0
    %2386 = vmatprep.subr.bf16.mxu0 0
    %2387 = vmatpush1.bf16.xpose.msra.mxu0 0
    %2388 = vmatprep.subr.bf16.mxu0 0
    %2389 = vmatpush1.bf16.xpose.msra.mxu0 0
    %2390 = vmatprep.subr.bf16.mxu0 0
    %2391 = vmatpush1.bf16.xpose.msra.mxu0 0
    %2392 = vmatprep.subr.bf16.mxu0 0
    %2393 = vmatpush1.bf16.xpose.msra.mxu0 %v2376
    %2394 = vmatprep.subr.bf16.mxu0 0
    %2395 = vmatpush2.bf16.xpose.msra.mxu0 0
    %2396 = vmatprep.subr.bf16.mxu0 0
    %2397 = vmatpush2.bf16.xpose.msra.mxu0 0
    %2398 = vmatprep.subr.bf16.mxu0 0
    %2399 = vmatpush2.bf16.xpose.msra.mxu0 0
    %2400 = vmatprep.subr.bf16.mxu0 0
    %2401 = vmatpush2.bf16.xpose.msra.mxu0 0
    %2402 = vmatprep.subr.bf16.mxu0 0
    %2403 = vmatpush2.bf16.xpose.msra.mxu0 0
    %2404 = vmatprep.subr.bf16.mxu0 0
    %2405 = vmatpush2.bf16.xpose.msra.mxu0 0
    %2406 = vmatprep.subr.bf16.mxu0 0
    %2407 = vmatpush2.bf16.xpose.msra.mxu0 0
    %2408 = vmatprep.subr.bf16.mxu0 0
    %2409 = vmatpush2.bf16.xpose.msra.mxu0 0
    %2410 = vmatprep.mubr.bf16.mxu0 0
    %2411 = vmatmul.mubr.bf16.gmra.mxu0 %v2373
    %v2412 = vpop.f32.mrf.mxu0
    %v2413 = vadd.f32 0.0, %v2412
    %v2414 = vpop.f32.mrf.mxu0
    %v2415 = vpop.f32.mrf.mxu0
    %v2416 = vpop.f32.mrf.mxu0
    %2417 = vdwg.mxu0
    %2418 = vrot.lane.b32.xlu0 %v259, 104
    %v2419 = vpop.permute.xlu0 %2418
    %2420 = vrot.lane.b32.xlu0 %v265, 72
    %v2421 = vpop.permute.xlu0 %2420
    %v2423 = vsel %vm271, %v2419, 0
    %v2426 = vsel %vm271, %v2421, 0
    %2428 = vmatprep.subr.bf16.mxu0 0
    %2429 = vmatpush1.bf16.xpose.msra.mxu0 0
    %2430 = vmatprep.subr.bf16.mxu0 0
    %2431 = vmatpush1.bf16.xpose.msra.mxu0 0
    %2432 = vmatprep.subr.bf16.mxu0 0
    %2433 = vmatpush1.bf16.xpose.msra.mxu0 0
    %2434 = vmatprep.subr.bf16.mxu0 0
    %2435 = vmatpush1.bf16.xpose.msra.mxu0 0
    %2436 = vmatprep.subr.bf16.mxu0 0
    %2437 = vmatpush1.bf16.xpose.msra.mxu0 0
    %2438 = vmatprep.subr.bf16.mxu0 0
    %2439 = vmatpush1.bf16.xpose.msra.mxu0 0
    %2440 = vmatprep.subr.bf16.mxu0 0
    %2441 = vmatpush1.bf16.xpose.msra.mxu0 0
    %2442 = vmatprep.subr.bf16.mxu0 0
    %2443 = vmatpush1.bf16.xpose.msra.mxu0 %v2426
    %2444 = vmatprep.subr.bf16.mxu0 0
    %2445 = vmatpush2.bf16.xpose.msra.mxu0 0
    %2446 = vmatprep.subr.bf16.mxu0 0
    %2447 = vmatpush2.bf16.xpose.msra.mxu0 0
    %2448 = vmatprep.subr.bf16.mxu0 0
    %2449 = vmatpush2.bf16.xpose.msra.mxu0 0
    %2450 = vmatprep.subr.bf16.mxu0 0
    %2451 = vmatpush2.bf16.xpose.msra.mxu0 0
    %2452 = vmatprep.subr.bf16.mxu0 0
    %2453 = vmatpush2.bf16.xpose.msra.mxu0 0
    %2454 = vmatprep.subr.bf16.mxu0 0
    %2455 = vmatpush2.bf16.xpose.msra.mxu0 0
    %2456 = vmatprep.subr.bf16.mxu0 0
    %2457 = vmatpush2.bf16.xpose.msra.mxu0 0
    %2458 = vmatprep.subr.bf16.mxu0 0
    %2459 = vmatpush2.bf16.xpose.msra.mxu0 0
    %2460 = vmatprep.mubr.bf16.mxu0 0
    %2461 = vmatmul.mubr.bf16.gmra.mxu0 %v2423
    %v2462 = vpop.f32.mrf.mxu0
    %v2463 = vadd.f32 0.0, %v2462
    %v2464 = vpop.f32.mrf.mxu0
    %v2465 = vpop.f32.mrf.mxu0
    %v2466 = vpop.f32.mrf.mxu0
    %2467 = vdwg.mxu0
    %2468 = vrot.lane.b32.xlu0 %v260, 104
    %v2469 = vpop.permute.xlu0 %2468
    %2470 = vrot.lane.b32.xlu0 %v266, 72
    %v2471 = vpop.permute.xlu0 %2470
    %v2473 = vsel %vm271, %v2469, 0
    %v2476 = vsel %vm271, %v2471, 0
    %2478 = vmatprep.subr.bf16.mxu0 0
    %2479 = vmatpush1.bf16.xpose.msra.mxu0 0
    %2480 = vmatprep.subr.bf16.mxu0 0
    %2481 = vmatpush1.bf16.xpose.msra.mxu0 0
    %2482 = vmatprep.subr.bf16.mxu0 0
    %2483 = vmatpush1.bf16.xpose.msra.mxu0 0
    %2484 = vmatprep.subr.bf16.mxu0 0
    %2485 = vmatpush1.bf16.xpose.msra.mxu0 0
    %2486 = vmatprep.subr.bf16.mxu0 0
    %2487 = vmatpush1.bf16.xpose.msra.mxu0 0
    %2488 = vmatprep.subr.bf16.mxu0 0
    %2489 = vmatpush1.bf16.xpose.msra.mxu0 0
    %2490 = vmatprep.subr.bf16.mxu0 0
    %2491 = vmatpush1.bf16.xpose.msra.mxu0 0
    %2492 = vmatprep.subr.bf16.mxu0 0
    %2493 = vmatpush1.bf16.xpose.msra.mxu0 %v2476
    %2494 = vmatprep.subr.bf16.mxu0 0
    %2495 = vmatpush2.bf16.xpose.msra.mxu0 0
    %2496 = vmatprep.subr.bf16.mxu0 0
    %2497 = vmatpush2.bf16.xpose.msra.mxu0 0
    %2498 = vmatprep.subr.bf16.mxu0 0
    %2499 = vmatpush2.bf16.xpose.msra.mxu0 0
    %2500 = vmatprep.subr.bf16.mxu0 0
    %2501 = vmatpush2.bf16.xpose.msra.mxu0 0
    %2502 = vmatprep.subr.bf16.mxu0 0
    %2503 = vmatpush2.bf16.xpose.msra.mxu0 0
    %2504 = vmatprep.subr.bf16.mxu0 0
    %2505 = vmatpush2.bf16.xpose.msra.mxu0 0
    %2506 = vmatprep.subr.bf16.mxu0 0
    %2507 = vmatpush2.bf16.xpose.msra.mxu0 0
    %2508 = vmatprep.subr.bf16.mxu0 0
    %2509 = vmatpush2.bf16.xpose.msra.mxu0 0
    %2510 = vmatprep.mubr.bf16.mxu0 0
    %2511 = vmatmul.mubr.bf16.gmra.mxu0 %v2473
    %v2512 = vpop.f32.mrf.mxu0
    %v2513 = vadd.f32 0.0, %v2512
    %v2514 = vpop.f32.mrf.mxu0
    %v2515 = vpop.f32.mrf.mxu0
    %v2516 = vpop.f32.mrf.mxu0
    %2517 = vdwg.mxu0
    %2518 = vrot.lane.b32.xlu0 %v261, 104
    %v2519 = vpop.permute.xlu0 %2518
    %2520 = vrot.lane.b32.xlu0 %v267, 72
    %v2521 = vpop.permute.xlu0 %2520
    %v2523 = vsel %vm271, %v2519, 0
    %v2526 = vsel %vm271, %v2521, 0
    %2528 = vmatprep.subr.bf16.mxu0 0
    %2529 = vmatpush1.bf16.xpose.msra.mxu0 0
    %2530 = vmatprep.subr.bf16.mxu0 0
    %2531 = vmatpush1.bf16.xpose.msra.mxu0 0
    %2532 = vmatprep.subr.bf16.mxu0 0
    %2533 = vmatpush1.bf16.xpose.msra.mxu0 0
    %2534 = vmatprep.subr.bf16.mxu0 0
    %2535 = vmatpush1.bf16.xpose.msra.mxu0 0
    %2536 = vmatprep.subr.bf16.mxu0 0
    %2537 = vmatpush1.bf16.xpose.msra.mxu0 0
    %2538 = vmatprep.subr.bf16.mxu0 0
    %2539 = vmatpush1.bf16.xpose.msra.mxu0 0
    %2540 = vmatprep.subr.bf16.mxu0 0
    %2541 = vmatpush1.bf16.xpose.msra.mxu0 0
    %2542 = vmatprep.subr.bf16.mxu0 0
    %2543 = vmatpush1.bf16.xpose.msra.mxu0 %v2526
    %2544 = vmatprep.subr.bf16.mxu0 0
    %2545 = vmatpush2.bf16.xpose.msra.mxu0 0
    %2546 = vmatprep.subr.bf16.mxu0 0
    %2547 = vmatpush2.bf16.xpose.msra.mxu0 0
    %2548 = vmatprep.subr.bf16.mxu0 0
    %2549 = vmatpush2.bf16.xpose.msra.mxu0 0
    %2550 = vmatprep.subr.bf16.mxu0 0
    %2551 = vmatpush2.bf16.xpose.msra.mxu0 0
    %2552 = vmatprep.subr.bf16.mxu0 0
    %2553 = vmatpush2.bf16.xpose.msra.mxu0 0
    %2554 = vmatprep.subr.bf16.mxu0 0
    %2555 = vmatpush2.bf16.xpose.msra.mxu0 0
    %2556 = vmatprep.subr.bf16.mxu0 0
    %2557 = vmatpush2.bf16.xpose.msra.mxu0 0
    %2558 = vmatprep.subr.bf16.mxu0 0
    %2559 = vmatpush2.bf16.xpose.msra.mxu0 0
    %2560 = vmatprep.mubr.bf16.mxu0 0
    %2561 = vmatmul.mubr.bf16.gmra.mxu0 %v2523
    %v2562 = vpop.f32.mrf.mxu0
    %v2563 = vadd.f32 0.0, %v2562
    %v2564 = vpop.f32.mrf.mxu0
    %v2565 = vpop.f32.mrf.mxu0
    %v2566 = vpop.f32.mrf.mxu0
    %2567 = vdwg.mxu0
    %v2568 = vmul.f32 %v2313, 0.35355338
    %v2569 = vmul.f32 %v2363, 0.35355338
    %v2570 = vmul.f32 %v2413, 0.35355338
    %v2571 = vmul.f32 %v2463, 0.35355338
    %v2572 = vmul.f32 %v2513, 0.35355338
    %v2573 = vmul.f32 %v2563, 0.35355338
    %v2574 = vsel %vm271, %v2568, -inf
    %2575 = vmax.xlane.f32.xlu0 %v2574
    %v2576 = vpop.xlane.xlu0 %2575
    %v2577 = vsel %vm271, %v2569, -inf
    %2578 = vmax.xlane.f32.xlu0 %v2577
    %v2579 = vpop.xlane.xlu0 %2578
    %v2580 = vsel %vm271, %v2570, -inf
    %2581 = vmax.xlane.f32.xlu0 %v2580
    %v2582 = vpop.xlane.xlu0 %2581
    %v2583 = vsel %vm271, %v2571, -inf
    %2584 = vmax.xlane.f32.xlu0 %v2583
    %v2585 = vpop.xlane.xlu0 %2584
    %v2586 = vsel %vm271, %v2572, -inf
    %2587 = vmax.xlane.f32.xlu0 %v2586
    %v2588 = vpop.xlane.xlu0 %2587
    %v2589 = vsel %vm271, %v2573, -inf
    %2590 = vmax.xlane.f32.xlu0 %v2589
    %v2591 = vpop.xlane.xlu0 %2590
    %v2592 = vsub.f32 %v2568, %v2576
    %v2593 = vsub.f32 %v2569, %v2579
    %v2594 = vsub.f32 %v2570, %v2582
    %v2595 = vsub.f32 %v2571, %v2585
    %v2596 = vsub.f32 %v2572, %v2588
    %v2597 = vsub.f32 %v2573, %v2591
    %v2598 = vmul.f32 %v2592, 1.442695
    %v2599 = vpow.pop %v2598
    %v2600 = vmul.f32 %v2593, 1.442695
    %v2601 = vpow.pop %v2600
    %v2602 = vmul.f32 %v2594, 1.442695
    %v2603 = vpow.pop %v2602
    %v2604 = vmul.f32 %v2595, 1.442695
    %v2605 = vpow.pop %v2604
    %v2606 = vmul.f32 %v2596, 1.442695
    %v2607 = vpow.pop %v2606
    %v2608 = vmul.f32 %v2597, 1.442695
    %v2609 = vpow.pop %v2608
    %v2610 = vsel %vm271, %v2599, 0.0
    %2611 = vadd.xlane.f32.xlu0 %v2610
    %v2612 = vpop.xlane.xlu0 %2611
    %v2613 = vsel %vm271, %v2601, 0.0
    %2614 = vadd.xlane.f32.xlu0 %v2613
    %v2615 = vpop.xlane.xlu0 %2614
    %v2616 = vsel %vm271, %v2603, 0.0
    %2617 = vadd.xlane.f32.xlu0 %v2616
    %v2618 = vpop.xlane.xlu0 %2617
    %v2619 = vsel %vm271, %v2605, 0.0
    %2620 = vadd.xlane.f32.xlu0 %v2619
    %v2621 = vpop.xlane.xlu0 %2620
    %v2622 = vsel %vm271, %v2607, 0.0
    %2623 = vadd.xlane.f32.xlu0 %v2622
    %v2624 = vpop.xlane.xlu0 %2623
    %v2625 = vsel %vm271, %v2609, 0.0
    %2626 = vadd.xlane.f32.xlu0 %v2625
    %v2627 = vpop.xlane.xlu0 %2626
    %v2628 = vrcp.pop %v2612
    %v2629 = vrcp.pop %v2615
    %v2630 = vrcp.pop %v2618
    %v2631 = vrcp.pop %v2621
    %v2632 = vrcp.pop %v2624
    %v2633 = vrcp.pop %v2627
    %v2634 = vmul.f32 %v2599, %v2628
    %v2635 = vmul.f32 %v2601, %v2629
    %v2636 = vmul.f32 %v2603, %v2630
    %v2637 = vmul.f32 %v2605, %v2631
    %v2638 = vmul.f32 %v2607, %v2632
    %v2639 = vmul.f32 %v2609, %v2633
    %v2640 = vpack.c.bf16 %v2634, %v2634
    %v2641 = vpack.c.bf16 %v2635, %v2635
    %v2642 = vpack.c.bf16 %v2636, %v2636
    %v2643 = vpack.c.bf16 %v2637, %v2637
    %v2644 = vpack.c.bf16 %v2638, %v2638
    %v2645 = vpack.c.bf16 %v2639, %v2639
    %2646 = vrot.lane.b32.xlu0 %v262, 40
    %v2647 = vpop.permute.xlu0 %2646
    %v2649 = vsel %vm271, %v2640, 0
    %v2652 = vsel %vm646, %v2647, 0
    %2654 = vmatprep.subr.bf16.mxu0 0
    %2655 = vmatpush1.bf16.msra.mxu0 0
    %2656 = vmatprep.subr.bf16.mxu0 0
    %2657 = vmatpush1.bf16.msra.mxu0 0
    %2658 = vmatprep.subr.bf16.mxu0 0
    %2659 = vmatpush1.bf16.msra.mxu0 0
    %2660 = vmatprep.subr.bf16.mxu0 0
    %2661 = vmatpush1.bf16.msra.mxu0 0
    %2662 = vmatprep.subr.bf16.mxu0 0
    %2663 = vmatpush1.bf16.msra.mxu0 0
    %2664 = vmatprep.subr.bf16.mxu0 0
    %2665 = vmatpush1.bf16.msra.mxu0 0
    %2666 = vmatprep.subr.bf16.mxu0 0
    %2667 = vmatpush1.bf16.msra.mxu0 0
    %2668 = vmatprep.subr.bf16.mxu0 0
    %2669 = vmatpush1.bf16.msra.mxu0 %v2652
    %2670 = vmatprep.subr.bf16.mxu0 0
    %2671 = vmatpush2.bf16.msra.mxu0 0
    %2672 = vmatprep.subr.bf16.mxu0 0
    %2673 = vmatpush2.bf16.msra.mxu0 0
    %2674 = vmatprep.subr.bf16.mxu0 0
    %2675 = vmatpush2.bf16.msra.mxu0 0
    %2676 = vmatprep.subr.bf16.mxu0 0
    %2677 = vmatpush2.bf16.msra.mxu0 0
    %2678 = vmatprep.subr.bf16.mxu0 0
    %2679 = vmatpush2.bf16.msra.mxu0 0
    %2680 = vmatprep.subr.bf16.mxu0 0
    %2681 = vmatpush2.bf16.msra.mxu0 0
    %2682 = vmatprep.subr.bf16.mxu0 0
    %2683 = vmatpush2.bf16.msra.mxu0 0
    %2684 = vmatprep.subr.bf16.mxu0 0
    %2685 = vmatpush2.bf16.msra.mxu0 0
    %2686 = vmatprep.mubr.bf16.mxu0 0
    %2687 = vmatmul.mubr.bf16.gmra.mxu0 %v2649
    %v2688 = vpop.f32.mrf.mxu0
    %v2689 = vadd.f32 0.0, %v2688
    %v2690 = vpop.f32.mrf.mxu0
    %v2691 = vpop.f32.mrf.mxu0
    %v2692 = vpop.f32.mrf.mxu0
    %2693 = vdwg.mxu0
    %2694 = vrot.lane.b32.xlu0 %v263, 40
    %v2695 = vpop.permute.xlu0 %2694
    %v2697 = vsel %vm271, %v2641, 0
    %v2700 = vsel %vm646, %v2695, 0
    %2702 = vmatprep.subr.bf16.mxu0 0
    %2703 = vmatpush1.bf16.msra.mxu0 0
    %2704 = vmatprep.subr.bf16.mxu0 0
    %2705 = vmatpush1.bf16.msra.mxu0 0
    %2706 = vmatprep.subr.bf16.mxu0 0
    %2707 = vmatpush1.bf16.msra.mxu0 0
    %2708 = vmatprep.subr.bf16.mxu0 0
    %2709 = vmatpush1.bf16.msra.mxu0 0
    %2710 = vmatprep.subr.bf16.mxu0 0
    %2711 = vmatpush1.bf16.msra.mxu0 0
    %2712 = vmatprep.subr.bf16.mxu0 0
    %2713 = vmatpush1.bf16.msra.mxu0 0
    %2714 = vmatprep.subr.bf16.mxu0 0
    %2715 = vmatpush1.bf16.msra.mxu0 0
    %2716 = vmatprep.subr.bf16.mxu0 0
    %2717 = vmatpush1.bf16.msra.mxu0 %v2700
    %2718 = vmatprep.subr.bf16.mxu0 0
    %2719 = vmatpush2.bf16.msra.mxu0 0
    %2720 = vmatprep.subr.bf16.mxu0 0
    %2721 = vmatpush2.bf16.msra.mxu0 0
    %2722 = vmatprep.subr.bf16.mxu0 0
    %2723 = vmatpush2.bf16.msra.mxu0 0
    %2724 = vmatprep.subr.bf16.mxu0 0
    %2725 = vmatpush2.bf16.msra.mxu0 0
    %2726 = vmatprep.subr.bf16.mxu0 0
    %2727 = vmatpush2.bf16.msra.mxu0 0
    %2728 = vmatprep.subr.bf16.mxu0 0
    %2729 = vmatpush2.bf16.msra.mxu0 0
    %2730 = vmatprep.subr.bf16.mxu0 0
    %2731 = vmatpush2.bf16.msra.mxu0 0
    %2732 = vmatprep.subr.bf16.mxu0 0
    %2733 = vmatpush2.bf16.msra.mxu0 0
    %2734 = vmatprep.mubr.bf16.mxu0 0
    %2735 = vmatmul.mubr.bf16.gmra.mxu0 %v2697
    %v2736 = vpop.f32.mrf.mxu0
    %v2737 = vadd.f32 0.0, %v2736
    %v2738 = vpop.f32.mrf.mxu0
    %v2739 = vpop.f32.mrf.mxu0
    %v2740 = vpop.f32.mrf.mxu0
    %2741 = vdwg.mxu0
    %2742 = vrot.lane.b32.xlu0 %v264, 40
    %v2743 = vpop.permute.xlu0 %2742
    %v2745 = vsel %vm271, %v2642, 0
    %v2748 = vsel %vm646, %v2743, 0
    %2750 = vmatprep.subr.bf16.mxu0 0
    %2751 = vmatpush1.bf16.msra.mxu0 0
    %2752 = vmatprep.subr.bf16.mxu0 0
    %2753 = vmatpush1.bf16.msra.mxu0 0
    %2754 = vmatprep.subr.bf16.mxu0 0
    %2755 = vmatpush1.bf16.msra.mxu0 0
    %2756 = vmatprep.subr.bf16.mxu0 0
    %2757 = vmatpush1.bf16.msra.mxu0 0
    %2758 = vmatprep.subr.bf16.mxu0 0
    %2759 = vmatpush1.bf16.msra.mxu0 0
    %2760 = vmatprep.subr.bf16.mxu0 0
    %2761 = vmatpush1.bf16.msra.mxu0 0
    %2762 = vmatprep.subr.bf16.mxu0 0
    %2763 = vmatpush1.bf16.msra.mxu0 0
    %2764 = vmatprep.subr.bf16.mxu0 0
    %2765 = vmatpush1.bf16.msra.mxu0 %v2748
    %2766 = vmatprep.subr.bf16.mxu0 0
    %2767 = vmatpush2.bf16.msra.mxu0 0
    %2768 = vmatprep.subr.bf16.mxu0 0
    %2769 = vmatpush2.bf16.msra.mxu0 0
    %2770 = vmatprep.subr.bf16.mxu0 0
    %2771 = vmatpush2.bf16.msra.mxu0 0
    %2772 = vmatprep.subr.bf16.mxu0 0
    %2773 = vmatpush2.bf16.msra.mxu0 0
    %2774 = vmatprep.subr.bf16.mxu0 0
    %2775 = vmatpush2.bf16.msra.mxu0 0
    %2776 = vmatprep.subr.bf16.mxu0 0
    %2777 = vmatpush2.bf16.msra.mxu0 0
    %2778 = vmatprep.subr.bf16.mxu0 0
    %2779 = vmatpush2.bf16.msra.mxu0 0
    %2780 = vmatprep.subr.bf16.mxu0 0
    %2781 = vmatpush2.bf16.msra.mxu0 0
    %2782 = vmatprep.mubr.bf16.mxu0 0
    %2783 = vmatmul.mubr.bf16.gmra.mxu0 %v2745
    %v2784 = vpop.f32.mrf.mxu0
    %v2785 = vadd.f32 0.0, %v2784
    %v2786 = vpop.f32.mrf.mxu0
    %v2787 = vpop.f32.mrf.mxu0
    %v2788 = vpop.f32.mrf.mxu0
    %2789 = vdwg.mxu0
    %2790 = vrot.lane.b32.xlu0 %v265, 40
    %v2791 = vpop.permute.xlu0 %2790
    %v2793 = vsel %vm271, %v2643, 0
    %v2796 = vsel %vm646, %v2791, 0
    %2798 = vmatprep.subr.bf16.mxu0 0
    %2799 = vmatpush1.bf16.msra.mxu0 0
    %2800 = vmatprep.subr.bf16.mxu0 0
    %2801 = vmatpush1.bf16.msra.mxu0 0
    %2802 = vmatprep.subr.bf16.mxu0 0
    %2803 = vmatpush1.bf16.msra.mxu0 0
    %2804 = vmatprep.subr.bf16.mxu0 0
    %2805 = vmatpush1.bf16.msra.mxu0 0
    %2806 = vmatprep.subr.bf16.mxu0 0
    %2807 = vmatpush1.bf16.msra.mxu0 0
    %2808 = vmatprep.subr.bf16.mxu0 0
    %2809 = vmatpush1.bf16.msra.mxu0 0
    %2810 = vmatprep.subr.bf16.mxu0 0
    %2811 = vmatpush1.bf16.msra.mxu0 0
    %2812 = vmatprep.subr.bf16.mxu0 0
    %2813 = vmatpush1.bf16.msra.mxu0 %v2796
    %2814 = vmatprep.subr.bf16.mxu0 0
    %2815 = vmatpush2.bf16.msra.mxu0 0
    %2816 = vmatprep.subr.bf16.mxu0 0
    %2817 = vmatpush2.bf16.msra.mxu0 0
    %2818 = vmatprep.subr.bf16.mxu0 0
    %2819 = vmatpush2.bf16.msra.mxu0 0
    %2820 = vmatprep.subr.bf16.mxu0 0
    %2821 = vmatpush2.bf16.msra.mxu0 0
    %2822 = vmatprep.subr.bf16.mxu0 0
    %2823 = vmatpush2.bf16.msra.mxu0 0
    %2824 = vmatprep.subr.bf16.mxu0 0
    %2825 = vmatpush2.bf16.msra.mxu0 0
    %2826 = vmatprep.subr.bf16.mxu0 0
    %2827 = vmatpush2.bf16.msra.mxu0 0
    %2828 = vmatprep.subr.bf16.mxu0 0
    %2829 = vmatpush2.bf16.msra.mxu0 0
    %2830 = vmatprep.mubr.bf16.mxu0 0
    %2831 = vmatmul.mubr.bf16.gmra.mxu0 %v2793
    %v2832 = vpop.f32.mrf.mxu0
    %v2833 = vadd.f32 0.0, %v2832
    %v2834 = vpop.f32.mrf.mxu0
    %v2835 = vpop.f32.mrf.mxu0
    %v2836 = vpop.f32.mrf.mxu0
    %2837 = vdwg.mxu0
    %2838 = vrot.lane.b32.xlu0 %v266, 40
    %v2839 = vpop.permute.xlu0 %2838
    %v2841 = vsel %vm271, %v2644, 0
    %v2844 = vsel %vm646, %v2839, 0
    %2846 = vmatprep.subr.bf16.mxu0 0
    %2847 = vmatpush1.bf16.msra.mxu0 0
    %2848 = vmatprep.subr.bf16.mxu0 0
    %2849 = vmatpush1.bf16.msra.mxu0 0
    %2850 = vmatprep.subr.bf16.mxu0 0
    %2851 = vmatpush1.bf16.msra.mxu0 0
    %2852 = vmatprep.subr.bf16.mxu0 0
    %2853 = vmatpush1.bf16.msra.mxu0 0
    %2854 = vmatprep.subr.bf16.mxu0 0
    %2855 = vmatpush1.bf16.msra.mxu0 0
    %2856 = vmatprep.subr.bf16.mxu0 0
    %2857 = vmatpush1.bf16.msra.mxu0 0
    %2858 = vmatprep.subr.bf16.mxu0 0
    %2859 = vmatpush1.bf16.msra.mxu0 0
    %2860 = vmatprep.subr.bf16.mxu0 0
    %2861 = vmatpush1.bf16.msra.mxu0 %v2844
    %2862 = vmatprep.subr.bf16.mxu0 0
    %2863 = vmatpush2.bf16.msra.mxu0 0
    %2864 = vmatprep.subr.bf16.mxu0 0
    %2865 = vmatpush2.bf16.msra.mxu0 0
    %2866 = vmatprep.subr.bf16.mxu0 0
    %2867 = vmatpush2.bf16.msra.mxu0 0
    %2868 = vmatprep.subr.bf16.mxu0 0
    %2869 = vmatpush2.bf16.msra.mxu0 0
    %2870 = vmatprep.subr.bf16.mxu0 0
    %2871 = vmatpush2.bf16.msra.mxu0 0
    %2872 = vmatprep.subr.bf16.mxu0 0
    %2873 = vmatpush2.bf16.msra.mxu0 0
    %2874 = vmatprep.subr.bf16.mxu0 0
    %2875 = vmatpush2.bf16.msra.mxu0 0
    %2876 = vmatprep.subr.bf16.mxu0 0
    %2877 = vmatpush2.bf16.msra.mxu0 0
    %2878 = vmatprep.mubr.bf16.mxu0 0
    %2879 = vmatmul.mubr.bf16.gmra.mxu0 %v2841
    %v2880 = vpop.f32.mrf.mxu0
    %v2881 = vadd.f32 0.0, %v2880
    %v2882 = vpop.f32.mrf.mxu0
    %v2883 = vpop.f32.mrf.mxu0
    %v2884 = vpop.f32.mrf.mxu0
    %2885 = vdwg.mxu0
    %2886 = vrot.lane.b32.xlu0 %v267, 40
    %v2887 = vpop.permute.xlu0 %2886
    %v2889 = vsel %vm271, %v2645, 0
    %v2892 = vsel %vm646, %v2887, 0
    %2894 = vmatprep.subr.bf16.mxu0 0
    %2895 = vmatpush1.bf16.msra.mxu0 0
    %2896 = vmatprep.subr.bf16.mxu0 0
    %2897 = vmatpush1.bf16.msra.mxu0 0
    %2898 = vmatprep.subr.bf16.mxu0 0
    %2899 = vmatpush1.bf16.msra.mxu0 0
    %2900 = vmatprep.subr.bf16.mxu0 0
    %2901 = vmatpush1.bf16.msra.mxu0 0
    %2902 = vmatprep.subr.bf16.mxu0 0
    %2903 = vmatpush1.bf16.msra.mxu0 0
    %2904 = vmatprep.subr.bf16.mxu0 0
    %2905 = vmatpush1.bf16.msra.mxu0 0
    %2906 = vmatprep.subr.bf16.mxu0 0
    %2907 = vmatpush1.bf16.msra.mxu0 0
    %2908 = vmatprep.subr.bf16.mxu0 0
    %2909 = vmatpush1.bf16.msra.mxu0 %v2892
    %2910 = vmatprep.subr.bf16.mxu0 0
    %2911 = vmatpush2.bf16.msra.mxu0 0
    %2912 = vmatprep.subr.bf16.mxu0 0
    %2913 = vmatpush2.bf16.msra.mxu0 0
    %2914 = vmatprep.subr.bf16.mxu0 0
    %2915 = vmatpush2.bf16.msra.mxu0 0
    %2916 = vmatprep.subr.bf16.mxu0 0
    %2917 = vmatpush2.bf16.msra.mxu0 0
    %2918 = vmatprep.subr.bf16.mxu0 0
    %2919 = vmatpush2.bf16.msra.mxu0 0
    %2920 = vmatprep.subr.bf16.mxu0 0
    %2921 = vmatpush2.bf16.msra.mxu0 0
    %2922 = vmatprep.subr.bf16.mxu0 0
    %2923 = vmatpush2.bf16.msra.mxu0 0
    %2924 = vmatprep.subr.bf16.mxu0 0
    %2925 = vmatpush2.bf16.msra.mxu0 0
    %2926 = vmatprep.mubr.bf16.mxu0 0
    %2927 = vmatmul.mubr.bf16.gmra.mxu0 %v2889
    %v2928 = vpop.f32.mrf.mxu0
    %v2929 = vadd.f32 0.0, %v2928
    %v2930 = vpop.f32.mrf.mxu0
    %v2931 = vpop.f32.mrf.mxu0
    %v2932 = vpop.f32.mrf.mxu0
    %2933 = vdwg.mxu0
    %2940 = vrot.lane.b32.xlu0 %v1357, 8
    %v2941 = vpop.permute.xlu0 %2940
    %2942 = vrot.lane.b32.xlu0 %v1405, 8
    %v2943 = vpop.permute.xlu0 %2942
    %2944 = vrot.lane.b32.xlu0 %v1453, 8
    %v2945 = vpop.permute.xlu0 %2944
    %2946 = vrot.lane.b32.xlu0 %v1501, 8
    %v2947 = vpop.permute.xlu0 %2946
    %2948 = vrot.lane.b32.xlu0 %v1549, 8
    %v2949 = vpop.permute.xlu0 %2948
    %2950 = vrot.lane.b32.xlu0 %v1597, 8
    %v2951 = vpop.permute.xlu0 %2950
    %2964 = vrot.lane.b32.xlu0 %v2023, 16
    %v2965 = vpop.permute.xlu0 %2964
    %2966 = vrot.lane.b32.xlu0 %v2071, 16
    %v2967 = vpop.permute.xlu0 %2966
    %2968 = vrot.lane.b32.xlu0 %v2119, 16
    %v2969 = vpop.permute.xlu0 %2968
    %2970 = vrot.lane.b32.xlu0 %v2167, 16
    %v2971 = vpop.permute.xlu0 %2970
    %2972 = vrot.lane.b32.xlu0 %v2215, 16
    %v2973 = vpop.permute.xlu0 %2972
    %2974 = vrot.lane.b32.xlu0 %v2263, 16
    %v2975 = vpop.permute.xlu0 %2974
    %2988 = vrot.lane.b32.xlu0 %v2689, 24
    %v2989 = vpop.permute.xlu0 %2988
    %2990 = vrot.lane.b32.xlu0 %v2737, 24
    %v2991 = vpop.permute.xlu0 %2990
    %2992 = vrot.lane.b32.xlu0 %v2785, 24
    %v2993 = vpop.permute.xlu0 %2992
    %2994 = vrot.lane.b32.xlu0 %v2833, 24
    %v2995 = vpop.permute.xlu0 %2994
    %2996 = vrot.lane.b32.xlu0 %v2881, 24
    %v2997 = vpop.permute.xlu0 %2996
    %2998 = vrot.lane.b32.xlu0 %v2929, 24
    %v2999 = vpop.permute.xlu0 %2998
    %v3006 = vsel %vm271, %v685, %v2941
    %v3007 = vsel %vm271, %v733, %v2943
    %v3008 = vsel %vm271, %v781, %v2945
    %v3009 = vsel %vm271, %v829, %v2947
    %v3010 = vsel %vm271, %v877, %v2949
    %v3011 = vsel %vm271, %v925, %v2951
    %vm3012 = vcmask 130048
    %v3013 = vsel %vm3012, %v3006, %v2965
    %v3014 = vsel %vm3012, %v3007, %v2967
    %v3015 = vsel %vm3012, %v3008, %v2969
    %v3016 = vsel %vm3012, %v3009, %v2971
    %v3017 = vsel %vm3012, %v3010, %v2973
    %v3018 = vsel %vm3012, %v3011, %v2975
    %vm3019 = vcmask 195584
    %v3020 = vsel %vm3019, %v3013, %v2989
    %v3021 = vsel %vm3019, %v3014, %v2991
    %v3022 = vsel %vm3019, %v3015, %v2993
    %v3023 = vsel %vm3019, %v3016, %v2995
    %v3024 = vsel %vm3019, %v3017, %v2997
    %v3025 = vsel %vm3019, %v3018, %v2999
    %v3026 = vpack.c.bf16 %v3021, %v3020
    %v3027 = vpack.c.bf16 %v3023, %v3022
    %v3028 = vpack.c.bf16 %v3025, %v3024
    %v3029 = vld [vmem:[#allocation6] sm:$0xf]
    %v3030 = vld [vmem:[#allocation6 + $0x4] sm:$0xf]
    %v3031 = vld [vmem:[#allocation6 + $0x8] sm:$0xf]
    %v3032 = vld [vmem:[#allocation6 + $0xc] sm:$0xf]
    %v3033 = vld [vmem:[#allocation7] sm:$0x1]
    %v3035 = vlaneseq
    %v3036 = vshrl.u32 %v3035, 7
    %v3037 = vsub.s32 0, %v3036
    %v3038 = vrot.slane %v3033, %v3037
    %v3044 = vunpack.c.l.b16 %v3029
    %v3045 = vunpack.c.l.b16 %v3030
    %v3046 = vunpack.c.l.b16 %v3031
    %v3047 = vunpack.c.l.b16 %v3032
    %v3048 = vpack.c.b16 %v3045, %v3044
    %v3049 = vpack.c.b16 %v3047, %v3046
    %v3053 = vsel %vm156, %v3026, 0
    %v3056 = vsel %vm156, %v3027, 0
    %v3059 = vsel %vm156, %v3028, 0
    %3061 = vmatprep.subr.bf16.mxu0 0
    %3062 = vmatpush1.bf16.msra.mxu0 0
    %3063 = vmatprep.subr.bf16.mxu0 0
    %3064 = vmatpush1.bf16.msra.mxu0 0
    %3065 = vmatprep.subr.bf16.mxu0 0
    %3066 = vmatpush1.bf16.msra.mxu0 0
    %3067 = vmatprep.subr.bf16.mxu0 0
    %3068 = vmatpush1.bf16.msra.mxu0 0
    %3069 = vmatprep.subr.bf16.mxu0 0
    %3070 = vmatpush1.bf16.msra.mxu0 0
    %3071 = vmatprep.subr.bf16.mxu0 0
    %3072 = vmatpush1.bf16.msra.mxu0 0
    %3073 = vmatprep.subr.bf16.mxu0 0
    %3074 = vmatpush1.bf16.msra.mxu0 %v3049
    %3075 = vmatprep.subr.bf16.mxu0 0
    %3076 = vmatpush1.bf16.msra.mxu0 %v3048
    %3077 = vmatprep.subr.bf16.mxu0 0
    %3078 = vmatpush2.bf16.msra.mxu0 0
    %3079 = vmatprep.subr.bf16.mxu0 0
    %3080 = vmatpush2.bf16.msra.mxu0 0
    %3081 = vmatprep.subr.bf16.mxu0 0
    %3082 = vmatpush2.bf16.msra.mxu0 0
    %3083 = vmatprep.subr.bf16.mxu0 0
    %3084 = vmatpush2.bf16.msra.mxu0 0
    %3085 = vmatprep.subr.bf16.mxu0 0
    %3086 = vmatpush2.bf16.msra.mxu0 0
    %3087 = vmatprep.subr.bf16.mxu0 0
    %3088 = vmatpush2.bf16.msra.mxu0 0
    %3089 = vmatprep.subr.bf16.mxu0 0
    %3090 = vmatpush2.bf16.msra.mxu0 0
    %3091 = vmatprep.subr.bf16.mxu0 0
    %3092 = vmatpush2.bf16.msra.mxu0 0
    %3093 = vmatprep.mubr.bf16.mxu0 0
    %3094 = vmatmul.mubr.bf16.gmra.mxu0 %v3053
    %v3095 = vpop.f32.mrf.mxu0
    %v3096 = vadd.f32 %v3038, %v3095
    %v3097 = vpop.f32.mrf.mxu0
    %v3098 = vpop.f32.mrf.mxu0
    %v3099 = vadd.f32 %v3038, %v3098
    %v3100 = vpop.f32.mrf.mxu0
    %3101 = vmatprep.mubr.bf16.mxu0 0
    %3102 = vmatmul.mubr.bf16.gmra.mxu0 %v3056
    %v3103 = vpop.f32.mrf.mxu0
    %v3104 = vadd.f32 %v3038, %v3103
    %v3105 = vpop.f32.mrf.mxu0
    %v3106 = vpop.f32.mrf.mxu0
    %v3107 = vadd.f32 %v3038, %v3106
    %v3108 = vpop.f32.mrf.mxu0
    %3109 = vmatprep.mubr.bf16.mxu0 0
    %3110 = vmatmul.mubr.bf16.gmra.mxu0 %v3059
    %v3111 = vpop.f32.mrf.mxu0
    %v3112 = vadd.f32 %v3038, %v3111
    %v3113 = vpop.f32.mrf.mxu0
    %v3114 = vpop.f32.mrf.mxu0
    %v3115 = vadd.f32 %v3038, %v3114
    %v3116 = vpop.f32.mrf.mxu0
    %3117 = vdwg.mxu0
    %v3118 = vld [vmem:[%s6] sm:$0xf]
    %v3119 = vlaneseq
    %v3120 = vshrl.u32 %v3119, 7
    %v3121 = vsub.s32 0, %v3120
    %v3122 = vrot.slane %v3118, %v3121
    %v3123 = vmul.f32 %v3096, %v3122
    %v3124 = vmul.f32 %v3099, %v3122
    %v3125 = vmul.f32 %v3104, %v3122
    %v3126 = vmul.f32 %v3107, %v3122
    %v3127 = vmul.f32 %v3112, %v3122
    %v3128 = vmul.f32 %v3115, %v3122
    %v3129 = vlaneseq
    %v3130 = vshrl.u32 %v3129, 7
    %v3131 = vsub.s32 1, %v3130
    %v3132 = vrot.slane %v3118, %v3131
    %v3133 = vadd.f32 %v3123, %v3132
    %v3134 = vadd.f32 %v3124, %v3132
    %v3135 = vadd.f32 %v3125, %v3132
    %v3136 = vadd.f32 %v3126, %v3132
    %v3137 = vadd.f32 %v3127, %v3132
    %v3138 = vadd.f32 %v3128, %v3132
    %v3139 = vadd.f32 %v3133, %v103
    %v3140 = vadd.f32 %v3134, %v104
    %v3141 = vadd.f32 %v3135, %v105
    %v3142 = vadd.f32 %v3136, %v106
    %v3143 = vadd.f32 %v3137, %v107
    %v3144 = vadd.f32 %v3138, %v108
    %v3145 = vpack.c.bf16 %v3140, %v3139
    %v3146 = vpack.c.bf16 %v3142, %v3141
    %v3147 = vpack.c.bf16 %v3144, %v3143
    %v3148 = vld [vmem:[#allocation9] sm:$0xf]
    %v3149 = vld [vmem:[#allocation9 + $0x4] sm:$0xf]
    %v3150 = vld [vmem:[#allocation9 + $0x8] sm:$0xf]
    %v3151 = vld [vmem:[#allocation9 + $0xc] sm:$0xf]
    %v3152 = vld [vmem:[%s8] sm:$0x1]
    %v3154 = vlaneseq
    %v3155 = vshrl.u32 %v3154, 7
    %v3156 = vsub.s32 0, %v3155
    %v3157 = vrot.slane %v3152, %v3156
    %v3163 = vunpack.c.l.b16 %v3148
    %v3164 = vunpack.c.l.b16 %v3149
    %v3165 = vunpack.c.l.b16 %v3150
    %v3166 = vunpack.c.l.b16 %v3151
    %v3167 = vpack.c.b16 %v3164, %v3163
    %v3168 = vpack.c.b16 %v3166, %v3165
    %v3172 = vsel %vm156, %v3145, 0
    %v3175 = vsel %vm156, %v3146, 0
    %v3178 = vsel %vm156, %v3147, 0
    %3180 = vmatprep.subr.bf16.mxu0 0
    %3181 = vmatpush1.bf16.msra.mxu0 0
    %3182 = vmatprep.subr.bf16.mxu0 0
    %3183 = vmatpush1.bf16.msra.mxu0 0
    %3184 = vmatprep.subr.bf16.mxu0 0
    %3185 = vmatpush1.bf16.msra.mxu0 0
    %3186 = vmatprep.subr.bf16.mxu0 0
    %3187 = vmatpush1.bf16.msra.mxu0 0
    %3188 = vmatprep.subr.bf16.mxu0 0
    %3189 = vmatpush1.bf16.msra.mxu0 0
    %3190 = vmatprep.subr.bf16.mxu0 0
    %3191 = vmatpush1.bf16.msra.mxu0 0
    %3192 = vmatprep.subr.bf16.mxu0 0
    %3193 = vmatpush1.bf16.msra.mxu0 %v3168
    %3194 = vmatprep.subr.bf16.mxu0 0
    %3195 = vmatpush1.bf16.msra.mxu0 %v3167
    %3196 = vmatprep.subr.bf16.mxu0 0
    %3197 = vmatpush2.bf16.msra.mxu0 0
    %3198 = vmatprep.subr.bf16.mxu0 0
    %3199 = vmatpush2.bf16.msra.mxu0 0
    %3200 = vmatprep.subr.bf16.mxu0 0
    %3201 = vmatpush2.bf16.msra.mxu0 0
    %3202 = vmatprep.subr.bf16.mxu0 0
    %3203 = vmatpush2.bf16.msra.mxu0 0
    %3204 = vmatprep.subr.bf16.mxu0 0
    %3205 = vmatpush2.bf16.msra.mxu0 0
    %3206 = vmatprep.subr.bf16.mxu0 0
    %3207 = vmatpush2.bf16.msra.mxu0 0
    %3208 = vmatprep.subr.bf16.mxu0 0
    %3209 = vmatpush2.bf16.msra.mxu0 0
    %3210 = vmatprep.subr.bf16.mxu0 0
    %3211 = vmatpush2.bf16.msra.mxu0 0
    %3212 = vmatprep.mubr.bf16.mxu0 0
    %3213 = vmatmul.mubr.bf16.gmra.mxu0 %v3172
    %v3214 = vpop.f32.mrf.mxu0
    %v3215 = vadd.f32 %v3157, %v3214
    %v3216 = vpop.f32.mrf.mxu0
    %v3217 = vpop.f32.mrf.mxu0
    %v3218 = vadd.f32 %v3157, %v3217
    %v3219 = vpop.f32.mrf.mxu0
    %3220 = vmatprep.mubr.bf16.mxu0 0
    %3221 = vmatmul.mubr.bf16.gmra.mxu0 %v3175
    %v3222 = vpop.f32.mrf.mxu0
    %v3223 = vadd.f32 %v3157, %v3222
    %v3224 = vpop.f32.mrf.mxu0
    %v3225 = vpop.f32.mrf.mxu0
    %v3226 = vadd.f32 %v3157, %v3225
    %v3227 = vpop.f32.mrf.mxu0
    %3228 = vmatprep.mubr.bf16.mxu0 0
    %3229 = vmatmul.mubr.bf16.gmra.mxu0 %v3178
    %v3230 = vpop.f32.mrf.mxu0
    %v3231 = vadd.f32 %v3157, %v3230
    %v3232 = vpop.f32.mrf.mxu0
    %v3233 = vpop.f32.mrf.mxu0
    %v3234 = vadd.f32 %v3157, %v3233
    %v3235 = vpop.f32.mrf.mxu0
    %3236 = vdwg.mxu0
    %v3237 = vmax.f32 %v3215, 0.0
    %v3238 = vmax.f32 %v3218, 0.0
    %v3239 = vmax.f32 %v3223, 0.0
    %v3240 = vmax.f32 %v3226, 0.0
    %v3241 = vmax.f32 %v3231, 0.0
    %v3242 = vmax.f32 %v3234, 0.0
    %v3243 = vpack.c.bf16 %v3238, %v3237
    %v3244 = vpack.c.bf16 %v3240, %v3239
    %v3245 = vpack.c.bf16 %v3242, %v3241
    %v3246 = vld [vmem:[%s9] sm:$0xf]
    %v3247 = vld [vmem:[%s9 + $0x4] sm:$0xf]
    %v3248 = vld [vmem:[%s9 + $0x8] sm:$0xf]
    %v3249 = vld [vmem:[%s9 + $0xc] sm:$0xf]
    %v3250 = vld [vmem:[%s9 + $0x10] sm:$0xf]
    %v3251 = vld [vmem:[%s9 + $0x14] sm:$0xf]
    %v3252 = vld [vmem:[%s9 + $0x18] sm:$0xf]
    %v3253 = vld [vmem:[%s9 + $0x1c] sm:$0xf]
    %v3254 = vld [vmem:[%s10] sm:$0x1]
    %v3256 = vlaneseq
    %v3257 = vshrl.u32 %v3256, 7
    %v3258 = vsub.s32 0, %v3257
    %v3259 = vrot.slane %v3254, %v3258
    %v3269 = vunpack.c.l.b16 %v3246
    %v3270 = vunpack.c.l.b16 %v3247
    %v3271 = vunpack.c.l.b16 %v3248
    %v3272 = vunpack.c.l.b16 %v3249
    %v3273 = vunpack.c.l.b16 %v3250
    %v3274 = vunpack.c.l.b16 %v3251
    %v3275 = vunpack.c.l.b16 %v3252
    %v3276 = vunpack.c.l.b16 %v3253
    %v3277 = vpack.c.b16 %v3270, %v3269
    %v3278 = vpack.c.b16 %v3272, %v3271
    %v3279 = vpack.c.b16 %v3274, %v3273
    %v3280 = vpack.c.b16 %v3276, %v3275
    %vm3285 = vcmask 523264
    %v3287 = vsel %vm3285, %v3243, 0
    %v3290 = vsel %vm3285, %v3244, 0
    %v3293 = vsel %vm3285, %v3245, 0
    %3295 = vmatprep.subr.bf16.mxu0 0
    %3296 = vmatpush1.bf16.msra.mxu0 0
    %3297 = vmatprep.subr.bf16.mxu0 0
    %3298 = vmatpush1.bf16.msra.mxu0 0
    %3299 = vmatprep.subr.bf16.mxu0 0
    %3300 = vmatpush1.bf16.msra.mxu0 0
    %3301 = vmatprep.subr.bf16.mxu0 0
    %3302 = vmatpush1.bf16.msra.mxu0 0
    %3303 = vmatprep.subr.bf16.mxu0 0
    %3304 = vmatpush1.bf16.msra.mxu0 %v3280
    %3305 = vmatprep.subr.bf16.mxu0 0
    %3306 = vmatpush1.bf16.msra.mxu0 %v3279
    %3307 = vmatprep.subr.bf16.mxu0 0
    %3308 = vmatpush1.bf16.msra.mxu0 %v3278
    %3309 = vmatprep.subr.bf16.mxu0 0
    %3310 = vmatpush1.bf16.msra.mxu0 %v3277
    %3311 = vmatprep.subr.bf16.mxu0 0
    %3312 = vmatpush2.bf16.msra.mxu0 0
    %3313 = vmatprep.subr.bf16.mxu0 0
    %3314 = vmatpush2.bf16.msra.mxu0 0
    %3315 = vmatprep.subr.bf16.mxu0 0
    %3316 = vmatpush2.bf16.msra.mxu0 0
    %3317 = vmatprep.subr.bf16.mxu0 0
    %3318 = vmatpush2.bf16.msra.mxu0 0
    %3319 = vmatprep.subr.bf16.mxu0 0
    %3320 = vmatpush2.bf16.msra.mxu0 0
    %3321 = vmatprep.subr.bf16.mxu0 0
    %3322 = vmatpush2.bf16.msra.mxu0 0
    %3323 = vmatprep.subr.bf16.mxu0 0
    %3324 = vmatpush2.bf16.msra.mxu0 0
    %3325 = vmatprep.subr.bf16.mxu0 0
    %3326 = vmatpush2.bf16.msra.mxu0 0
    %3327 = vmatprep.mubr.bf16.mxu0 0
    %3328 = vmatmul.mubr.bf16.gmra.mxu0 %v3287
    %v3329 = vpop.f32.mrf.mxu0
    %v3330 = vadd.f32 %v3259, %v3329
    %v3331 = vpop.f32.mrf.mxu0
    %v3332 = vpop.f32.mrf.mxu0
    %v3333 = vadd.f32 %v3259, %v3332
    %v3334 = vpop.f32.mrf.mxu0
    %3335 = vmatprep.mubr.bf16.mxu0 0
    %3336 = vmatmul.mubr.bf16.gmra.mxu0 %v3290
    %v3337 = vpop.f32.mrf.mxu0
    %v3338 = vadd.f32 %v3259, %v3337
    %v3339 = vpop.f32.mrf.mxu0
    %v3340 = vpop.f32.mrf.mxu0
    %v3341 = vadd.f32 %v3259, %v3340
    %v3342 = vpop.f32.mrf.mxu0
    %3343 = vmatprep.mubr.bf16.mxu0 0
    %3344 = vmatmul.mubr.bf16.gmra.mxu0 %v3293
    %v3345 = vpop.f32.mrf.mxu0
    %v3346 = vadd.f32 %v3259, %v3345
    %v3347 = vpop.f32.mrf.mxu0
    %v3348 = vpop.f32.mrf.mxu0
    %v3349 = vadd.f32 %v3259, %v3348
    %v3350 = vpop.f32.mrf.mxu0
    %3351 = vdwg.mxu0
    %v3352 = vlaneseq
    %v3353 = vshrl.u32 %v3352, 7
    %v3354 = vsub.s32 2, %v3353
    %v3355 = vrot.slane %v3118, %v3354
    %v3356 = vmul.f32 %v3330, %v3355
    %v3357 = vmul.f32 %v3333, %v3355
    %v3358 = vmul.f32 %v3338, %v3355
    %v3359 = vmul.f32 %v3341, %v3355
    %v3360 = vmul.f32 %v3346, %v3355
    %v3361 = vmul.f32 %v3349, %v3355
    %v3362 = vlaneseq
    %v3363 = vshrl.u32 %v3362, 7
    %v3364 = vsub.s32 3, %v3363
    %v3365 = vrot.slane %v3118, %v3364
    %v3366 = vadd.f32 %v3356, %v3365
    %v3367 = vadd.f32 %v3357, %v3365
    %v3368 = vadd.f32 %v3358, %v3365
    %v3369 = vadd.f32 %v3359, %v3365
    %v3370 = vadd.f32 %v3360, %v3365
    %v3371 = vadd.f32 %v3361, %v3365
    %v3372 = vadd.f32 %v3366, %v3139
    %v3373 = vadd.f32 %v3367, %v3140
    %v3374 = vadd.f32 %v3368, %v3141
    %v3375 = vadd.f32 %v3369, %v3142
    %v3376 = vadd.f32 %v3370, %v3143
    %v3377 = vadd.f32 %v3371, %v3144
    %v3384 = vrot.slane %v3373, 7
    %vm3385 = vcmask 1041409
    %v3386 = vsel %vm3385, %v3384, %v3372
    %v3387 = vrot.slane %v3374, 6
    %vm3388 = vcmask 1042434
    %v3389 = vsel %vm3388, %v3387, %v3386
    %v3390 = vrot.slane %v3375, 5
    %vm3391 = vcmask 1043459
    %v3392 = vsel %vm3391, %v3390, %v3389
    %v3393 = vrot.slane %v3376, 4
    %vm3394 = vcmask 1044484
    %v3395 = vsel %vm3394, %v3393, %v3392
    %v3396 = vrot.slane %v3377, 3
    %vm3397 = vcmask 1045509
    %v3398 = vsel %vm3397, %v3396, %v3395
    %v3400 = vrot.slane %v3372, 1
    %v3401 = vsel %vm3385, %v3373, %v3400
    %v3402 = vrot.slane %v3374, 7
    %v3403 = vsel %vm3388, %v3402, %v3401
    %v3404 = vrot.slane %v3375, 6
    %v3405 = vsel %vm3391, %v3404, %v3403
    %v3406 = vrot.slane %v3376, 5
    %v3407 = vsel %vm3394, %v3406, %v3405
    %v3408 = vrot.slane %v3377, 4
    %v3409 = vsel %vm3397, %v3408, %v3407
    %3410 = vrot.lane.b32.xlu0 %v3409, 32
    %v3411 = vpop.permute.xlu0 %3410
    %v3413 = vrot.slane %v3372, 2
    %v3414 = vrot.slane %v3373, 1
    %v3415 = vsel %vm3385, %v3414, %v3413
    %v3416 = vsel %vm3388, %v3374, %v3415
    %v3417 = vrot.slane %v3375, 7
    %v3418 = vsel %vm3391, %v3417, %v3416
    %v3419 = vrot.slane %v3376, 6
    %v3420 = vsel %vm3394, %v3419, %v3418
    %v3421 = vrot.slane %v3377, 5
    %v3422 = vsel %vm3397, %v3421, %v3420
    %3423 = vrot.lane.b32.xlu0 %v3422, 64
    %v3424 = vpop.permute.xlu0 %3423
    %v3426 = vrot.slane %v3372, 3
    %v3427 = vrot.slane %v3373, 2
    %v3428 = vsel %vm3385, %v3427, %v3426
    %v3429 = vrot.slane %v3374, 1
    %v3430 = vsel %vm3388, %v3429, %v3428
    %v3431 = vsel %vm3391, %v3375, %v3430
    %v3432 = vrot.slane %v3376, 7
    %v3433 = vsel %vm3394, %v3432, %v3431
    %v3434 = vrot.slane %v3377, 6
    %v3435 = vsel %vm3397, %v3434, %v3433
    %3436 = vrot.lane.b32.xlu0 %v3435, 96
    %v3437 = vpop.permute.xlu0 %3436
    %v3439 = vrot.slane %v3372, 4
    %v3440 = vrot.slane %v3373, 3
    %v3441 = vsel %vm3385, %v3440, %v3439
    %v3442 = vrot.slane %v3374, 2
    %v3443 = vsel %vm3388, %v3442, %v3441
    %v3444 = vrot.slane %v3375, 1
    %v3445 = vsel %vm3391, %v3444, %v3443
    %v3446 = vsel %vm3394, %v3376, %v3445
    %v3447 = vrot.slane %v3377, 7
    %v3448 = vsel %vm3397, %v3447, %v3446
    %v3450 = vrot.slane %v3372, 5
    %v3451 = vrot.slane %v3373, 4
    %v3452 = vsel %vm3385, %v3451, %v3450
    %v3453 = vrot.slane %v3374, 3
    %v3454 = vsel %vm3388, %v3453, %v3452
    %v3455 = vrot.slane %v3375, 2
    %v3456 = vsel %vm3391, %v3455, %v3454
    %v3457 = vrot.slane %v3376, 1
    %v3458 = vsel %vm3394, %v3457, %v3456
    %v3459 = vsel %vm3397, %v3377, %v3458
    %3460 = vrot.lane.b32.xlu0 %v3459, 32
    %v3461 = vpop.permute.xlu0 %3460
    %v3463 = vrot.slane %v3372, 6
    %v3464 = vrot.slane %v3373, 5
    %v3465 = vsel %vm3385, %v3464, %v3463
    %v3466 = vrot.slane %v3374, 4
    %v3467 = vsel %vm3388, %v3466, %v3465
    %v3468 = vrot.slane %v3375, 3
    %v3469 = vsel %vm3391, %v3468, %v3467
    %v3470 = vrot.slane %v3376, 2
    %v3471 = vsel %vm3394, %v3470, %v3469
    %v3472 = vrot.slane %v3377, 1
    %v3473 = vsel %vm3397, %v3472, %v3471
    %3474 = vrot.lane.b32.xlu0 %v3473, 64
    %v3475 = vpop.permute.xlu0 %3474
    %v3477 = vrot.slane %v3372, 7
    %v3478 = vrot.slane %v3373, 6
    %v3479 = vsel %vm3385, %v3478, %v3477
    %v3480 = vrot.slane %v3374, 5
    %v3481 = vsel %vm3388, %v3480, %v3479
    %v3482 = vrot.slane %v3375, 4
    %v3483 = vsel %vm3391, %v3482, %v3481
    %v3484 = vrot.slane %v3376, 3
    %v3485 = vsel %vm3394, %v3484, %v3483
    %v3486 = vrot.slane %v3377, 2
    %v3487 = vsel %vm3397, %v3486, %v3485
    %3488 = vrot.lane.b32.xlu0 %v3487, 96
    %v3489 = vpop.permute.xlu0 %3488
    %v3491 = vsel %vm156, %v3398, %v3411
    %v3492 = vsel %vm3285, %v3491, %v3424
    %vm3493 = vcmask 785408
    %v3494 = vsel %vm3493, %v3492, %v3437
    %v3495 = vsel %vm156, %v3448, %v3461
    %v3496 = vsel %vm3285, %v3495, %v3475
    %v3497 = vsel %vm3493, %v3496, %v3489
    %3498 = vst [vmem:[%s11] sm:$0x3f] %v3494
    %3499 = vst [vmem:[%s11 + $0x8] sm:$0x3f] %v3497
    // Predicated region
    $region66: #{fwd.1} parent=1 // pred_check
      _
    $region67: #{fwd.1} parent=1 // pred_check_branch
      %3501 = sbr.rel (0) target = $region69
    $region68: #{fwd.1} parent=1 // pred_region
      _
    $region69: #{fwd.1} parent=1 // pred_fallthru
      _
    // Predicated region
    $region70: #{fwd.1} parent=1 // pred_check
      _
    $region71: #{fwd.1} parent=1 // pred_check_branch
      %3503 = sbr.rel (0) target = $region73
    $region72: #{fwd.1} parent=1 // pred_region
      _
    $region73: #{fwd.1} parent=1 // pred_fallthru
      _
    %3504 = vsyncpa [#allocation3], 1
    %3505 = vsyncpa [#allocation5], 1
    %3506 = vsyncpa [#allocation8], 1

</llo_original>
